<compile_context>
chip_gen: v5e
topology: v5e:2x2
jax: 0.10.0
libtpu: 0.0.40
codegen_flags: <defaults>
</compile_context>

<pallas_src>
import jax
import jax.numpy as jnp
from jax.experimental import pallas as pl
from jax.experimental.pallas import tpu as pltpu


# ------------------------------- Pallas kernel --------------------------------

def _ntn_kernel(svo_ref,
                t1_ref, s1_ref, wa1_ref, wb1_ref, b1_ref,
                t2_ref, s2_ref, wa2_ref, wb2_ref, b2_ref,
                t3_ref, s3_ref, wa3_ref, wb3_ref, b3_ref,
                out_ref):
    """One batch tile. Compute is feature-major: activations are (features, TILE_B)."""
    f32, bf16 = jnp.float32, jnp.bfloat16

    def stage(o1_bf, o2_bf, o2_f, t_ref, sel_ref, wa_ref, wb_ref, b_ref):
        # o1_bf, o2_bf : (D, TB) bf16 (MXU operands);  o2_f : (D, TB) f32 (Hadamard operand)
        # t_ref  : (K*D, D) bf16  = T.view(D, K*D).T
        # sel_ref: (K, K*D) bf16  block-diagonal 0/1 selector (per-k bilinear sum)
        # wa_ref : (K, D)  bf16   = W_linear[:, :D],  wb_ref : (K, D) bf16 = W_linear[:, D:]
        # b_ref  : (K, 1)  f32
        d = o1_bf.shape[0]
        k = sel_ref.shape[0]
        # Bilinear inner products with o1 for all k slices: one lane-dense bf16 MXU dot, f32 acc.
        tmp = jnp.dot(t_ref[...], o1_bf, preferred_element_type=f32)            # (K*D, TB) f32
        # Chunk-wise Hadamard against the single (D, TB) o2 tile -- no o2 replication buffer.
        prod = jnp.concatenate(
            [(tmp[i * d:(i + 1) * d, :] * o2_f).astype(bf16) for i in range(k)],
            axis=0)                                                              # (K*D, TB) bf16
        # Three accumulated dots share one f32 result (no feature concat buffer).
        r = jnp.dot(sel_ref[...], prod, preferred_element_type=f32)             # bilinear sums
        r = r + jnp.dot(wa_ref[...], o1_bf, preferred_element_type=f32)         # W[:, :D] @ o1
        r = r + jnp.dot(wb_ref[...], o2_bf, preferred_element_type=f32)         # W[:, D:] @ o2
        return jnp.tanh(r + b_ref[...])                                          # (K, TB) f32

    # Batch-major (TB, E) input tiles -> feature-major (E, TB); cast to bf16 for the MXU.
    subj_f = svo_ref[0].T
    verb_f = svo_ref[1].T
    obj_f = svo_ref[2].T
    subj_bf = subj_f.astype(bf16)
    verb_bf = verb_f.astype(bf16)
    obj_bf = obj_f.astype(bf16)

    r1 = stage(subj_bf, verb_bf, verb_f, t1_ref, s1_ref, wa1_ref, wb1_ref, b1_ref)
    r2 = stage(verb_bf, obj_bf, obj_f, t2_ref, s2_ref, wa2_ref, wb2_ref, b2_ref)
    # dropout(p=0) is the identity
    u = stage(r1.astype(bf16), r2.astype(bf16), r2, t3_ref, s3_ref, wa3_ref, wb3_ref, b3_ref)
    out_ref[...] = u                                                             # lane-dense store


# --------------------------------- wrapper -------------------------------------

def _round_up(x, m):
    return ((x + m - 1) // m) * m


def _pick_tile_b(batch, tile_b):
    """Lane-axis tile: multiple of 128, large (step-overhead amortization), but >= 2 grid
    steps when the batch allows it (v7x has 2 TensorCores)."""
    cap = _round_up(max(batch, 1), 128)
    tb = min(max(128, _round_up(tile_b, 128)), cap)
    if batch > 128 and pl.cdiv(batch, tb) < 2:
        tb = max(128, _round_up((batch + 1) // 2, 128))
    return tb


def ntn_forward(svo, stage_params, *, tile_b=1024):
    """Forward pass.

    svo          : (3, B, E) float32  (svo[0]=subj, svo[1]=verb, svo[2]=obj) -- consumed as-is.
    stage_params : 3 tuples (t_t, sel, wa, wb, b_col) from make_stage_params (bf16 weights).
    Returns      : (B, K) float32
    """
    _, B, E = svo.shape
    K = stage_params[0][4].shape[0]

    tb = _pick_tile_b(B, tile_b)
    grid = (pl.cdiv(B, tb),)                       # remainder block handles B % tb != 0

    weights = tuple(p for sp in stage_params for p in sp)          # 15 small resident arrays

    svo_spec = pl.BlockSpec((3, tb, E), lambda i: (0, i, 0))       # batch-tiled, batch-major
    w_specs = [pl.BlockSpec(w.shape, lambda i: (0, 0)) for w in weights]  # resident in VMEM
    out_spec = pl.BlockSpec((K, tb), lambda i: (0, i))             # lane-dense feature-major

    def flops_stage(d, k):                         # per batch element per stage
        return 2 * k * d * d + 2 * k * k * d + 4 * k * d + k * d
    cost = pl.CostEstimate(
        flops=int(B * (2 * flops_stage(E, K) + flops_stage(K, K))),
        transcendentals=int(3 * B * K),
        bytes_accessed=int(svo.size * svo.dtype.itemsize + B * K * 4
                           + sum(int(w.size) * w.dtype.itemsize for w in weights)),
    )

    out_fm = pl.pallas_call(
        _ntn_kernel,
        out_shape=jax.ShapeDtypeStruct((K, B), jnp.float32),
        grid=grid,
        in_specs=[svo_spec] + w_specs,
        out_specs=out_spec,
        compiler_params=pltpu.CompilerParams(dimension_semantics=("parallel",)),
        cost_estimate=cost,
    )(svo, *weights)

    return out_fm.T                                                # back to (B, K)


# -------------------- parameter setup (glue JAX, deterministic) ----------------

def make_stage_params(key, D, K):
    """Synthetic init mirroring the PyTorch module (std=0.02 for T and the Linear).

    Returns (raw_params, kernel_params):
      raw_params    = (T_flat (D*D*K,), W (K, 2D), b (K,)) f32          -- PyTorch layout (reference)
      kernel_params = (t_t (K*D, D), sel (K, K*D), wa (K, D), wb (K, D), b_col (K, 1))
                      with t_t/sel/wa/wb in bf16 (MXU operands), bias f32.
    """
    k_t, k_w, k_b = jax.random.split(key, 3)
    t_flat = 0.02 * jax.random.normal(k_t, (D * D * K,), jnp.float32)
    w_lin = 0.02 * jax.random.normal(k_w, (K, 2 * D), jnp.float32)   # nn.Linear weight (out, in)
    b_lin = 0.02 * jax.random.normal(k_b, (K,), jnp.float32)

    bf16 = jnp.bfloat16
    t_t = t_flat.reshape(D, K * D).T.astype(bf16)                    # tmp = T2d^T @ o1
    sel = jnp.kron(jnp.eye(K, dtype=jnp.float32),
                   jnp.ones((1, D), jnp.float32)).astype(bf16)       # (K, K*D) 0/1 -> exact in bf16
    wa = w_lin[:, :D].astype(bf16)
    wb = w_lin[:, D:].astype(bf16)
    b_col = b_lin.reshape(K, 1)                                      # stays f32
    return (t_flat, w_lin, b_lin), (t_t, sel, wa, wb, b_col)


# ---------------- pure-JAX references ----------------

def ref_tensor_linear(o1, o2, t_flat, w_lin, b_lin):
    """Mirrors the PyTorch tensor_Linear in f32."""
    B, D = o1.shape
    lin = jnp.concatenate([o1, o2], axis=1) @ w_lin.T + b_lin
    tp = (o1 @ t_flat.reshape(D, -1)).reshape(B, -1, D)              # (B, K, D)
    bil = jnp.einsum('bkd,bd->bk', tp, o2)
    return bil + lin


def ref_forward(svo, raw_params):
    subj, verb, obj = svo[0], svo[1], svo[2]
    (t1, w1, b1), (t2, w2, b2), (t3, w3, b3) = raw_params
    r1 = jnp.tanh(ref_tensor_linear(subj, verb, t1, w1, b1))
    r2 = jnp.tanh(ref_tensor_linear(verb, obj, t2, w2, b2))
    return jnp.tanh(ref_tensor_linear(r1, r2, t3, w3, b3))


def _q(x):  # bf16 round-trip, matching the kernel's MXU-operand quantization
    return x.astype(jnp.bfloat16).astype(jnp.float32)


def ref_stage_q(o1, o2, kp):
    """Quantization-matched stage: same bf16 roundings as the kernel, all math in f32."""
    t_t, sel, wa, wb, b = kp
    f32 = jnp.float32
    K, D = wa.shape
    o1q, o2q = _q(o1), _q(o2)
    tmp = o1q @ t_t.astype(f32).T                                    # (B, K*D)
    prod = _q(tmp.reshape(-1, K, D) * o2[:, None, :])                # Hadamard w/ unrounded o2
    r = prod.reshape(-1, K * D) @ sel.astype(f32).T
    r = r + o1q @ wa.astype(f32).T + o2q @ wb.astype(f32).T + b.reshape(1, K)
    return jnp.tanh(r)


def ref_forward_q(svo, kernel_params):
    st1, st2, st3 = kernel_params
    subj, verb, obj = svo[0], svo[1], svo[2]
    r1 = ref_stage_q(subj, verb, st1)
    r2 = ref_stage_q(verb, obj, st2)
    return ref_stage_q(r1, r2, st3)


if __name__ == "__main__":
    B, E, K = 300, 32, 8            # batch, embedding_size, tensor_dim (small demo shapes)
    key = jax.random.PRNGKey(0)
    k_in, k1, k2, k3 = jax.random.split(key, 4)

    svo = jax.random.normal(k_in, (3, B, E), jnp.float32)

    raw1, st1 = make_stage_params(k1, E, K)
    raw2, st2 = make_stage_params(k2, E, K)
    raw3, st3 = make_stage_params(k3, K, K)

    # B=300, default tile 1024 -> tile shrinks to 256 -> grid of 2 "parallel" steps with a
    # ragged last block (exercises multi-step pipelining, megacore sharding, remainder masking).
    u = ntn_forward(svo, (st1, st2, st3))
    u = jax.block_until_ready(u)
    assert u.shape == (B, K)

    # Quantization-matched reference (same bf16 MXU-operand roundings, f32 everywhere else).
    u_q = ref_forward_q(svo, (st1, st2, st3))
    assert jnp.allclose(u, u_q, atol=3e-3), "mismatch vs quantization-matched reference"

    # Loose sanity bound vs the full-f32 PyTorch-equivalent reference (bf16 rounding only).
    u_fp = ref_forward(svo, (raw1, raw2, raw3))
    assert jnp.allclose(u, u_fp, atol=5e-2), "bf16 rounding error vs f32 reference too large"

    print("KERNEL_OK")
</pallas_src>

<mosaic_0001>
module attributes {stable_mosaic.version = 11 : i64} {
  func.func @_ntn_kernel(%arg0: i32, %arg1: memref<3x256x32xf32, #tpu.memory_space<vmem>>, %arg2: memref<256x32xbf16, #tpu.memory_space<vmem>>, %arg3: memref<8x256xbf16, #tpu.memory_space<vmem>>, %arg4: memref<8x32xbf16, #tpu.memory_space<vmem>>, %arg5: memref<8x32xbf16, #tpu.memory_space<vmem>>, %arg6: memref<8x1xf32, #tpu.memory_space<vmem>>, %arg7: memref<256x32xbf16, #tpu.memory_space<vmem>>, %arg8: memref<8x256xbf16, #tpu.memory_space<vmem>>, %arg9: memref<8x32xbf16, #tpu.memory_space<vmem>>, %arg10: memref<8x32xbf16, #tpu.memory_space<vmem>>, %arg11: memref<8x1xf32, #tpu.memory_space<vmem>>, %arg12: memref<64x8xbf16, #tpu.memory_space<vmem>>, %arg13: memref<8x64xbf16, #tpu.memory_space<vmem>>, %arg14: memref<8x8xbf16, #tpu.memory_space<vmem>>, %arg15: memref<8x8xbf16, #tpu.memory_space<vmem>>, %arg16: memref<8x1xf32, #tpu.memory_space<vmem>>, %arg17: memref<8x256xf32, #tpu.memory_space<vmem>>) attributes {dimension_semantics = [#tpu.dimension_semantics<parallel>], iteration_bounds = array<i64: 2>, scalar_prefetch = 0 : i64, scratch_operands = 0 : i64, tpu.core_type = #tpu.core_type<tc>, window_params = [{transform_indices = @transform_0, window_bounds = array<i64: 3, 256, 32>}, {pipeline_mode = #tpu.pipeline_mode<synchronous>, transform_indices = @transform_1, window_bounds = array<i64: 256, 32>}, {pipeline_mode = #tpu.pipeline_mode<synchronous>, transform_indices = @transform_2, window_bounds = array<i64: 8, 256>}, {pipeline_mode = #tpu.pipeline_mode<synchronous>, transform_indices = @transform_3, window_bounds = array<i64: 8, 32>}, {pipeline_mode = #tpu.pipeline_mode<synchronous>, transform_indices = @transform_4, window_bounds = array<i64: 8, 32>}, {pipeline_mode = #tpu.pipeline_mode<synchronous>, transform_indices = @transform_5, window_bounds = array<i64: 8, 1>}, {pipeline_mode = #tpu.pipeline_mode<synchronous>, transform_indices = @transform_6, window_bounds = array<i64: 256, 32>}, {pipeline_mode = #tpu.pipeline_mode<synchronous>, transform_indices = @transform_7, window_bounds = array<i64: 8, 256>}, {pipeline_mode = #tpu.pipeline_mode<synchronous>, transform_indices = @transform_8, window_bounds = array<i64: 8, 32>}, {pipeline_mode = #tpu.pipeline_mode<synchronous>, transform_indices = @transform_9, window_bounds = array<i64: 8, 32>}, {pipeline_mode = #tpu.pipeline_mode<synchronous>, transform_indices = @transform_10, window_bounds = array<i64: 8, 1>}, {pipeline_mode = #tpu.pipeline_mode<synchronous>, transform_indices = @transform_11, window_bounds = array<i64: 64, 8>}, {pipeline_mode = #tpu.pipeline_mode<synchronous>, transform_indices = @transform_12, window_bounds = array<i64: 8, 64>}, {pipeline_mode = #tpu.pipeline_mode<synchronous>, transform_indices = @transform_13, window_bounds = array<i64: 8, 8>}, {pipeline_mode = #tpu.pipeline_mode<synchronous>, transform_indices = @transform_14, window_bounds = array<i64: 8, 8>}, {pipeline_mode = #tpu.pipeline_mode<synchronous>, transform_indices = @transform_15, window_bounds = array<i64: 8, 1>}, {transform_indices = @transform_16, window_bounds = array<i64: 8, 256>}]} {
    %c0 = arith.constant 0 : index
    %c0_0 = arith.constant 0 : index
    %c0_1 = arith.constant 0 : index
    %0 = vector.load %arg1[%c0, %c0_0, %c0_1] : memref<3x256x32xf32, #tpu.memory_space<vmem>>, vector<1x256x32xf32>
    %1 = vector.shape_cast %0 : vector<1x256x32xf32> to vector<256x32xf32>
    %2 = tpu.transpose %1, [1, 0] : vector<256x32xf32> -> vector<32x256xf32>
    %c1 = arith.constant 1 : index
    %c0_2 = arith.constant 0 : index
    %c0_3 = arith.constant 0 : index
    %3 = vector.load %arg1[%c1, %c0_2, %c0_3] : memref<3x256x32xf32, #tpu.memory_space<vmem>>, vector<1x256x32xf32>
    %4 = vector.shape_cast %3 : vector<1x256x32xf32> to vector<256x32xf32>
    %5 = tpu.transpose %4, [1, 0] : vector<256x32xf32> -> vector<32x256xf32>
    %c2 = arith.constant 2 : index
    %c0_4 = arith.constant 0 : index
    %c0_5 = arith.constant 0 : index
    %6 = vector.load %arg1[%c2, %c0_4, %c0_5] : memref<3x256x32xf32, #tpu.memory_space<vmem>>, vector<1x256x32xf32>
    %7 = vector.shape_cast %6 : vector<1x256x32xf32> to vector<256x32xf32>
    %8 = tpu.transpose %7, [1, 0] : vector<256x32xf32> -> vector<32x256xf32>
    %9 = arith.truncf %2 : vector<32x256xf32> to vector<32x256xbf16>
    %10 = arith.truncf %5 : vector<32x256xf32> to vector<32x256xbf16>
    %11 = arith.truncf %8 : vector<32x256xf32> to vector<32x256xbf16>
    %c0_6 = arith.constant 0 : index
    %c0_7 = arith.constant 0 : index
    %12 = vector.load %arg2[%c0_6, %c0_7] : memref<256x32xbf16, #tpu.memory_space<vmem>>, vector<256x32xbf16>
    %cst = arith.constant dense<0.000000e+00> : vector<256x256xf32>
    %13 = tpu.matmul %12, %9, %cst {dimension_numbers = #tpu.dot_dimension_numbers<[1], [0], [0], [1], [0, 0, 1, 1], [], []>} : vector<256x32xbf16>, vector<32x256xbf16>, vector<256x256xf32> -> vector<256x256xf32>
    %14 = vector.extract_strided_slice %13 {offsets = [0, 0], sizes = [32, 256], strides = [1, 1]} : vector<256x256xf32> to vector<32x256xf32>
    %15 = arith.mulf %14, %5 : vector<32x256xf32>
    %16 = arith.truncf %15 : vector<32x256xf32> to vector<32x256xbf16>
    %17 = vector.extract_strided_slice %13 {offsets = [32, 0], sizes = [32, 256], strides = [1, 1]} : vector<256x256xf32> to vector<32x256xf32>
    %18 = arith.mulf %17, %5 : vector<32x256xf32>
    %19 = arith.truncf %18 : vector<32x256xf32> to vector<32x256xbf16>
    %20 = vector.extract_strided_slice %13 {offsets = [64, 0], sizes = [32, 256], strides = [1, 1]} : vector<256x256xf32> to vector<32x256xf32>
    %21 = arith.mulf %20, %5 : vector<32x256xf32>
    %22 = arith.truncf %21 : vector<32x256xf32> to vector<32x256xbf16>
    %23 = vector.extract_strided_slice %13 {offsets = [96, 0], sizes = [32, 256], strides = [1, 1]} : vector<256x256xf32> to vector<32x256xf32>
    %24 = arith.mulf %23, %5 : vector<32x256xf32>
    %25 = arith.truncf %24 : vector<32x256xf32> to vector<32x256xbf16>
    %26 = vector.extract_strided_slice %13 {offsets = [128, 0], sizes = [32, 256], strides = [1, 1]} : vector<256x256xf32> to vector<32x256xf32>
    %27 = arith.mulf %26, %5 : vector<32x256xf32>
    %28 = arith.truncf %27 : vector<32x256xf32> to vector<32x256xbf16>
    %29 = vector.extract_strided_slice %13 {offsets = [160, 0], sizes = [32, 256], strides = [1, 1]} : vector<256x256xf32> to vector<32x256xf32>
    %30 = arith.mulf %29, %5 : vector<32x256xf32>
    %31 = arith.truncf %30 : vector<32x256xf32> to vector<32x256xbf16>
    %32 = vector.extract_strided_slice %13 {offsets = [192, 0], sizes = [32, 256], strides = [1, 1]} : vector<256x256xf32> to vector<32x256xf32>
    %33 = arith.mulf %32, %5 : vector<32x256xf32>
    %34 = arith.truncf %33 : vector<32x256xf32> to vector<32x256xbf16>
    %35 = vector.extract_strided_slice %13 {offsets = [224, 0], sizes = [32, 256], strides = [1, 1]} : vector<256x256xf32> to vector<32x256xf32>
    %36 = arith.mulf %35, %5 : vector<32x256xf32>
    %37 = arith.truncf %36 : vector<32x256xf32> to vector<32x256xbf16>
    %38 = tpu.concatenate %16, %19, %22, %25, %28, %31, %34, %37 in 0 : vector<32x256xbf16>, vector<32x256xbf16>, vector<32x256xbf16>, vector<32x256xbf16>, vector<32x256xbf16>, vector<32x256xbf16>, vector<32x256xbf16>, vector<32x256xbf16> -> vector<256x256xbf16>
    %c0_8 = arith.constant 0 : index
    %c0_9 = arith.constant 0 : index
    %39 = vector.load %arg3[%c0_8, %c0_9] : memref<8x256xbf16, #tpu.memory_space<vmem>>, vector<8x256xbf16>
    %cst_10 = arith.constant dense<0.000000e+00> : vector<8x256xf32>
    %40 = tpu.matmul %39, %38, %cst_10 {dimension_numbers = #tpu.dot_dimension_numbers<[1], [0], [0], [1], [0, 0, 1, 1], [], []>} : vector<8x256xbf16>, vector<256x256xbf16>, vector<8x256xf32> -> vector<8x256xf32>
    %c0_11 = arith.constant 0 : index
    %c0_12 = arith.constant 0 : index
    %41 = vector.load %arg4[%c0_11, %c0_12] : memref<8x32xbf16, #tpu.memory_space<vmem>>, vector<8x32xbf16>
    %cst_13 = arith.constant dense<0.000000e+00> : vector<8x256xf32>
    %42 = tpu.matmul %41, %9, %cst_13 {dimension_numbers = #tpu.dot_dimension_numbers<[1], [0], [0], [1], [0, 0, 1, 1], [], []>} : vector<8x32xbf16>, vector<32x256xbf16>, vector<8x256xf32> -> vector<8x256xf32>
    %43 = arith.addf %40, %42 : vector<8x256xf32>
    %c0_14 = arith.constant 0 : index
    %c0_15 = arith.constant 0 : index
    %44 = vector.load %arg5[%c0_14, %c0_15] : memref<8x32xbf16, #tpu.memory_space<vmem>>, vector<8x32xbf16>
    %cst_16 = arith.constant dense<0.000000e+00> : vector<8x256xf32>
    %45 = tpu.matmul %44, %10, %cst_16 {dimension_numbers = #tpu.dot_dimension_numbers<[1], [0], [0], [1], [0, 0, 1, 1], [], []>} : vector<8x32xbf16>, vector<32x256xbf16>, vector<8x256xf32> -> vector<8x256xf32>
    %46 = arith.addf %43, %45 : vector<8x256xf32>
    %c0_17 = arith.constant 0 : index
    %c0_18 = arith.constant 0 : index
    %47 = vector.load %arg6[%c0_17, %c0_18] : memref<8x1xf32, #tpu.memory_space<vmem>>, vector<8x1xf32>
    %48 = vector.broadcast %47 : vector<8x1xf32> to vector<8x256xf32>
    %49 = arith.addf %46, %48 : vector<8x256xf32>
    %50 = math.tanh %49 : vector<8x256xf32>
    %c0_19 = arith.constant 0 : index
    %c0_20 = arith.constant 0 : index
    %51 = vector.load %arg7[%c0_19, %c0_20] : memref<256x32xbf16, #tpu.memory_space<vmem>>, vector<256x32xbf16>
    %cst_21 = arith.constant dense<0.000000e+00> : vector<256x256xf32>
    %52 = tpu.matmul %51, %10, %cst_21 {dimension_numbers = #tpu.dot_dimension_numbers<[1], [0], [0], [1], [0, 0, 1, 1], [], []>} : vector<256x32xbf16>, vector<32x256xbf16>, vector<256x256xf32> -> vector<256x256xf32>
    %53 = vector.extract_strided_slice %52 {offsets = [0, 0], sizes = [32, 256], strides = [1, 1]} : vector<256x256xf32> to vector<32x256xf32>
    %54 = arith.mulf %53, %8 : vector<32x256xf32>
    %55 = arith.truncf %54 : vector<32x256xf32> to vector<32x256xbf16>
    %56 = vector.extract_strided_slice %52 {offsets = [32, 0], sizes = [32, 256], strides = [1, 1]} : vector<256x256xf32> to vector<32x256xf32>
    %57 = arith.mulf %56, %8 : vector<32x256xf32>
    %58 = arith.truncf %57 : vector<32x256xf32> to vector<32x256xbf16>
    %59 = vector.extract_strided_slice %52 {offsets = [64, 0], sizes = [32, 256], strides = [1, 1]} : vector<256x256xf32> to vector<32x256xf32>
    %60 = arith.mulf %59, %8 : vector<32x256xf32>
    %61 = arith.truncf %60 : vector<32x256xf32> to vector<32x256xbf16>
    %62 = vector.extract_strided_slice %52 {offsets = [96, 0], sizes = [32, 256], strides = [1, 1]} : vector<256x256xf32> to vector<32x256xf32>
    %63 = arith.mulf %62, %8 : vector<32x256xf32>
    %64 = arith.truncf %63 : vector<32x256xf32> to vector<32x256xbf16>
    %65 = vector.extract_strided_slice %52 {offsets = [128, 0], sizes = [32, 256], strides = [1, 1]} : vector<256x256xf32> to vector<32x256xf32>
    %66 = arith.mulf %65, %8 : vector<32x256xf32>
    %67 = arith.truncf %66 : vector<32x256xf32> to vector<32x256xbf16>
    %68 = vector.extract_strided_slice %52 {offsets = [160, 0], sizes = [32, 256], strides = [1, 1]} : vector<256x256xf32> to vector<32x256xf32>
    %69 = arith.mulf %68, %8 : vector<32x256xf32>
    %70 = arith.truncf %69 : vector<32x256xf32> to vector<32x256xbf16>
    %71 = vector.extract_strided_slice %52 {offsets = [192, 0], sizes = [32, 256], strides = [1, 1]} : vector<256x256xf32> to vector<32x256xf32>
    %72 = arith.mulf %71, %8 : vector<32x256xf32>
    %73 = arith.truncf %72 : vector<32x256xf32> to vector<32x256xbf16>
    %74 = vector.extract_strided_slice %52 {offsets = [224, 0], sizes = [32, 256], strides = [1, 1]} : vector<256x256xf32> to vector<32x256xf32>
    %75 = arith.mulf %74, %8 : vector<32x256xf32>
    %76 = arith.truncf %75 : vector<32x256xf32> to vector<32x256xbf16>
    %77 = tpu.concatenate %55, %58, %61, %64, %67, %70, %73, %76 in 0 : vector<32x256xbf16>, vector<32x256xbf16>, vector<32x256xbf16>, vector<32x256xbf16>, vector<32x256xbf16>, vector<32x256xbf16>, vector<32x256xbf16>, vector<32x256xbf16> -> vector<256x256xbf16>
    %c0_22 = arith.constant 0 : index
    %c0_23 = arith.constant 0 : index
    %78 = vector.load %arg8[%c0_22, %c0_23] : memref<8x256xbf16, #tpu.memory_space<vmem>>, vector<8x256xbf16>
    %cst_24 = arith.constant dense<0.000000e+00> : vector<8x256xf32>
    %79 = tpu.matmul %78, %77, %cst_24 {dimension_numbers = #tpu.dot_dimension_numbers<[1], [0], [0], [1], [0, 0, 1, 1], [], []>} : vector<8x256xbf16>, vector<256x256xbf16>, vector<8x256xf32> -> vector<8x256xf32>
    %c0_25 = arith.constant 0 : index
    %c0_26 = arith.constant 0 : index
    %80 = vector.load %arg9[%c0_25, %c0_26] : memref<8x32xbf16, #tpu.memory_space<vmem>>, vector<8x32xbf16>
    %cst_27 = arith.constant dense<0.000000e+00> : vector<8x256xf32>
    %81 = tpu.matmul %80, %10, %cst_27 {dimension_numbers = #tpu.dot_dimension_numbers<[1], [0], [0], [1], [0, 0, 1, 1], [], []>} : vector<8x32xbf16>, vector<32x256xbf16>, vector<8x256xf32> -> vector<8x256xf32>
    %82 = arith.addf %79, %81 : vector<8x256xf32>
    %c0_28 = arith.constant 0 : index
    %c0_29 = arith.constant 0 : index
    %83 = vector.load %arg10[%c0_28, %c0_29] : memref<8x32xbf16, #tpu.memory_space<vmem>>, vector<8x32xbf16>
    %cst_30 = arith.constant dense<0.000000e+00> : vector<8x256xf32>
    %84 = tpu.matmul %83, %11, %cst_30 {dimension_numbers = #tpu.dot_dimension_numbers<[1], [0], [0], [1], [0, 0, 1, 1], [], []>} : vector<8x32xbf16>, vector<32x256xbf16>, vector<8x256xf32> -> vector<8x256xf32>
    %85 = arith.addf %82, %84 : vector<8x256xf32>
    %c0_31 = arith.constant 0 : index
    %c0_32 = arith.constant 0 : index
    %86 = vector.load %arg11[%c0_31, %c0_32] : memref<8x1xf32, #tpu.memory_space<vmem>>, vector<8x1xf32>
    %87 = vector.broadcast %86 : vector<8x1xf32> to vector<8x256xf32>
    %88 = arith.addf %85, %87 : vector<8x256xf32>
    %89 = math.tanh %88 : vector<8x256xf32>
    %90 = arith.truncf %50 : vector<8x256xf32> to vector<8x256xbf16>
    %91 = arith.truncf %89 : vector<8x256xf32> to vector<8x256xbf16>
    %c0_33 = arith.constant 0 : index
    %c0_34 = arith.constant 0 : index
    %92 = vector.load %arg12[%c0_33, %c0_34] : memref<64x8xbf16, #tpu.memory_space<vmem>>, vector<64x8xbf16>
    %cst_35 = arith.constant dense<0.000000e+00> : vector<64x256xf32>
    %93 = tpu.matmul %92, %90, %cst_35 {dimension_numbers = #tpu.dot_dimension_numbers<[1], [0], [0], [1], [0, 0, 1, 1], [], []>} : vector<64x8xbf16>, vector<8x256xbf16>, vector<64x256xf32> -> vector<64x256xf32>
    %94 = vector.extract_strided_slice %93 {offsets = [0, 0], sizes = [8, 256], strides = [1, 1]} : vector<64x256xf32> to vector<8x256xf32>
    %95 = arith.mulf %94, %89 : vector<8x256xf32>
    %96 = arith.truncf %95 : vector<8x256xf32> to vector<8x256xbf16>
    %97 = vector.extract_strided_slice %93 {offsets = [8, 0], sizes = [8, 256], strides = [1, 1]} : vector<64x256xf32> to vector<8x256xf32>
    %98 = arith.mulf %97, %89 : vector<8x256xf32>
    %99 = arith.truncf %98 : vector<8x256xf32> to vector<8x256xbf16>
    %100 = vector.extract_strided_slice %93 {offsets = [16, 0], sizes = [8, 256], strides = [1, 1]} : vector<64x256xf32> to vector<8x256xf32>
    %101 = arith.mulf %100, %89 : vector<8x256xf32>
    %102 = arith.truncf %101 : vector<8x256xf32> to vector<8x256xbf16>
    %103 = vector.extract_strided_slice %93 {offsets = [24, 0], sizes = [8, 256], strides = [1, 1]} : vector<64x256xf32> to vector<8x256xf32>
    %104 = arith.mulf %103, %89 : vector<8x256xf32>
    %105 = arith.truncf %104 : vector<8x256xf32> to vector<8x256xbf16>
    %106 = vector.extract_strided_slice %93 {offsets = [32, 0], sizes = [8, 256], strides = [1, 1]} : vector<64x256xf32> to vector<8x256xf32>
    %107 = arith.mulf %106, %89 : vector<8x256xf32>
    %108 = arith.truncf %107 : vector<8x256xf32> to vector<8x256xbf16>
    %109 = vector.extract_strided_slice %93 {offsets = [40, 0], sizes = [8, 256], strides = [1, 1]} : vector<64x256xf32> to vector<8x256xf32>
    %110 = arith.mulf %109, %89 : vector<8x256xf32>
    %111 = arith.truncf %110 : vector<8x256xf32> to vector<8x256xbf16>
    %112 = vector.extract_strided_slice %93 {offsets = [48, 0], sizes = [8, 256], strides = [1, 1]} : vector<64x256xf32> to vector<8x256xf32>
    %113 = arith.mulf %112, %89 : vector<8x256xf32>
    %114 = arith.truncf %113 : vector<8x256xf32> to vector<8x256xbf16>
    %115 = vector.extract_strided_slice %93 {offsets = [56, 0], sizes = [8, 256], strides = [1, 1]} : vector<64x256xf32> to vector<8x256xf32>
    %116 = arith.mulf %115, %89 : vector<8x256xf32>
    %117 = arith.truncf %116 : vector<8x256xf32> to vector<8x256xbf16>
    %118 = tpu.concatenate %96, %99, %102, %105, %108, %111, %114, %117 in 0 : vector<8x256xbf16>, vector<8x256xbf16>, vector<8x256xbf16>, vector<8x256xbf16>, vector<8x256xbf16>, vector<8x256xbf16>, vector<8x256xbf16>, vector<8x256xbf16> -> vector<64x256xbf16>
    %c0_36 = arith.constant 0 : index
    %c0_37 = arith.constant 0 : index
    %119 = vector.load %arg13[%c0_36, %c0_37] : memref<8x64xbf16, #tpu.memory_space<vmem>>, vector<8x64xbf16>
    %cst_38 = arith.constant dense<0.000000e+00> : vector<8x256xf32>
    %120 = tpu.matmul %119, %118, %cst_38 {dimension_numbers = #tpu.dot_dimension_numbers<[1], [0], [0], [1], [0, 0, 1, 1], [], []>} : vector<8x64xbf16>, vector<64x256xbf16>, vector<8x256xf32> -> vector<8x256xf32>
    %c0_39 = arith.constant 0 : index
    %c0_40 = arith.constant 0 : index
    %121 = vector.load %arg14[%c0_39, %c0_40] : memref<8x8xbf16, #tpu.memory_space<vmem>>, vector<8x8xbf16>
    %cst_41 = arith.constant dense<0.000000e+00> : vector<8x256xf32>
    %122 = tpu.matmul %121, %90, %cst_41 {dimension_numbers = #tpu.dot_dimension_numbers<[1], [0], [0], [1], [0, 0, 1, 1], [], []>} : vector<8x8xbf16>, vector<8x256xbf16>, vector<8x256xf32> -> vector<8x256xf32>
    %123 = arith.addf %120, %122 : vector<8x256xf32>
    %c0_42 = arith.constant 0 : index
    %c0_43 = arith.constant 0 : index
    %124 = vector.load %arg15[%c0_42, %c0_43] : memref<8x8xbf16, #tpu.memory_space<vmem>>, vector<8x8xbf16>
    %cst_44 = arith.constant dense<0.000000e+00> : vector<8x256xf32>
    %125 = tpu.matmul %124, %91, %cst_44 {dimension_numbers = #tpu.dot_dimension_numbers<[1], [0], [0], [1], [0, 0, 1, 1], [], []>} : vector<8x8xbf16>, vector<8x256xbf16>, vector<8x256xf32> -> vector<8x256xf32>
    %126 = arith.addf %123, %125 : vector<8x256xf32>
    %c0_45 = arith.constant 0 : index
    %c0_46 = arith.constant 0 : index
    %127 = vector.load %arg16[%c0_45, %c0_46] : memref<8x1xf32, #tpu.memory_space<vmem>>, vector<8x1xf32>
    %128 = vector.broadcast %127 : vector<8x1xf32> to vector<8x256xf32>
    %129 = arith.addf %126, %128 : vector<8x256xf32>
    %130 = math.tanh %129 : vector<8x256xf32>
    %c0_47 = arith.constant 0 : index
    %c0_48 = arith.constant 0 : index
    %131 = vector.load %arg17[%c0_47, %c0_48] : memref<8x256xf32, #tpu.memory_space<vmem>>, vector<8x256xf32>
    tpu.vector_store %arg17[%c0_47, %c0_48], %130 {strides = array<i32>} : memref<8x256xf32, #tpu.memory_space<vmem>>, vector<8x256xf32>,
    return
  }
  func.func @transform_0(%arg0: i32) -> (i32, i32, i32) {
    %c0_i32 = arith.constant 0 : i32
    %c0_i32_0 = arith.constant 0 : i32
    %c0_i32_1 = arith.constant 0 : i32
    return %c0_i32, %arg0, %c0_i32_0 : i32, i32, i32
  }
  func.func @transform_1(%arg0: i32) -> (i32, i32) {
    %c0_i32 = arith.constant 0 : i32
    %c0_i32_0 = arith.constant 0 : i32
    %c0_i32_1 = arith.constant 0 : i32
    return %c0_i32, %c0_i32_0 : i32, i32
  }
  func.func @transform_2(%arg0: i32) -> (i32, i32) {
    %c0_i32 = arith.constant 0 : i32
    %c0_i32_0 = arith.constant 0 : i32
    %c0_i32_1 = arith.constant 0 : i32
    return %c0_i32, %c0_i32_0 : i32, i32
  }
  func.func @transform_3(%arg0: i32) -> (i32, i32) {
    %c0_i32 = arith.constant 0 : i32
    %c0_i32_0 = arith.constant 0 : i32
    %c0_i32_1 = arith.constant 0 : i32
    return %c0_i32, %c0_i32_0 : i32, i32
  }
  func.func @transform_4(%arg0: i32) -> (i32, i32) {
    %c0_i32 = arith.constant 0 : i32
    %c0_i32_0 = arith.constant 0 : i32
    %c0_i32_1 = arith.constant 0 : i32
    return %c0_i32, %c0_i32_0 : i32, i32
  }
  func.func @transform_5(%arg0: i32) -> (i32, i32) {
    %c0_i32 = arith.constant 0 : i32
    %c0_i32_0 = arith.constant 0 : i32
    %c0_i32_1 = arith.constant 0 : i32
    return %c0_i32, %c0_i32_0 : i32, i32
  }
  func.func @transform_6(%arg0: i32) -> (i32, i32) {
    %c0_i32 = arith.constant 0 : i32
    %c0_i32_0 = arith.constant 0 : i32
    %c0_i32_1 = arith.constant 0 : i32
    return %c0_i32, %c0_i32_0 : i32, i32
  }
  func.func @transform_7(%arg0: i32) -> (i32, i32) {
    %c0_i32 = arith.constant 0 : i32
    %c0_i32_0 = arith.constant 0 : i32
    %c0_i32_1 = arith.constant 0 : i32
    return %c0_i32, %c0_i32_0 : i32, i32
  }
  func.func @transform_8(%arg0: i32) -> (i32, i32) {
    %c0_i32 = arith.constant 0 : i32
    %c0_i32_0 = arith.constant 0 : i32
    %c0_i32_1 = arith.constant 0 : i32
    return %c0_i32, %c0_i32_0 : i32, i32
  }
  func.func @transform_9(%arg0: i32) -> (i32, i32) {
    %c0_i32 = arith.constant 0 : i32
    %c0_i32_0 = arith.constant 0 : i32
    %c0_i32_1 = arith.constant 0 : i32
    return %c0_i32, %c0_i32_0 : i32, i32
  }
  func.func @transform_10(%arg0: i32) -> (i32, i32) {
    %c0_i32 = arith.constant 0 : i32
    %c0_i32_0 = arith.constant 0 : i32
    %c0_i32_1 = arith.constant 0 : i32
    return %c0_i32, %c0_i32_0 : i32, i32
  }
  func.func @transform_11(%arg0: i32) -> (i32, i32) {
    %c0_i32 = arith.constant 0 : i32
    %c0_i32_0 = arith.constant 0 : i32
    %c0_i32_1 = arith.constant 0 : i32
    return %c0_i32, %c0_i32_0 : i32, i32
  }
  func.func @transform_12(%arg0: i32) -> (i32, i32) {
    %c0_i32 = arith.constant 0 : i32
    %c0_i32_0 = arith.constant 0 : i32
    %c0_i32_1 = arith.constant 0 : i32
    return %c0_i32, %c0_i32_0 : i32, i32
  }
  func.func @transform_13(%arg0: i32) -> (i32, i32) {
    %c0_i32 = arith.constant 0 : i32
    %c0_i32_0 = arith.constant 0 : i32
    %c0_i32_1 = arith.constant 0 : i32
    return %c0_i32, %c0_i32_0 : i32, i32
  }
  func.func @transform_14(%arg0: i32) -> (i32, i32) {
    %c0_i32 = arith.constant 0 : i32
    %c0_i32_0 = arith.constant 0 : i32
    %c0_i32_1 = arith.constant 0 : i32
    return %c0_i32, %c0_i32_0 : i32, i32
  }
  func.func @transform_15(%arg0: i32) -> (i32, i32) {
    %c0_i32 = arith.constant 0 : i32
    %c0_i32_0 = arith.constant 0 : i32
    %c0_i32_1 = arith.constant 0 : i32
    return %c0_i32, %c0_i32_0 : i32, i32
  }
  func.func @transform_16(%arg0: i32) -> (i32, i32) {
    %c0_i32 = arith.constant 0 : i32
    %c0_i32_0 = arith.constant 0 : i32
    return %c0_i32, %arg0 : i32, i32
  }
}

</mosaic_0001>

<llo_original>
// kernel: tpu_custom_call.1
$region0: #{tpu_custom_call.1}
  #allocation0 [shape = 'u32[]', space=smem, size = 0x4, offset = 0x4, fixed_abs, tag = 'smem constant byte address 0x4 - core index']
  #allocation1 [shape = 'u32[72,128]{1,0:T(1,128)}', space=vmem, size = 0x9000, scoped, tag = 'internal scratch']
  %s0 = inlined_call_operand.vmem [shape: f32[3,300,32], index: 0, kind: input, shape index: {}]
  %s1 = inlined_call_operand.vmem [shape: bf16[256,32], index: 1, kind: input, shape index: {}]
  %s2 = inlined_call_operand.vmem [shape: bf16[8,256], index: 2, kind: input, shape index: {}]
  %s3 = inlined_call_operand.vmem [shape: bf16[8,32], index: 3, kind: input, shape index: {}]
  %s4 = inlined_call_operand.vmem [shape: bf16[8,32], index: 4, kind: input, shape index: {}]
  %s5 = inlined_call_operand.vmem [shape: f32[8,1], index: 5, kind: input, shape index: {}]
  %s6 = inlined_call_operand.vmem [shape: bf16[256,32], index: 6, kind: input, shape index: {}]
  %s7 = inlined_call_operand.vmem [shape: bf16[8,256], index: 7, kind: input, shape index: {}]
  %s8 = inlined_call_operand.vmem [shape: bf16[8,32], index: 8, kind: input, shape index: {}]
  %s9 = inlined_call_operand.vmem [shape: bf16[8,32], index: 9, kind: input, shape index: {}]
  %s10 = inlined_call_operand.vmem [shape: f32[8,1], index: 10, kind: input, shape index: {}]
  %s11 = inlined_call_operand.vmem [shape: bf16[64,8], index: 11, kind: input, shape index: {}]
  %s12 = inlined_call_operand.vmem [shape: bf16[8,64], index: 12, kind: input, shape index: {}]
  %s13 = inlined_call_operand.vmem [shape: bf16[8,8], index: 13, kind: input, shape index: {}]
  %s14 = inlined_call_operand.vmem [shape: bf16[8,8], index: 14, kind: input, shape index: {}]
  %s15 = inlined_call_operand.vmem [shape: f32[8,1], index: 15, kind: input, shape index: {}]
  %s16 = inlined_call_operand.hbm [shape: f32[8,300], index: 16, kind: output, shape index: {}]
  %s17 = sld [smem:[#allocation0]]
  $region149: #{tpu_custom_call.1} parent=0
    _
  %s19 = ssub.s32 1, %s17
  %s20 = scalar_select 0, %s19, %s17
  $region1: #{tpu_custom_call.1} parent=0
    #allocation2 [shape = 'u8[786432]{0}', space=vmem, size = 0xc0000, scoped, tag = 'input window, operand 0']
    #allocation3 [shape = 'u8[16384]{0}', space=vmem, size = 0x4000, scoped, tag = 'output window, operand 0']
    #allocation4 [shape = 's32[2]{0}', space=sflag, size = 0x8, scoped, tag = 'scoped memory for tpu_custom_call.1']
    %21 = vsyncpa [#allocation4], 0
    %s22 = scalar_lea.sflag [#allocation4], 1
    %23 = vsyncpa %s22, 0
    loop: start=0, step=1, limit=4
    $region2: #{tpu_custom_call.1} parent=1 // loop_pre_header
      _
    $region3: #{tpu_custom_call.1} parent=1 // loop_header
      %s25 = sphi 0, %s29
      %p26 = scmp.ge.s32.totalorder %s25, 4
      %s35 = sphi 0, %s37
      %s38 = sphi 0, %s35
      %s39 = sphi 0, %s38
      %s55 = sphi 0, %s39
      %s59 = sphi 0, %s59
      %s61 = sphi 0, %s59
      %s62 = sphi 0, %s61
      %s76 = sphi 0, %s62
      %s80 = sphi 0, %s80
      %s82 = sphi 0, %s80
      %s83 = sphi 0, %s82
      %s97 = sphi 0, %s83
      %s101 = sphi 0, %s101
      %s103 = sphi 0, %s101
      %s104 = sphi 0, %s103
      %s118 = sphi 0, %s104
      %s122 = sphi 0, %s122
      %s124 = sphi 0, %s122
      %s125 = sphi 0, %s124
      %s139 = sphi 0, %s125
      %s143 = sphi 0, %s143
      %s145 = sphi 0, %s143
      %s146 = sphi 0, %s145
      %s160 = sphi 0, %s146
      %s164 = sphi 0, %s164
      %s166 = sphi 0, %s164
      %s167 = sphi 0, %s166
      %s181 = sphi 0, %s167
      %s185 = sphi 0, %s185
      %s187 = sphi 0, %s185
      %s188 = sphi 0, %s187
      %s202 = sphi 0, %s188
      %s206 = sphi 0, %s206
      %s208 = sphi 0, %s206
      %s209 = sphi 0, %s208
      %s223 = sphi 0, %s209
      %s227 = sphi 0, %s227
      %s229 = sphi 0, %s227
      %s230 = sphi 0, %s229
      %s244 = sphi 0, %s230
      %s248 = sphi 0, %s248
      %s250 = sphi 0, %s248
      %s251 = sphi 0, %s250
      %s265 = sphi 0, %s251
      %s269 = sphi 0, %s269
      %s271 = sphi 0, %s269
      %s272 = sphi 0, %s271
      %s286 = sphi 0, %s272
      %s290 = sphi 0, %s290
      %s292 = sphi 0, %s290
      %s293 = sphi 0, %s292
      %s307 = sphi 0, %s293
      %s311 = sphi 0, %s311
      %s313 = sphi 0, %s311
      %s314 = sphi 0, %s313
      %s328 = sphi 0, %s314
      %s332 = sphi 0, %s332
      %s334 = sphi 0, %s332
      %s335 = sphi 0, %s334
      %s349 = sphi 0, %s335
      %s353 = sphi 0, %s353
      %s355 = sphi 0, %s353
      %s356 = sphi 0, %s355
      %s370 = sphi 0, %s356
      %s376 = sphi 0, %s378
      %s379 = sphi 0, %s376
      %s380 = sphi 0, %s379
      %s396 = sphi 0, %s380
    $region4: #{tpu_custom_call.1} parent=1 // loop_header_branch
      %28 = sbr.rel (%p26) target = $region8
    $region5: #{tpu_custom_call.1} parent=1 // loop_body
      %s30 = ssub.s32 %s25, 1
      %s31 = ssub.s32 %s25, 2
      %s32 = sadd.s32 %s25, 1
      %s33 = ssub.s32 %s25, %s32
      %p34 = scmp.eq.s32.totalorder %s33, 0
      %s36 = sadd.s32 %s35, 1
      %s37 = scalar_select %p34, %s35, %s36
      %p40 = pneg %p34
      %p41 = scmp.eq.s32.totalorder %s25, 1
      %p42 = por %p40, %p41
      %p43 = scmp.ne.s32.totalorder %s35, %s38
      %p44 = scmp.eq.s32.totalorder %s25, 0
      %p45 = por %p43, %p44
      %p46 = scmp.ne.s32.totalorder %s35, %s38
      %p47 = scmp.eq.s32.totalorder %s30, 1
      %p48 = por %p46, %p47
      %p49 = scmp.ne.s32.totalorder %s38, %s39
      %p50 = scmp.eq.s32.totalorder %s30, 0
      %p51 = por %p49, %p50
      %p52 = scmp.ne.s32.totalorder %s38, %s39
      %p53 = scmp.eq.s32.totalorder %s31, 1
      %p54 = por %p52, %p53
      %p56 = scmp.ne.s32.totalorder %s39, %s55
      %p57 = scmp.eq.s32.totalorder %s31, 0
      %p58 = por %p56, %p57
      %s60 = sadd.s32 %s59, 1
      %p63 = scmp.eq.s32.totalorder %s25, 1
      %p64 = scmp.ne.s32.totalorder %s59, %s61
      %p65 = scmp.eq.s32.totalorder %s25, 0
      %p66 = por %p64, %p65
      %p67 = scmp.ne.s32.totalorder %s59, %s61
      %p68 = scmp.eq.s32.totalorder %s30, 1
      %p69 = por %p67, %p68
      %p70 = scmp.ne.s32.totalorder %s61, %s62
      %p71 = scmp.eq.s32.totalorder %s30, 0
      %p72 = por %p70, %p71
      %p73 = scmp.ne.s32.totalorder %s61, %s62
      %p74 = scmp.eq.s32.totalorder %s31, 1
      %p75 = por %p73, %p74
      %p77 = scmp.ne.s32.totalorder %s62, %s76
      %p78 = scmp.eq.s32.totalorder %s31, 0
      %p79 = por %p77, %p78
      %s81 = sadd.s32 %s80, 1
      %p84 = scmp.eq.s32.totalorder %s25, 1
      %p85 = scmp.ne.s32.totalorder %s80, %s82
      %p86 = scmp.eq.s32.totalorder %s25, 0
      %p87 = por %p85, %p86
      %p88 = scmp.ne.s32.totalorder %s80, %s82
      %p89 = scmp.eq.s32.totalorder %s30, 1
      %p90 = por %p88, %p89
      %p91 = scmp.ne.s32.totalorder %s82, %s83
      %p92 = scmp.eq.s32.totalorder %s30, 0
      %p93 = por %p91, %p92
      %p94 = scmp.ne.s32.totalorder %s82, %s83
      %p95 = scmp.eq.s32.totalorder %s31, 1
      %p96 = por %p94, %p95
      %p98 = scmp.ne.s32.totalorder %s83, %s97
      %p99 = scmp.eq.s32.totalorder %s31, 0
      %p100 = por %p98, %p99
      %s102 = sadd.s32 %s101, 1
      %p105 = scmp.eq.s32.totalorder %s25, 1
      %p106 = scmp.ne.s32.totalorder %s101, %s103
      %p107 = scmp.eq.s32.totalorder %s25, 0
      %p108 = por %p106, %p107
      %p109 = scmp.ne.s32.totalorder %s101, %s103
      %p110 = scmp.eq.s32.totalorder %s30, 1
      %p111 = por %p109, %p110
      %p112 = scmp.ne.s32.totalorder %s103, %s104
      %p113 = scmp.eq.s32.totalorder %s30, 0
      %p114 = por %p112, %p113
      %p115 = scmp.ne.s32.totalorder %s103, %s104
      %p116 = scmp.eq.s32.totalorder %s31, 1
      %p117 = por %p115, %p116
      %p119 = scmp.ne.s32.totalorder %s104, %s118
      %p120 = scmp.eq.s32.totalorder %s31, 0
      %p121 = por %p119, %p120
      %s123 = sadd.s32 %s122, 1
      %p126 = scmp.eq.s32.totalorder %s25, 1
      %p127 = scmp.ne.s32.totalorder %s122, %s124
      %p128 = scmp.eq.s32.totalorder %s25, 0
      %p129 = por %p127, %p128
      %p130 = scmp.ne.s32.totalorder %s122, %s124
      %p131 = scmp.eq.s32.totalorder %s30, 1
      %p132 = por %p130, %p131
      %p133 = scmp.ne.s32.totalorder %s124, %s125
      %p134 = scmp.eq.s32.totalorder %s30, 0
      %p135 = por %p133, %p134
      %p136 = scmp.ne.s32.totalorder %s124, %s125
      %p137 = scmp.eq.s32.totalorder %s31, 1
      %p138 = por %p136, %p137
      %p140 = scmp.ne.s32.totalorder %s125, %s139
      %p141 = scmp.eq.s32.totalorder %s31, 0
      %p142 = por %p140, %p141
      %s144 = sadd.s32 %s143, 1
      %p147 = scmp.eq.s32.totalorder %s25, 1
      %p148 = scmp.ne.s32.totalorder %s143, %s145
      %p149 = scmp.eq.s32.totalorder %s25, 0
      %p150 = por %p148, %p149
      %p151 = scmp.ne.s32.totalorder %s143, %s145
      %p152 = scmp.eq.s32.totalorder %s30, 1
      %p153 = por %p151, %p152
      %p154 = scmp.ne.s32.totalorder %s145, %s146
      %p155 = scmp.eq.s32.totalorder %s30, 0
      %p156 = por %p154, %p155
      %p157 = scmp.ne.s32.totalorder %s145, %s146
      %p158 = scmp.eq.s32.totalorder %s31, 1
      %p159 = por %p157, %p158
      %p161 = scmp.ne.s32.totalorder %s146, %s160
      %p162 = scmp.eq.s32.totalorder %s31, 0
      %p163 = por %p161, %p162
      %s165 = sadd.s32 %s164, 1
      %p168 = scmp.eq.s32.totalorder %s25, 1
      %p169 = scmp.ne.s32.totalorder %s164, %s166
      %p170 = scmp.eq.s32.totalorder %s25, 0
      %p171 = por %p169, %p170
      %p172 = scmp.ne.s32.totalorder %s164, %s166
      %p173 = scmp.eq.s32.totalorder %s30, 1
      %p174 = por %p172, %p173
      %p175 = scmp.ne.s32.totalorder %s166, %s167
      %p176 = scmp.eq.s32.totalorder %s30, 0
      %p177 = por %p175, %p176
      %p178 = scmp.ne.s32.totalorder %s166, %s167
      %p179 = scmp.eq.s32.totalorder %s31, 1
      %p180 = por %p178, %p179
      %p182 = scmp.ne.s32.totalorder %s167, %s181
      %p183 = scmp.eq.s32.totalorder %s31, 0
      %p184 = por %p182, %p183
      %s186 = sadd.s32 %s185, 1
      %p189 = scmp.eq.s32.totalorder %s25, 1
      %p190 = scmp.ne.s32.totalorder %s185, %s187
      %p191 = scmp.eq.s32.totalorder %s25, 0
      %p192 = por %p190, %p191
      %p193 = scmp.ne.s32.totalorder %s185, %s187
      %p194 = scmp.eq.s32.totalorder %s30, 1
      %p195 = por %p193, %p194
      %p196 = scmp.ne.s32.totalorder %s187, %s188
      %p197 = scmp.eq.s32.totalorder %s30, 0
      %p198 = por %p196, %p197
      %p199 = scmp.ne.s32.totalorder %s187, %s188
      %p200 = scmp.eq.s32.totalorder %s31, 1
      %p201 = por %p199, %p200
      %p203 = scmp.ne.s32.totalorder %s188, %s202
      %p204 = scmp.eq.s32.totalorder %s31, 0
      %p205 = por %p203, %p204
      %s207 = sadd.s32 %s206, 1
      %p210 = scmp.eq.s32.totalorder %s25, 1
      %p211 = scmp.ne.s32.totalorder %s206, %s208
      %p212 = scmp.eq.s32.totalorder %s25, 0
      %p213 = por %p211, %p212
      %p214 = scmp.ne.s32.totalorder %s206, %s208
      %p215 = scmp.eq.s32.totalorder %s30, 1
      %p216 = por %p214, %p215
      %p217 = scmp.ne.s32.totalorder %s208, %s209
      %p218 = scmp.eq.s32.totalorder %s30, 0
      %p219 = por %p217, %p218
      %p220 = scmp.ne.s32.totalorder %s208, %s209
      %p221 = scmp.eq.s32.totalorder %s31, 1
      %p222 = por %p220, %p221
      %p224 = scmp.ne.s32.totalorder %s209, %s223
      %p225 = scmp.eq.s32.totalorder %s31, 0
      %p226 = por %p224, %p225
      %s228 = sadd.s32 %s227, 1
      %p231 = scmp.eq.s32.totalorder %s25, 1
      %p232 = scmp.ne.s32.totalorder %s227, %s229
      %p233 = scmp.eq.s32.totalorder %s25, 0
      %p234 = por %p232, %p233
      %p235 = scmp.ne.s32.totalorder %s227, %s229
      %p236 = scmp.eq.s32.totalorder %s30, 1
      %p237 = por %p235, %p236
      %p238 = scmp.ne.s32.totalorder %s229, %s230
      %p239 = scmp.eq.s32.totalorder %s30, 0
      %p240 = por %p238, %p239
      %p241 = scmp.ne.s32.totalorder %s229, %s230
      %p242 = scmp.eq.s32.totalorder %s31, 1
      %p243 = por %p241, %p242
      %p245 = scmp.ne.s32.totalorder %s230, %s244
      %p246 = scmp.eq.s32.totalorder %s31, 0
      %p247 = por %p245, %p246
      %s249 = sadd.s32 %s248, 1
      %p252 = scmp.eq.s32.totalorder %s25, 1
      %p253 = scmp.ne.s32.totalorder %s248, %s250
      %p254 = scmp.eq.s32.totalorder %s25, 0
      %p255 = por %p253, %p254
      %p256 = scmp.ne.s32.totalorder %s248, %s250
      %p257 = scmp.eq.s32.totalorder %s30, 1
      %p258 = por %p256, %p257
      %p259 = scmp.ne.s32.totalorder %s250, %s251
      %p260 = scmp.eq.s32.totalorder %s30, 0
      %p261 = por %p259, %p260
      %p262 = scmp.ne.s32.totalorder %s250, %s251
      %p263 = scmp.eq.s32.totalorder %s31, 1
      %p264 = por %p262, %p263
      %p266 = scmp.ne.s32.totalorder %s251, %s265
      %p267 = scmp.eq.s32.totalorder %s31, 0
      %p268 = por %p266, %p267
      %s270 = sadd.s32 %s269, 1
      %p273 = scmp.eq.s32.totalorder %s25, 1
      %p274 = scmp.ne.s32.totalorder %s269, %s271
      %p275 = scmp.eq.s32.totalorder %s25, 0
      %p276 = por %p274, %p275
      %p277 = scmp.ne.s32.totalorder %s269, %s271
      %p278 = scmp.eq.s32.totalorder %s30, 1
      %p279 = por %p277, %p278
      %p280 = scmp.ne.s32.totalorder %s271, %s272
      %p281 = scmp.eq.s32.totalorder %s30, 0
      %p282 = por %p280, %p281
      %p283 = scmp.ne.s32.totalorder %s271, %s272
      %p284 = scmp.eq.s32.totalorder %s31, 1
      %p285 = por %p283, %p284
      %p287 = scmp.ne.s32.totalorder %s272, %s286
      %p288 = scmp.eq.s32.totalorder %s31, 0
      %p289 = por %p287, %p288
      %s291 = sadd.s32 %s290, 1
      %p294 = scmp.eq.s32.totalorder %s25, 1
      %p295 = scmp.ne.s32.totalorder %s290, %s292
      %p296 = scmp.eq.s32.totalorder %s25, 0
      %p297 = por %p295, %p296
      %p298 = scmp.ne.s32.totalorder %s290, %s292
      %p299 = scmp.eq.s32.totalorder %s30, 1
      %p300 = por %p298, %p299
      %p301 = scmp.ne.s32.totalorder %s292, %s293
      %p302 = scmp.eq.s32.totalorder %s30, 0
      %p303 = por %p301, %p302
      %p304 = scmp.ne.s32.totalorder %s292, %s293
      %p305 = scmp.eq.s32.totalorder %s31, 1
      %p306 = por %p304, %p305
      %p308 = scmp.ne.s32.totalorder %s293, %s307
      %p309 = scmp.eq.s32.totalorder %s31, 0
      %p310 = por %p308, %p309
      %s312 = sadd.s32 %s311, 1
      %p315 = scmp.eq.s32.totalorder %s25, 1
      %p316 = scmp.ne.s32.totalorder %s311, %s313
      %p317 = scmp.eq.s32.totalorder %s25, 0
      %p318 = por %p316, %p317
      %p319 = scmp.ne.s32.totalorder %s311, %s313
      %p320 = scmp.eq.s32.totalorder %s30, 1
      %p321 = por %p319, %p320
      %p322 = scmp.ne.s32.totalorder %s313, %s314
      %p323 = scmp.eq.s32.totalorder %s30, 0
      %p324 = por %p322, %p323
      %p325 = scmp.ne.s32.totalorder %s313, %s314
      %p326 = scmp.eq.s32.totalorder %s31, 1
      %p327 = por %p325, %p326
      %p329 = scmp.ne.s32.totalorder %s314, %s328
      %p330 = scmp.eq.s32.totalorder %s31, 0
      %p331 = por %p329, %p330
      %s333 = sadd.s32 %s332, 1
      %p336 = scmp.eq.s32.totalorder %s25, 1
      %p337 = scmp.ne.s32.totalorder %s332, %s334
      %p338 = scmp.eq.s32.totalorder %s25, 0
      %p339 = por %p337, %p338
      %p340 = scmp.ne.s32.totalorder %s332, %s334
      %p341 = scmp.eq.s32.totalorder %s30, 1
      %p342 = por %p340, %p341
      %p343 = scmp.ne.s32.totalorder %s334, %s335
      %p344 = scmp.eq.s32.totalorder %s30, 0
      %p345 = por %p343, %p344
      %p346 = scmp.ne.s32.totalorder %s334, %s335
      %p347 = scmp.eq.s32.totalorder %s31, 1
      %p348 = por %p346, %p347
      %p350 = scmp.ne.s32.totalorder %s335, %s349
      %p351 = scmp.eq.s32.totalorder %s31, 0
      %p352 = por %p350, %p351
      %s354 = sadd.s32 %s353, 1
      %p357 = scmp.eq.s32.totalorder %s25, 1
      %p358 = scmp.ne.s32.totalorder %s353, %s355
      %p359 = scmp.eq.s32.totalorder %s25, 0
      %p360 = por %p358, %p359
      %p361 = scmp.ne.s32.totalorder %s353, %s355
      %p362 = scmp.eq.s32.totalorder %s30, 1
      %p363 = por %p361, %p362
      %p364 = scmp.ne.s32.totalorder %s355, %s356
      %p365 = scmp.eq.s32.totalorder %s30, 0
      %p366 = por %p364, %p365
      %p367 = scmp.ne.s32.totalorder %s355, %s356
      %p368 = scmp.eq.s32.totalorder %s31, 1
      %p369 = por %p367, %p368
      %p371 = scmp.ne.s32.totalorder %s356, %s370
      %p372 = scmp.eq.s32.totalorder %s31, 0
      %p373 = por %p371, %p372
      %s374 = ssub.s32 %s25, %s32
      %p375 = scmp.eq.s32.totalorder %s374, 0
      %s377 = sadd.s32 %s376, 1
      %s378 = scalar_select %p375, %s376, %s377
      %p381 = pneg %p375
      %p382 = scmp.eq.s32.totalorder %s25, 1
      %p383 = por %p381, %p382
      %p384 = scmp.ne.s32.totalorder %s376, %s379
      %p385 = scmp.eq.s32.totalorder %s25, 0
      %p386 = por %p384, %p385
      %p387 = scmp.ne.s32.totalorder %s376, %s379
      %p388 = scmp.eq.s32.totalorder %s30, 1
      %p389 = por %p387, %p388
      %p390 = scmp.ne.s32.totalorder %s379, %s380
      %p391 = scmp.eq.s32.totalorder %s30, 0
      %p392 = por %p390, %p391
      %p393 = scmp.ne.s32.totalorder %s379, %s380
      %p394 = scmp.eq.s32.totalorder %s31, 1
      %p395 = por %p393, %p394
      %p397 = scmp.ne.s32.totalorder %s380, %s396
      %p398 = scmp.eq.s32.totalorder %s31, 0
      %p399 = por %p397, %p398
      %p400 = scmp.le.s32.totalorder 1, %s25
      %p401 = scmp.lt.s32.totalorder %s25, 3
      %p402 = pnand %p400, %p401
      %p403 = pneg %p402
      // Predicated region
      $region9: #{tpu_custom_call.1} parent=5 // pred_check
        _
      $region10: #{tpu_custom_call.1} parent=5 // pred_check_branch
        %405 = sbr.rel (%p402) target = $region12
      $region11: #{tpu_custom_call.1} parent=5 // pred_region
        %s406 = ssub.s32 %s25, 1
        // Predicated region
        $region13: #{tpu_custom_call.1} parent=11 // pred_check
          %p407 = pneg %p72
        $region14: #{tpu_custom_call.1} parent=11 // pred_check_branch
          %409 = sbr.rel (%p407) target = $region16
        $region15: #{tpu_custom_call.1} parent=11 // pred_region
          _
        $region16: #{tpu_custom_call.1} parent=11 // pred_fallthru
          _
        // Predicated region
        $region17: #{tpu_custom_call.1} parent=11 // pred_check
          %p410 = pneg %p93
        $region18: #{tpu_custom_call.1} parent=11 // pred_check_branch
          %412 = sbr.rel (%p410) target = $region20
        $region19: #{tpu_custom_call.1} parent=11 // pred_region
          _
        $region20: #{tpu_custom_call.1} parent=11 // pred_fallthru
          _
        // Predicated region
        $region21: #{tpu_custom_call.1} parent=11 // pred_check
          %p413 = pneg %p114
        $region22: #{tpu_custom_call.1} parent=11 // pred_check_branch
          %415 = sbr.rel (%p413) target = $region24
        $region23: #{tpu_custom_call.1} parent=11 // pred_region
          _
        $region24: #{tpu_custom_call.1} parent=11 // pred_fallthru
          _
        // Predicated region
        $region25: #{tpu_custom_call.1} parent=11 // pred_check
          %p416 = pneg %p135
        $region26: #{tpu_custom_call.1} parent=11 // pred_check_branch
          %418 = sbr.rel (%p416) target = $region28
        $region27: #{tpu_custom_call.1} parent=11 // pred_region
          _
        $region28: #{tpu_custom_call.1} parent=11 // pred_fallthru
          _
        // Predicated region
        $region29: #{tpu_custom_call.1} parent=11 // pred_check
          %p419 = pneg %p156
        $region30: #{tpu_custom_call.1} parent=11 // pred_check_branch
          %421 = sbr.rel (%p419) target = $region32
        $region31: #{tpu_custom_call.1} parent=11 // pred_region
          _
        $region32: #{tpu_custom_call.1} parent=11 // pred_fallthru
          _
        // Predicated region
        $region33: #{tpu_custom_call.1} parent=11 // pred_check
          %p422 = pneg %p177
        $region34: #{tpu_custom_call.1} parent=11 // pred_check_branch
          %424 = sbr.rel (%p422) target = $region36
        $region35: #{tpu_custom_call.1} parent=11 // pred_region
          _
        $region36: #{tpu_custom_call.1} parent=11 // pred_fallthru
          _
        // Predicated region
        $region37: #{tpu_custom_call.1} parent=11 // pred_check
          %p425 = pneg %p198
        $region38: #{tpu_custom_call.1} parent=11 // pred_check_branch
          %427 = sbr.rel (%p425) target = $region40
        $region39: #{tpu_custom_call.1} parent=11 // pred_region
          _
        $region40: #{tpu_custom_call.1} parent=11 // pred_fallthru
          _
        // Predicated region
        $region41: #{tpu_custom_call.1} parent=11 // pred_check
          %p428 = pneg %p219
        $region42: #{tpu_custom_call.1} parent=11 // pred_check_branch
          %430 = sbr.rel (%p428) target = $region44
        $region43: #{tpu_custom_call.1} parent=11 // pred_region
          _
        $region44: #{tpu_custom_call.1} parent=11 // pred_fallthru
          _
        // Predicated region
        $region45: #{tpu_custom_call.1} parent=11 // pred_check
          %p431 = pneg %p240
        $region46: #{tpu_custom_call.1} parent=11 // pred_check_branch
          %433 = sbr.rel (%p431) target = $region48
        $region47: #{tpu_custom_call.1} parent=11 // pred_region
          _
        $region48: #{tpu_custom_call.1} parent=11 // pred_fallthru
          _
        // Predicated region
        $region49: #{tpu_custom_call.1} parent=11 // pred_check
          %p434 = pneg %p261
        $region50: #{tpu_custom_call.1} parent=11 // pred_check_branch
          %436 = sbr.rel (%p434) target = $region52
        $region51: #{tpu_custom_call.1} parent=11 // pred_region
          _
        $region52: #{tpu_custom_call.1} parent=11 // pred_fallthru
          _
        // Predicated region
        $region53: #{tpu_custom_call.1} parent=11 // pred_check
          %p437 = pneg %p282
        $region54: #{tpu_custom_call.1} parent=11 // pred_check_branch
          %439 = sbr.rel (%p437) target = $region56
        $region55: #{tpu_custom_call.1} parent=11 // pred_region
          _
        $region56: #{tpu_custom_call.1} parent=11 // pred_fallthru
          _
        // Predicated region
        $region57: #{tpu_custom_call.1} parent=11 // pred_check
          %p440 = pneg %p303
        $region58: #{tpu_custom_call.1} parent=11 // pred_check_branch
          %442 = sbr.rel (%p440) target = $region60
        $region59: #{tpu_custom_call.1} parent=11 // pred_region
          _
        $region60: #{tpu_custom_call.1} parent=11 // pred_fallthru
          _
        // Predicated region
        $region61: #{tpu_custom_call.1} parent=11 // pred_check
          %p443 = pneg %p324
        $region62: #{tpu_custom_call.1} parent=11 // pred_check_branch
          %445 = sbr.rel (%p443) target = $region64
        $region63: #{tpu_custom_call.1} parent=11 // pred_region
          _
        $region64: #{tpu_custom_call.1} parent=11 // pred_fallthru
          _
        // Predicated region
        $region65: #{tpu_custom_call.1} parent=11 // pred_check
          %p446 = pneg %p345
        $region66: #{tpu_custom_call.1} parent=11 // pred_check_branch
          %448 = sbr.rel (%p446) target = $region68
        $region67: #{tpu_custom_call.1} parent=11 // pred_region
          _
        $region68: #{tpu_custom_call.1} parent=11 // pred_fallthru
          _
        // Predicated region
        $region69: #{tpu_custom_call.1} parent=11 // pred_check
          %p449 = pneg %p366
        $region70: #{tpu_custom_call.1} parent=11 // pred_check_branch
          %451 = sbr.rel (%p449) target = $region72
        $region71: #{tpu_custom_call.1} parent=11 // pred_region
          _
        $region72: #{tpu_custom_call.1} parent=11 // pred_fallthru
          _
      $region12: #{tpu_custom_call.1} parent=5 // pred_fallthru
        _
      %p452 = scmp.lt.s32.totalorder %s25, 2
      // Predicated region
      $region73: #{tpu_custom_call.1} parent=5 // pred_check
        %p453 = pneg %p452
      $region74: #{tpu_custom_call.1} parent=5 // pred_check_branch
        %455 = sbr.rel (%p453) target = $region76
      $region75: #{tpu_custom_call.1} parent=5 // pred_region
        // Predicated region
        $region77: #{tpu_custom_call.1} parent=75 // pred_check
          %p456 = pneg %p45
        $region78: #{tpu_custom_call.1} parent=75 // pred_check_branch
          %458 = sbr.rel (%p456) target = $region80
        $region79: #{tpu_custom_call.1} parent=75 // pred_region
          %s459 = sand.u32 %s35, 1
          %s460 = sand.u32 %s35, 1
          %s461 = smul.addr %s460, 768
          %s462 = scalar_lea.vmem [#allocation2], %s461
          %s463 = smul.u32 32, %s25
          %s464 = ssub.s32 38, %s463
          %p465 = scmp.lt.s32.totalorder %s464, 32
          %s466 = scalar_select %p465, %s464, 32
          %s467 = smul.u32 24, %s466
          %p468 = scmp.ne.s32.totalorder 0, %s467
          %s469 = smul.addr %s463, 8
          %s470 = scalar_lea.vmem %s0, %s469
          // Predicated region
          $region81: #{tpu_custom_call.1} parent=79 // pred_check
            %p471 = pneg %p468
          $region82: #{tpu_custom_call.1} parent=79 // pred_check_branch
            %473 = sbr.rel (%p471) target = $region84
          $region83: #{tpu_custom_call.1} parent=79 // pred_region
            // Predicated region
            $region85: #{tpu_custom_call.1} parent=83 // pred_check
              _
            $region86: #{tpu_custom_call.1} parent=83 // pred_check_branch
              %475 = sbr.rel (0) target = $region88
            $region87: #{tpu_custom_call.1} parent=83 // pred_region
              // Predicated region
              $region107: #{tpu_custom_call.1} parent=87 // pred_check
                _
              $region108: #{tpu_custom_call.1} parent=87 // pred_check_branch
                %594 = sbr.rel (0) target = $region110
              $region109: #{tpu_custom_call.1} parent=87 // pred_region
                %s595 = sdiv.u32.pop %s466, 11
                %s596 = srem.u32.pop %s466, 11
                // While loop
                $region111: #{tpu_custom_call.1} parent=109 // loop_pre_header
                  _
                $region112: #{tpu_custom_call.1} parent=109 // loop_header
                  %s598 = sphi 0, %s600
                  %p599 = scmp.ge.s32.totalorder %s598, %s595
                  %s603 = sphi 0, %s674
                  %s604 = sphi %s470, %s677
                  %s605 = sphi %s462, %s678
                $region113: #{tpu_custom_call.1} parent=109 // loop_header_branch
                  %602 = sbr.rel (%p599) target = $region117
                $region114: #{tpu_custom_call.1} parent=109 // loop_body
                  %v606 = vld [vmem:[%s604] sm:$0xff]
                  %607 = vst [vmem:[%s605] sm:$0xff] %v606
                  %v608 = vld [vmem:[%s604 + $0x8] sm:$0xff]
                  %609 = vst [vmem:[%s605 + $0x8] sm:$0xff] %v608
                  %v610 = vld [vmem:[%s604 + $0x10] sm:$0xff]
                  %611 = vst [vmem:[%s605 + $0x10] sm:$0xff] %v610
                  %v612 = vld [vmem:[%s604 + $0x18] sm:$0xff]
                  %613 = vst [vmem:[%s605 + $0x18] sm:$0xff] %v612
                  %v614 = vld [vmem:[%s604 + $0x20] sm:$0xff]
                  %615 = vst [vmem:[%s605 + $0x20] sm:$0xff] %v614
                  %v616 = vld [vmem:[%s604 + $0x28] sm:$0xff]
                  %617 = vst [vmem:[%s605 + $0x28] sm:$0xff] %v616
                  %v618 = vld [vmem:[%s604 + $0x30] sm:$0xff]
                  %619 = vst [vmem:[%s605 + $0x30] sm:$0xff] %v618
                  %v620 = vld [vmem:[%s604 + $0x38] sm:$0xff]
                  %621 = vst [vmem:[%s605 + $0x38] sm:$0xff] %v620
                  %v622 = vld [vmem:[%s604 + $0x40] sm:$0xff]
                  %623 = vst [vmem:[%s605 + $0x40] sm:$0xff] %v622
                  %v624 = vld [vmem:[%s604 + $0x48] sm:$0xff]
                  %625 = vst [vmem:[%s605 + $0x48] sm:$0xff] %v624
                  %v626 = vld [vmem:[%s604 + $0x50] sm:$0xff]
                  %627 = vst [vmem:[%s605 + $0x50] sm:$0xff] %v626
                  %v628 = vld [vmem:[%s604 + $0x130] sm:$0xff]
                  %629 = vst [vmem:[%s605 + $0x100] sm:$0xff] %v628
                  %v630 = vld [vmem:[%s604 + $0x138] sm:$0xff]
                  %631 = vst [vmem:[%s605 + $0x108] sm:$0xff] %v630
                  %v632 = vld [vmem:[%s604 + $0x140] sm:$0xff]
                  %633 = vst [vmem:[%s605 + $0x110] sm:$0xff] %v632
                  %v634 = vld [vmem:[%s604 + $0x148] sm:$0xff]
                  %635 = vst [vmem:[%s605 + $0x118] sm:$0xff] %v634
                  %v636 = vld [vmem:[%s604 + $0x150] sm:$0xff]
                  %637 = vst [vmem:[%s605 + $0x120] sm:$0xff] %v636
                  %v638 = vld [vmem:[%s604 + $0x158] sm:$0xff]
                  %639 = vst [vmem:[%s605 + $0x128] sm:$0xff] %v638
                  %v640 = vld [vmem:[%s604 + $0x160] sm:$0xff]
                  %641 = vst [vmem:[%s605 + $0x130] sm:$0xff] %v640
                  %v642 = vld [vmem:[%s604 + $0x168] sm:$0xff]
                  %643 = vst [vmem:[%s605 + $0x138] sm:$0xff] %v642
                  %v644 = vld [vmem:[%s604 + $0x170] sm:$0xff]
                  %645 = vst [vmem:[%s605 + $0x140] sm:$0xff] %v644
                  %v646 = vld [vmem:[%s604 + $0x178] sm:$0xff]
                  %647 = vst [vmem:[%s605 + $0x148] sm:$0xff] %v646
                  %v648 = vld [vmem:[%s604 + $0x180] sm:$0xff]
                  %649 = vst [vmem:[%s605 + $0x150] sm:$0xff] %v648
                  %v650 = vld [vmem:[%s604 + $0x260] sm:$0xff]
                  %651 = vst [vmem:[%s605 + $0x200] sm:$0xff] %v650
                  %v652 = vld [vmem:[%s604 + $0x268] sm:$0xff]
                  %653 = vst [vmem:[%s605 + $0x208] sm:$0xff] %v652
                  %v654 = vld [vmem:[%s604 + $0x270] sm:$0xff]
                  %655 = vst [vmem:[%s605 + $0x210] sm:$0xff] %v654
                  %v656 = vld [vmem:[%s604 + $0x278] sm:$0xff]
                  %657 = vst [vmem:[%s605 + $0x218] sm:$0xff] %v656
                  %v658 = vld [vmem:[%s604 + $0x280] sm:$0xff]
                  %659 = vst [vmem:[%s605 + $0x220] sm:$0xff] %v658
                  %v660 = vld [vmem:[%s604 + $0x288] sm:$0xff]
                  %661 = vst [vmem:[%s605 + $0x228] sm:$0xff] %v660
                  %v662 = vld [vmem:[%s604 + $0x290] sm:$0xff]
                  %663 = vst [vmem:[%s605 + $0x230] sm:$0xff] %v662
                  %v664 = vld [vmem:[%s604 + $0x298] sm:$0xff]
                  %665 = vst [vmem:[%s605 + $0x238] sm:$0xff] %v664
                  %v666 = vld [vmem:[%s604 + $0x2a0] sm:$0xff]
                  %667 = vst [vmem:[%s605 + $0x240] sm:$0xff] %v666
                  %v668 = vld [vmem:[%s604 + $0x2a8] sm:$0xff]
                  %669 = vst [vmem:[%s605 + $0x248] sm:$0xff] %v668
                  %v670 = vld [vmem:[%s604 + $0x2b0] sm:$0xff]
                  %671 = vst [vmem:[%s605 + $0x250] sm:$0xff] %v670
                  %s672 = sadd.s32 1, %s603
                  %p673 = scmp.ge.s32.totalorder %s672, %s595
                  %s674 = scalar_select %p673, 0, %s672
                  %s675 = smul.u32 %s674, 88
                  %s676 = smul.u32 %s674, 88
                  %s677 = scalar_lea.vmem %s470, %s675
                  %s678 = scalar_lea.vmem %s462, %s676 [#allocation2]
                $region115: #{tpu_custom_call.1} parent=109 // loop_footer
                  %s600 = sadd.s32 %s598, 1
                $region116: #{tpu_custom_call.1} parent=109 // loop_footer_branch
                  %597 = sbr.rel target = $region112
                $region117: #{tpu_custom_call.1} parent=109 // loop_exit
                  _
                %s679 = sdiv.u32.pop %s466, 11
                %s680 = srem.u32.pop %s466, 11
                %s681 = smul.u32 %s679, 11
                %s682 = smul.u32 8, %s681
                %s683 = scalar_lea.vmem %s470, %s682
                %s684 = smul.u32 8, %s681
                %s685 = scalar_lea.vmem %s462, %s684 [#allocation2]
                // While loop
                $region118: #{tpu_custom_call.1} parent=109 // loop_pre_header
                  _
                $region119: #{tpu_custom_call.1} parent=109 // loop_header
                  %s687 = sphi 0, %s689
                  %p688 = scmp.ge.s32.totalorder %s687, %s680
                  %s692 = sphi 0, %s703
                  %s693 = sphi %s683, %s706
                  %s694 = sphi %s685, %s707
                $region120: #{tpu_custom_call.1} parent=109 // loop_header_branch
                  %691 = sbr.rel (%p688) target = $region124
                $region121: #{tpu_custom_call.1} parent=109 // loop_body
                  %v695 = vld [vmem:[%s693] sm:$0xff]
                  %696 = vst [vmem:[%s694] sm:$0xff] %v695
                  %v697 = vld [vmem:[%s693 + $0x130] sm:$0xff]
                  %698 = vst [vmem:[%s694 + $0x100] sm:$0xff] %v697
                  %v699 = vld [vmem:[%s693 + $0x260] sm:$0xff]
                  %700 = vst [vmem:[%s694 + $0x200] sm:$0xff] %v699
                  %s701 = sadd.s32 1, %s692
                  %p702 = scmp.ge.s32.totalorder %s701, %s680
                  %s703 = scalar_select %p702, 0, %s701
                  %s704 = smul.u32 %s703, 8
                  %s705 = smul.u32 %s703, 8
                  %s706 = scalar_lea.vmem %s683, %s704
                  %s707 = scalar_lea.vmem %s685, %s705 [#allocation2]
                $region122: #{tpu_custom_call.1} parent=109 // loop_footer
                  %s689 = sadd.s32 %s687, 1
                $region123: #{tpu_custom_call.1} parent=109 // loop_footer_branch
                  %686 = sbr.rel target = $region119
                $region124: #{tpu_custom_call.1} parent=109 // loop_exit
                  _
              $region110: #{tpu_custom_call.1} parent=87 // pred_fallthru
                _
              // Predicated region
              $region125: #{tpu_custom_call.1} parent=87 // pred_check
                _
              $region126: #{tpu_custom_call.1} parent=87 // pred_check_branch
                %709 = sbr.rel target = $region128
              $region127: #{tpu_custom_call.1} parent=87 // pred_region
                _
              $region128: #{tpu_custom_call.1} parent=87 // pred_fallthru
                _
            $region88: #{tpu_custom_call.1} parent=83 // pred_fallthru
              _
            // Predicated region
            $region89: #{tpu_custom_call.1} parent=83 // pred_check
              _
            $region90: #{tpu_custom_call.1} parent=83 // pred_check_branch
              %477 = sbr.rel target = $region92
            $region91: #{tpu_custom_call.1} parent=83 // pred_region
              %s479 = ssub.s32 256, 1
              %s480 = sdiv.u32.pop %s466, 11
              %s481 = srem.u32.pop %s466, 11
              // While loop
              $region93: #{tpu_custom_call.1} parent=91 // loop_pre_header
                _
              $region94: #{tpu_custom_call.1} parent=91 // loop_header
                %s483 = sphi 0, %s485
                %p484 = scmp.ge.s32.totalorder %s483, %s480
                %s488 = sphi 0, %s559
                %s489 = sphi %s470, %s562
                %s490 = sphi %s462, %s563
              $region95: #{tpu_custom_call.1} parent=91 // loop_header_branch
                %487 = sbr.rel (%p484) target = $region99
              $region96: #{tpu_custom_call.1} parent=91 // loop_body
                %v491 = vld [vmem:[%s489] sm:%s479]
                %492 = vst [vmem:[%s490] sm:%s479] %v491
                %v493 = vld [vmem:[%s489 + $0x8] sm:%s479]
                %494 = vst [vmem:[%s490 + $0x8] sm:%s479] %v493
                %v495 = vld [vmem:[%s489 + $0x10] sm:%s479]
                %496 = vst [vmem:[%s490 + $0x10] sm:%s479] %v495
                %v497 = vld [vmem:[%s489 + $0x18] sm:%s479]
                %498 = vst [vmem:[%s490 + $0x18] sm:%s479] %v497
                %v499 = vld [vmem:[%s489 + $0x20] sm:%s479]
                %500 = vst [vmem:[%s490 + $0x20] sm:%s479] %v499
                %v501 = vld [vmem:[%s489 + $0x28] sm:%s479]
                %502 = vst [vmem:[%s490 + $0x28] sm:%s479] %v501
                %v503 = vld [vmem:[%s489 + $0x30] sm:%s479]
                %504 = vst [vmem:[%s490 + $0x30] sm:%s479] %v503
                %v505 = vld [vmem:[%s489 + $0x38] sm:%s479]
                %506 = vst [vmem:[%s490 + $0x38] sm:%s479] %v505
                %v507 = vld [vmem:[%s489 + $0x40] sm:%s479]
                %508 = vst [vmem:[%s490 + $0x40] sm:%s479] %v507
                %v509 = vld [vmem:[%s489 + $0x48] sm:%s479]
                %510 = vst [vmem:[%s490 + $0x48] sm:%s479] %v509
                %v511 = vld [vmem:[%s489 + $0x50] sm:%s479]
                %512 = vst [vmem:[%s490 + $0x50] sm:%s479] %v511
                %v513 = vld [vmem:[%s489 + $0x130] sm:%s479]
                %514 = vst [vmem:[%s490 + $0x100] sm:%s479] %v513
                %v515 = vld [vmem:[%s489 + $0x138] sm:%s479]
                %516 = vst [vmem:[%s490 + $0x108] sm:%s479] %v515
                %v517 = vld [vmem:[%s489 + $0x140] sm:%s479]
                %518 = vst [vmem:[%s490 + $0x110] sm:%s479] %v517
                %v519 = vld [vmem:[%s489 + $0x148] sm:%s479]
                %520 = vst [vmem:[%s490 + $0x118] sm:%s479] %v519
                %v521 = vld [vmem:[%s489 + $0x150] sm:%s479]
                %522 = vst [vmem:[%s490 + $0x120] sm:%s479] %v521
                %v523 = vld [vmem:[%s489 + $0x158] sm:%s479]
                %524 = vst [vmem:[%s490 + $0x128] sm:%s479] %v523
                %v525 = vld [vmem:[%s489 + $0x160] sm:%s479]
                %526 = vst [vmem:[%s490 + $0x130] sm:%s479] %v525
                %v527 = vld [vmem:[%s489 + $0x168] sm:%s479]
                %528 = vst [vmem:[%s490 + $0x138] sm:%s479] %v527
                %v529 = vld [vmem:[%s489 + $0x170] sm:%s479]
                %530 = vst [vmem:[%s490 + $0x140] sm:%s479] %v529
                %v531 = vld [vmem:[%s489 + $0x178] sm:%s479]
                %532 = vst [vmem:[%s490 + $0x148] sm:%s479] %v531
                %v533 = vld [vmem:[%s489 + $0x180] sm:%s479]
                %534 = vst [vmem:[%s490 + $0x150] sm:%s479] %v533
                %v535 = vld [vmem:[%s489 + $0x260] sm:%s479]
                %536 = vst [vmem:[%s490 + $0x200] sm:%s479] %v535
                %v537 = vld [vmem:[%s489 + $0x268] sm:%s479]
                %538 = vst [vmem:[%s490 + $0x208] sm:%s479] %v537
                %v539 = vld [vmem:[%s489 + $0x270] sm:%s479]
                %540 = vst [vmem:[%s490 + $0x210] sm:%s479] %v539
                %v541 = vld [vmem:[%s489 + $0x278] sm:%s479]
                %542 = vst [vmem:[%s490 + $0x218] sm:%s479] %v541
                %v543 = vld [vmem:[%s489 + $0x280] sm:%s479]
                %544 = vst [vmem:[%s490 + $0x220] sm:%s479] %v543
                %v545 = vld [vmem:[%s489 + $0x288] sm:%s479]
                %546 = vst [vmem:[%s490 + $0x228] sm:%s479] %v545
                %v547 = vld [vmem:[%s489 + $0x290] sm:%s479]
                %548 = vst [vmem:[%s490 + $0x230] sm:%s479] %v547
                %v549 = vld [vmem:[%s489 + $0x298] sm:%s479]
                %550 = vst [vmem:[%s490 + $0x238] sm:%s479] %v549
                %v551 = vld [vmem:[%s489 + $0x2a0] sm:%s479]
                %552 = vst [vmem:[%s490 + $0x240] sm:%s479] %v551
                %v553 = vld [vmem:[%s489 + $0x2a8] sm:%s479]
                %554 = vst [vmem:[%s490 + $0x248] sm:%s479] %v553
                %v555 = vld [vmem:[%s489 + $0x2b0] sm:%s479]
                %556 = vst [vmem:[%s490 + $0x250] sm:%s479] %v555
                %s557 = sadd.s32 1, %s488
                %p558 = scmp.ge.s32.totalorder %s557, %s480
                %s559 = scalar_select %p558, 0, %s557
                %s560 = smul.u32 %s559, 88
                %s561 = smul.u32 %s559, 88
                %s562 = scalar_lea.vmem %s470, %s560
                %s563 = scalar_lea.vmem %s462, %s561 [#allocation2]
              $region97: #{tpu_custom_call.1} parent=91 // loop_footer
                %s485 = sadd.s32 %s483, 1
              $region98: #{tpu_custom_call.1} parent=91 // loop_footer_branch
                %482 = sbr.rel target = $region94
              $region99: #{tpu_custom_call.1} parent=91 // loop_exit
                _
              %s564 = sdiv.u32.pop %s466, 11
              %s565 = srem.u32.pop %s466, 11
              %s566 = smul.u32 %s564, 11
              %s567 = smul.u32 8, %s566
              %s568 = scalar_lea.vmem %s470, %s567
              %s569 = smul.u32 8, %s566
              %s570 = scalar_lea.vmem %s462, %s569 [#allocation2]
              // While loop
              $region100: #{tpu_custom_call.1} parent=91 // loop_pre_header
                _
              $region101: #{tpu_custom_call.1} parent=91 // loop_header
                %s572 = sphi 0, %s574
                %p573 = scmp.ge.s32.totalorder %s572, %s565
                %s577 = sphi 0, %s588
                %s578 = sphi %s568, %s591
                %s579 = sphi %s570, %s592
              $region102: #{tpu_custom_call.1} parent=91 // loop_header_branch
                %576 = sbr.rel (%p573) target = $region106
              $region103: #{tpu_custom_call.1} parent=91 // loop_body
                %v580 = vld [vmem:[%s578] sm:%s479]
                %581 = vst [vmem:[%s579] sm:%s479] %v580
                %v582 = vld [vmem:[%s578 + $0x130] sm:%s479]
                %583 = vst [vmem:[%s579 + $0x100] sm:%s479] %v582
                %v584 = vld [vmem:[%s578 + $0x260] sm:%s479]
                %585 = vst [vmem:[%s579 + $0x200] sm:%s479] %v584
                %s586 = sadd.s32 1, %s577
                %p587 = scmp.ge.s32.totalorder %s586, %s565
                %s588 = scalar_select %p587, 0, %s586
                %s589 = smul.u32 %s588, 8
                %s590 = smul.u32 %s588, 8
                %s591 = scalar_lea.vmem %s568, %s589
                %s592 = scalar_lea.vmem %s570, %s590 [#allocation2]
              $region104: #{tpu_custom_call.1} parent=91 // loop_footer
                %s574 = sadd.s32 %s572, 1
              $region105: #{tpu_custom_call.1} parent=91 // loop_footer_branch
                %571 = sbr.rel target = $region101
              $region106: #{tpu_custom_call.1} parent=91 // loop_exit
                _
            $region92: #{tpu_custom_call.1} parent=83 // pred_fallthru
              _
          $region84: #{tpu_custom_call.1} parent=79 // pred_fallthru
            _
          %710 = vnop
        $region80: #{tpu_custom_call.1} parent=75 // pred_fallthru
          _
      $region76: #{tpu_custom_call.1} parent=5 // pred_fallthru
        _
      %p711 = scmp.le.s32.totalorder 1, %s25
      %p712 = scmp.lt.s32.totalorder %s25, 3
      %p713 = pnand %p711, %p712
      %p714 = pneg %p713
      // Predicated region
      $region129: #{tpu_custom_call.1} parent=5 // pred_check
        _
      $region130: #{tpu_custom_call.1} parent=5 // pred_check_branch
        %716 = sbr.rel (%p713) target = $region132
      $region131: #{tpu_custom_call.1} parent=5 // pred_region
        %s717 = ssub.s32 %s25, 1
        %s718 = sand.u32 %s38, 1
        %s719 = sand.u32 %s38, 1
        %s720 = smul.addr %s719, 768
        %s721 = scalar_lea.vmem [#allocation2], %s720
        // Predicated region
        $region133: #{tpu_custom_call.1} parent=131 // pred_check
          %p722 = pneg %p51
        $region134: #{tpu_custom_call.1} parent=131 // pred_check_branch
          %724 = sbr.rel (%p722) target = $region136
        $region135: #{tpu_custom_call.1} parent=131 // pred_region
          _
        $region136: #{tpu_custom_call.1} parent=131 // pred_fallthru
          _
        %s725 = sand.u32 %s38, 1
        %s726 = sand.u32 %s38, 1
        %s727 = smul.addr %s726, 768
        %s728 = scalar_lea.vmem [#allocation2], %s727
        %p729 = pneg %p51
        %p730 = pneg %p48
        %p731 = pneg %p72
        %p732 = pneg %p69
        %p733 = pneg %p93
        %p734 = pneg %p90
        %p735 = pneg %p114
        %p736 = pneg %p111
        %p737 = pneg %p135
        %p738 = pneg %p132
        %p739 = pneg %p156
        %p740 = pneg %p153
        %p741 = pneg %p177
        %p742 = pneg %p174
        %p743 = pneg %p198
        %p744 = pneg %p195
        %p745 = pneg %p219
        %p746 = pneg %p216
        %p747 = pneg %p240
        %p748 = pneg %p237
        %p749 = pneg %p261
        %p750 = pneg %p258
        %p751 = pneg %p282
        %p752 = pneg %p279
        %p753 = pneg %p303
        %p754 = pneg %p300
        %p755 = pneg %p324
        %p756 = pneg %p321
        %p757 = pneg %p345
        %p758 = pneg %p342
        %p759 = pneg %p366
        %p760 = pneg %p363
        %p761 = pneg %p392
        %p762 = pneg %p389
        %s763 = sand.u32 %s379, 1
        %s764 = scalar_lea.sflag [#allocation4], %s763
        %s765 = sand.u32 %s379, 1
        %s766 = smul.addr %s765, 16
        %s767 = scalar_lea.vmem [#allocation3], %s766
        %s768 = smul.u32 32, %s30
        %s769 = ssub.s32 38, %s768
        %p770 = scmp.lt.s32.totalorder %s769, 32
        %s771 = scalar_select %p770, %s769, 32
        %s772 = smul.u32 24, %s771
        %s773 = smul.u32 2, %s30
        %s774 = ssub.s32 3, %s773
        %p775 = scmp.lt.s32.totalorder %s774, 2
        %s776 = scalar_select %p775, %s774, 2
        %s777 = smul.u32 8, %s776
        %v779 = vld [vmem:[%s721] sm:$0xff]
        %v780 = vld [vmem:[%s721 + $0x8] sm:$0xff]
        %v781 = vld [vmem:[%s721 + $0x10] sm:$0xff]
        %v782 = vld [vmem:[%s721 + $0x18] sm:$0xff]
        %v783 = vld [vmem:[%s721 + $0x20] sm:$0xff]
        %v784 = vld [vmem:[%s721 + $0x28] sm:$0xff]
        %v785 = vld [vmem:[%s721 + $0x30] sm:$0xff]
        %v786 = vld [vmem:[%s721 + $0x38] sm:$0xff]
        %v787 = vld [vmem:[%s721 + $0x40] sm:$0xff]
        %v788 = vld [vmem:[%s721 + $0x48] sm:$0xff]
        %v789 = vld [vmem:[%s721 + $0x50] sm:$0xff]
        %v790 = vld [vmem:[%s721 + $0x58] sm:$0xff]
        %v791 = vld [vmem:[%s721 + $0x60] sm:$0xff]
        %v792 = vld [vmem:[%s721 + $0x68] sm:$0xff]
        %v793 = vld [vmem:[%s721 + $0x70] sm:$0xff]
        %v794 = vld [vmem:[%s721 + $0x78] sm:$0xff]
        %v795 = vld [vmem:[%s721 + $0x80] sm:$0xff]
        %v796 = vld [vmem:[%s721 + $0x88] sm:$0xff]
        %v797 = vld [vmem:[%s721 + $0x90] sm:$0xff]
        %v798 = vld [vmem:[%s721 + $0x98] sm:$0xff]
        %v799 = vld [vmem:[%s721 + $0xa0] sm:$0xff]
        %v800 = vld [vmem:[%s721 + $0xa8] sm:$0xff]
        %v801 = vld [vmem:[%s721 + $0xb0] sm:$0xff]
        %v802 = vld [vmem:[%s721 + $0xb8] sm:$0xff]
        %v803 = vld [vmem:[%s721 + $0xc0] sm:$0xff]
        %v804 = vld [vmem:[%s721 + $0xc8] sm:$0xff]
        %v805 = vld [vmem:[%s721 + $0xd0] sm:$0xff]
        %v806 = vld [vmem:[%s721 + $0xd8] sm:$0xff]
        %v807 = vld [vmem:[%s721 + $0xe0] sm:$0xff]
        %v808 = vld [vmem:[%s721 + $0xe8] sm:$0xff]
        %v809 = vld [vmem:[%s721 + $0xf0] sm:$0xff]
        %v810 = vld [vmem:[%s721 + $0xf8] sm:$0xff]
        %811 = vxpose.xlu0.b32.start [1/16] %v779, 128
        %812 = vxpose.xlu0.b32.cont [2/16] %v780, 128
        %813 = vxpose.xlu0.b32.cont [3/16] %v781, 128
        %814 = vxpose.xlu0.b32.cont [4/16] %v782, 128
        %815 = vxpose.xlu0.b32.cont [5/16] %v783, 128
        %816 = vxpose.xlu0.b32.cont [6/16] %v784, 128
        %817 = vxpose.xlu0.b32.cont [7/16] %v785, 128
        %818 = vxpose.xlu0.b32.cont [8/16] %v786, 128
        %819 = vxpose.xlu0.b32.cont [9/16] %v787, 128
        %820 = vxpose.xlu0.b32.cont [10/16] %v788, 128
        %821 = vxpose.xlu0.b32.cont [11/16] %v789, 128
        %822 = vxpose.xlu0.b32.cont [12/16] %v790, 128
        %823 = vxpose.xlu0.b32.cont [13/16] %v791, 128
        %824 = vxpose.xlu0.b32.cont [14/16] %v792, 128
        %825 = vxpose.xlu0.b32.cont [15/16] %v793, 128
        %826 = vxpose.xlu0.b32.end [16/16] %v794, 128
        %v827 = vpop.trf.xlu0
        %v828 = vpop.trf.xlu0
        %v829 = vpop.trf.xlu0
        %v830 = vpop.trf.xlu0
        %v831 = vpop.trf.xlu0
        %v832 = vpop.trf.xlu0
        %v833 = vpop.trf.xlu0
        %v834 = vpop.trf.xlu0
        %v835 = vpop.trf.xlu0
        %v836 = vpop.trf.xlu0
        %v837 = vpop.trf.xlu0
        %v838 = vpop.trf.xlu0
        %v839 = vpop.trf.xlu0
        %v840 = vpop.trf.xlu0
        %v841 = vpop.trf.xlu0
        %v842 = vpop.trf.xlu0
        %843 = vxpose.xlu0.b32.start [1/16] %v795, 128
        %844 = vxpose.xlu0.b32.cont [2/16] %v796, 128
        %845 = vxpose.xlu0.b32.cont [3/16] %v797, 128
        %846 = vxpose.xlu0.b32.cont [4/16] %v798, 128
        %847 = vxpose.xlu0.b32.cont [5/16] %v799, 128
        %848 = vxpose.xlu0.b32.cont [6/16] %v800, 128
        %849 = vxpose.xlu0.b32.cont [7/16] %v801, 128
        %850 = vxpose.xlu0.b32.cont [8/16] %v802, 128
        %851 = vxpose.xlu0.b32.cont [9/16] %v803, 128
        %852 = vxpose.xlu0.b32.cont [10/16] %v804, 128
        %853 = vxpose.xlu0.b32.cont [11/16] %v805, 128
        %854 = vxpose.xlu0.b32.cont [12/16] %v806, 128
        %855 = vxpose.xlu0.b32.cont [13/16] %v807, 128
        %856 = vxpose.xlu0.b32.cont [14/16] %v808, 128
        %857 = vxpose.xlu0.b32.cont [15/16] %v809, 128
        %858 = vxpose.xlu0.b32.end [16/16] %v810, 128
        %v859 = vpop.trf.xlu0
        %v860 = vpop.trf.xlu0
        %v861 = vpop.trf.xlu0
        %v862 = vpop.trf.xlu0
        %v863 = vpop.trf.xlu0
        %v864 = vpop.trf.xlu0
        %v865 = vpop.trf.xlu0
        %v866 = vpop.trf.xlu0
        %v867 = vpop.trf.xlu0
        %v868 = vpop.trf.xlu0
        %v869 = vpop.trf.xlu0
        %v870 = vpop.trf.xlu0
        %v871 = vpop.trf.xlu0
        %v872 = vpop.trf.xlu0
        %v873 = vpop.trf.xlu0
        %v874 = vpop.trf.xlu0
        %s875 = scalar_lea.vmem %s721, 256 [#allocation2]
        %v876 = vld [vmem:[%s875] sm:$0xff]
        %v877 = vld [vmem:[%s875 + $0x8] sm:$0xff]
        %v878 = vld [vmem:[%s875 + $0x10] sm:$0xff]
        %v879 = vld [vmem:[%s875 + $0x18] sm:$0xff]
        %v880 = vld [vmem:[%s875 + $0x20] sm:$0xff]
        %v881 = vld [vmem:[%s875 + $0x28] sm:$0xff]
        %v882 = vld [vmem:[%s875 + $0x30] sm:$0xff]
        %v883 = vld [vmem:[%s875 + $0x38] sm:$0xff]
        %v884 = vld [vmem:[%s875 + $0x40] sm:$0xff]
        %v885 = vld [vmem:[%s875 + $0x48] sm:$0xff]
        %v886 = vld [vmem:[%s875 + $0x50] sm:$0xff]
        %v887 = vld [vmem:[%s875 + $0x58] sm:$0xff]
        %v888 = vld [vmem:[%s875 + $0x60] sm:$0xff]
        %v889 = vld [vmem:[%s875 + $0x68] sm:$0xff]
        %v890 = vld [vmem:[%s875 + $0x70] sm:$0xff]
        %v891 = vld [vmem:[%s875 + $0x78] sm:$0xff]
        %v892 = vld [vmem:[%s875 + $0x80] sm:$0xff]
        %v893 = vld [vmem:[%s875 + $0x88] sm:$0xff]
        %v894 = vld [vmem:[%s875 + $0x90] sm:$0xff]
        %v895 = vld [vmem:[%s875 + $0x98] sm:$0xff]
        %v896 = vld [vmem:[%s875 + $0xa0] sm:$0xff]
        %v897 = vld [vmem:[%s875 + $0xa8] sm:$0xff]
        %v898 = vld [vmem:[%s875 + $0xb0] sm:$0xff]
        %v899 = vld [vmem:[%s875 + $0xb8] sm:$0xff]
        %v900 = vld [vmem:[%s875 + $0xc0] sm:$0xff]
        %v901 = vld [vmem:[%s875 + $0xc8] sm:$0xff]
        %v902 = vld [vmem:[%s875 + $0xd0] sm:$0xff]
        %v903 = vld [vmem:[%s875 + $0xd8] sm:$0xff]
        %v904 = vld [vmem:[%s875 + $0xe0] sm:$0xff]
        %v905 = vld [vmem:[%s875 + $0xe8] sm:$0xff]
        %v906 = vld [vmem:[%s875 + $0xf0] sm:$0xff]
        %v907 = vld [vmem:[%s875 + $0xf8] sm:$0xff]
        %908 = vxpose.xlu0.b32.start [1/16] %v876, 128
        %909 = vxpose.xlu0.b32.cont [2/16] %v877, 128
        %910 = vxpose.xlu0.b32.cont [3/16] %v878, 128
        %911 = vxpose.xlu0.b32.cont [4/16] %v879, 128
        %912 = vxpose.xlu0.b32.cont [5/16] %v880, 128
        %913 = vxpose.xlu0.b32.cont [6/16] %v881, 128
        %914 = vxpose.xlu0.b32.cont [7/16] %v882, 128
        %915 = vxpose.xlu0.b32.cont [8/16] %v883, 128
        %916 = vxpose.xlu0.b32.cont [9/16] %v884, 128
        %917 = vxpose.xlu0.b32.cont [10/16] %v885, 128
        %918 = vxpose.xlu0.b32.cont [11/16] %v886, 128
        %919 = vxpose.xlu0.b32.cont [12/16] %v887, 128
        %920 = vxpose.xlu0.b32.cont [13/16] %v888, 128
        %921 = vxpose.xlu0.b32.cont [14/16] %v889, 128
        %922 = vxpose.xlu0.b32.cont [15/16] %v890, 128
        %923 = vxpose.xlu0.b32.end [16/16] %v891, 128
        %v924 = vpop.trf.xlu0
        %v925 = vpop.trf.xlu0
        %v926 = vpop.trf.xlu0
        %v927 = vpop.trf.xlu0
        %v928 = vpop.trf.xlu0
        %v929 = vpop.trf.xlu0
        %v930 = vpop.trf.xlu0
        %v931 = vpop.trf.xlu0
        %v932 = vpop.trf.xlu0
        %v933 = vpop.trf.xlu0
        %v934 = vpop.trf.xlu0
        %v935 = vpop.trf.xlu0
        %v936 = vpop.trf.xlu0
        %v937 = vpop.trf.xlu0
        %v938 = vpop.trf.xlu0
        %v939 = vpop.trf.xlu0
        %940 = vxpose.xlu0.b32.start [1/16] %v892, 128
        %941 = vxpose.xlu0.b32.cont [2/16] %v893, 128
        %942 = vxpose.xlu0.b32.cont [3/16] %v894, 128
        %943 = vxpose.xlu0.b32.cont [4/16] %v895, 128
        %944 = vxpose.xlu0.b32.cont [5/16] %v896, 128
        %945 = vxpose.xlu0.b32.cont [6/16] %v897, 128
        %946 = vxpose.xlu0.b32.cont [7/16] %v898, 128
        %947 = vxpose.xlu0.b32.cont [8/16] %v899, 128
        %948 = vxpose.xlu0.b32.cont [9/16] %v900, 128
        %949 = vxpose.xlu0.b32.cont [10/16] %v901, 128
        %950 = vxpose.xlu0.b32.cont [11/16] %v902, 128
        %951 = vxpose.xlu0.b32.cont [12/16] %v903, 128
        %952 = vxpose.xlu0.b32.cont [13/16] %v904, 128
        %953 = vxpose.xlu0.b32.cont [14/16] %v905, 128
        %954 = vxpose.xlu0.b32.cont [15/16] %v906, 128
        %955 = vxpose.xlu0.b32.end [16/16] %v907, 128
        %v956 = vpop.trf.xlu0
        %v957 = vpop.trf.xlu0
        %v958 = vpop.trf.xlu0
        %v959 = vpop.trf.xlu0
        %v960 = vpop.trf.xlu0
        %v961 = vpop.trf.xlu0
        %v962 = vpop.trf.xlu0
        %v963 = vpop.trf.xlu0
        %v964 = vpop.trf.xlu0
        %v965 = vpop.trf.xlu0
        %v966 = vpop.trf.xlu0
        %v967 = vpop.trf.xlu0
        %v968 = vpop.trf.xlu0
        %v969 = vpop.trf.xlu0
        %v970 = vpop.trf.xlu0
        %v971 = vpop.trf.xlu0
        %s972 = scalar_lea.vmem %s721, 512 [#allocation2]
        %v973 = vld [vmem:[%s972] sm:$0xff]
        %v974 = vld [vmem:[%s972 + $0x8] sm:$0xff]
        %v975 = vld [vmem:[%s972 + $0x10] sm:$0xff]
        %v976 = vld [vmem:[%s972 + $0x18] sm:$0xff]
        %v977 = vld [vmem:[%s972 + $0x20] sm:$0xff]
        %v978 = vld [vmem:[%s972 + $0x28] sm:$0xff]
        %v979 = vld [vmem:[%s972 + $0x30] sm:$0xff]
        %v980 = vld [vmem:[%s972 + $0x38] sm:$0xff]
        %v981 = vld [vmem:[%s972 + $0x40] sm:$0xff]
        %v982 = vld [vmem:[%s972 + $0x48] sm:$0xff]
        %v983 = vld [vmem:[%s972 + $0x50] sm:$0xff]
        %v984 = vld [vmem:[%s972 + $0x58] sm:$0xff]
        %v985 = vld [vmem:[%s972 + $0x60] sm:$0xff]
        %v986 = vld [vmem:[%s972 + $0x68] sm:$0xff]
        %v987 = vld [vmem:[%s972 + $0x70] sm:$0xff]
        %v988 = vld [vmem:[%s972 + $0x78] sm:$0xff]
        %v989 = vld [vmem:[%s972 + $0x80] sm:$0xff]
        %v990 = vld [vmem:[%s972 + $0x88] sm:$0xff]
        %v991 = vld [vmem:[%s972 + $0x90] sm:$0xff]
        %v992 = vld [vmem:[%s972 + $0x98] sm:$0xff]
        %v993 = vld [vmem:[%s972 + $0xa0] sm:$0xff]
        %v994 = vld [vmem:[%s972 + $0xa8] sm:$0xff]
        %v995 = vld [vmem:[%s972 + $0xb0] sm:$0xff]
        %v996 = vld [vmem:[%s972 + $0xb8] sm:$0xff]
        %v997 = vld [vmem:[%s972 + $0xc0] sm:$0xff]
        %v998 = vld [vmem:[%s972 + $0xc8] sm:$0xff]
        %v999 = vld [vmem:[%s972 + $0xd0] sm:$0xff]
        %v1000 = vld [vmem:[%s972 + $0xd8] sm:$0xff]
        %v1001 = vld [vmem:[%s972 + $0xe0] sm:$0xff]
        %v1002 = vld [vmem:[%s972 + $0xe8] sm:$0xff]
        %v1003 = vld [vmem:[%s972 + $0xf0] sm:$0xff]
        %v1004 = vld [vmem:[%s972 + $0xf8] sm:$0xff]
        %1005 = vxpose.xlu0.b32.start [1/16] %v973, 128
        %1006 = vxpose.xlu0.b32.cont [2/16] %v974, 128
        %1007 = vxpose.xlu0.b32.cont [3/16] %v975, 128
        %1008 = vxpose.xlu0.b32.cont [4/16] %v976, 128
        %1009 = vxpose.xlu0.b32.cont [5/16] %v977, 128
        %1010 = vxpose.xlu0.b32.cont [6/16] %v978, 128
        %1011 = vxpose.xlu0.b32.cont [7/16] %v979, 128
        %1012 = vxpose.xlu0.b32.cont [8/16] %v980, 128
        %1013 = vxpose.xlu0.b32.cont [9/16] %v981, 128
        %1014 = vxpose.xlu0.b32.cont [10/16] %v982, 128
        %1015 = vxpose.xlu0.b32.cont [11/16] %v983, 128
        %1016 = vxpose.xlu0.b32.cont [12/16] %v984, 128
        %1017 = vxpose.xlu0.b32.cont [13/16] %v985, 128
        %1018 = vxpose.xlu0.b32.cont [14/16] %v986, 128
        %1019 = vxpose.xlu0.b32.cont [15/16] %v987, 128
        %1020 = vxpose.xlu0.b32.end [16/16] %v988, 128
        %v1021 = vpop.trf.xlu0
        %v1022 = vpop.trf.xlu0
        %v1023 = vpop.trf.xlu0
        %v1024 = vpop.trf.xlu0
        %v1025 = vpop.trf.xlu0
        %v1026 = vpop.trf.xlu0
        %v1027 = vpop.trf.xlu0
        %v1028 = vpop.trf.xlu0
        %v1029 = vpop.trf.xlu0
        %v1030 = vpop.trf.xlu0
        %v1031 = vpop.trf.xlu0
        %v1032 = vpop.trf.xlu0
        %v1033 = vpop.trf.xlu0
        %v1034 = vpop.trf.xlu0
        %v1035 = vpop.trf.xlu0
        %v1036 = vpop.trf.xlu0
        %1037 = vxpose.xlu0.b32.start [1/16] %v989, 128
        %1038 = vxpose.xlu0.b32.cont [2/16] %v990, 128
        %1039 = vxpose.xlu0.b32.cont [3/16] %v991, 128
        %1040 = vxpose.xlu0.b32.cont [4/16] %v992, 128
        %1041 = vxpose.xlu0.b32.cont [5/16] %v993, 128
        %1042 = vxpose.xlu0.b32.cont [6/16] %v994, 128
        %1043 = vxpose.xlu0.b32.cont [7/16] %v995, 128
        %1044 = vxpose.xlu0.b32.cont [8/16] %v996, 128
        %1045 = vxpose.xlu0.b32.cont [9/16] %v997, 128
        %1046 = vxpose.xlu0.b32.cont [10/16] %v998, 128
        %1047 = vxpose.xlu0.b32.cont [11/16] %v999, 128
        %1048 = vxpose.xlu0.b32.cont [12/16] %v1000, 128
        %1049 = vxpose.xlu0.b32.cont [13/16] %v1001, 128
        %1050 = vxpose.xlu0.b32.cont [14/16] %v1002, 128
        %1051 = vxpose.xlu0.b32.cont [15/16] %v1003, 128
        %1052 = vxpose.xlu0.b32.end [16/16] %v1004, 128
        %v1053 = vpop.trf.xlu0
        %v1054 = vpop.trf.xlu0
        %v1055 = vpop.trf.xlu0
        %v1056 = vpop.trf.xlu0
        %v1057 = vpop.trf.xlu0
        %v1058 = vpop.trf.xlu0
        %v1059 = vpop.trf.xlu0
        %v1060 = vpop.trf.xlu0
        %v1061 = vpop.trf.xlu0
        %v1062 = vpop.trf.xlu0
        %v1063 = vpop.trf.xlu0
        %v1064 = vpop.trf.xlu0
        %v1065 = vpop.trf.xlu0
        %v1066 = vpop.trf.xlu0
        %v1067 = vpop.trf.xlu0
        %v1068 = vpop.trf.xlu0
        %v1069 = vpack.c.bf16 %v828, %v827
        %v1070 = vpack.c.bf16 %v860, %v859
        %v1071 = vpack.c.bf16 %v830, %v829
        %v1072 = vpack.c.bf16 %v862, %v861
        %v1073 = vpack.c.bf16 %v925, %v924
        %v1074 = vpack.c.bf16 %v957, %v956
        %v1075 = vpack.c.bf16 %v927, %v926
        %v1076 = vpack.c.bf16 %v959, %v958
        %v1077 = vpack.c.bf16 %v1022, %v1021
        %v1078 = vpack.c.bf16 %v1054, %v1053
        %v1079 = vpack.c.bf16 %v1024, %v1023
        %v1080 = vpack.c.bf16 %v1056, %v1055
        %v1081 = vld [vmem:[%s1] sm:$0xf]
        %v1082 = vld [vmem:[%s1 + $0x4] sm:$0xf]
        %v1083 = vld [vmem:[%s1 + $0x8] sm:$0xf]
        %v1084 = vld [vmem:[%s1 + $0xc] sm:$0xf]
        %v1085 = vld [vmem:[%s1 + $0x10] sm:$0xf]
        %v1086 = vld [vmem:[%s1 + $0x14] sm:$0xf]
        %v1087 = vld [vmem:[%s1 + $0x18] sm:$0xf]
        %v1088 = vld [vmem:[%s1 + $0x1c] sm:$0xf]
        %v1089 = vld [vmem:[%s1 + $0x20] sm:$0xf]
        %v1090 = vld [vmem:[%s1 + $0x24] sm:$0xf]
        %v1091 = vld [vmem:[%s1 + $0x28] sm:$0xf]
        %v1092 = vld [vmem:[%s1 + $0x2c] sm:$0xf]
        %v1093 = vld [vmem:[%s1 + $0x30] sm:$0xf]
        %v1094 = vld [vmem:[%s1 + $0x34] sm:$0xf]
        %v1095 = vld [vmem:[%s1 + $0x38] sm:$0xf]
        %v1096 = vld [vmem:[%s1 + $0x3c] sm:$0xf]
        %v1097 = vld [vmem:[%s1 + $0x40] sm:$0xf]
        %v1098 = vld [vmem:[%s1 + $0x44] sm:$0xf]
        %v1099 = vld [vmem:[%s1 + $0x48] sm:$0xf]
        %v1100 = vld [vmem:[%s1 + $0x4c] sm:$0xf]
        %v1101 = vld [vmem:[%s1 + $0x50] sm:$0xf]
        %v1102 = vld [vmem:[%s1 + $0x54] sm:$0xf]
        %v1103 = vld [vmem:[%s1 + $0x58] sm:$0xf]
        %v1104 = vld [vmem:[%s1 + $0x5c] sm:$0xf]
        %v1105 = vld [vmem:[%s1 + $0x60] sm:$0xf]
        %v1106 = vld [vmem:[%s1 + $0x64] sm:$0xf]
        %v1107 = vld [vmem:[%s1 + $0x68] sm:$0xf]
        %v1108 = vld [vmem:[%s1 + $0x6c] sm:$0xf]
        %v1109 = vld [vmem:[%s1 + $0x70] sm:$0xf]
        %v1110 = vld [vmem:[%s1 + $0x74] sm:$0xf]
        %v1111 = vld [vmem:[%s1 + $0x78] sm:$0xf]
        %v1112 = vld [vmem:[%s1 + $0x7c] sm:$0xf]
        %v1145 = vunpack.c.l.b16 %v1081
        %v1146 = vunpack.c.l.b16 %v1082
        %v1147 = vunpack.c.l.b16 %v1083
        %v1148 = vunpack.c.l.b16 %v1084
        %v1149 = vunpack.c.l.b16 %v1085
        %v1150 = vunpack.c.l.b16 %v1086
        %v1151 = vunpack.c.l.b16 %v1087
        %v1152 = vunpack.c.l.b16 %v1088
        %v1153 = vunpack.c.l.b16 %v1089
        %v1154 = vunpack.c.l.b16 %v1090
        %v1155 = vunpack.c.l.b16 %v1091
        %v1156 = vunpack.c.l.b16 %v1092
        %v1157 = vunpack.c.l.b16 %v1093
        %v1158 = vunpack.c.l.b16 %v1094
        %v1159 = vunpack.c.l.b16 %v1095
        %v1160 = vunpack.c.l.b16 %v1096
        %v1161 = vunpack.c.l.b16 %v1097
        %v1162 = vunpack.c.l.b16 %v1098
        %v1163 = vunpack.c.l.b16 %v1099
        %v1164 = vunpack.c.l.b16 %v1100
        %v1165 = vunpack.c.l.b16 %v1101
        %v1166 = vunpack.c.l.b16 %v1102
        %v1167 = vunpack.c.l.b16 %v1103
        %v1168 = vunpack.c.l.b16 %v1104
        %v1169 = vunpack.c.l.b16 %v1105
        %v1170 = vunpack.c.l.b16 %v1106
        %v1171 = vunpack.c.l.b16 %v1107
        %v1172 = vunpack.c.l.b16 %v1108
        %v1173 = vunpack.c.l.b16 %v1109
        %v1174 = vunpack.c.l.b16 %v1110
        %v1175 = vunpack.c.l.b16 %v1111
        %v1176 = vunpack.c.l.b16 %v1112
        %v1177 = vpack.c.b16 %v1146, %v1145
        %v1178 = vpack.c.b16 %v1148, %v1147
        %v1179 = vpack.c.b16 %v1150, %v1149
        %v1180 = vpack.c.b16 %v1152, %v1151
        %v1181 = vpack.c.b16 %v1154, %v1153
        %v1182 = vpack.c.b16 %v1156, %v1155
        %v1183 = vpack.c.b16 %v1158, %v1157
        %v1184 = vpack.c.b16 %v1160, %v1159
        %v1185 = vpack.c.b16 %v1162, %v1161
        %v1186 = vpack.c.b16 %v1164, %v1163
        %v1187 = vpack.c.b16 %v1166, %v1165
        %v1188 = vpack.c.b16 %v1168, %v1167
        %v1189 = vpack.c.b16 %v1170, %v1169
        %v1190 = vpack.c.b16 %v1172, %v1171
        %v1191 = vpack.c.b16 %v1174, %v1173
        %v1192 = vpack.c.b16 %v1176, %v1175
        %vm1193 = vcmask 261120
        %v1195 = vsel %vm1193, %v1177, 0
        %v1198 = vsel %vm1193, %v1178, 0
        %v1201 = vsel %vm1193, %v1179, 0
        %v1204 = vsel %vm1193, %v1180, 0
        %v1207 = vsel %vm1193, %v1181, 0
        %v1210 = vsel %vm1193, %v1182, 0
        %v1213 = vsel %vm1193, %v1183, 0
        %v1216 = vsel %vm1193, %v1184, 0
        %v1219 = vsel %vm1193, %v1185, 0
        %v1222 = vsel %vm1193, %v1186, 0
        %v1225 = vsel %vm1193, %v1187, 0
        %v1228 = vsel %vm1193, %v1188, 0
        %v1231 = vsel %vm1193, %v1189, 0
        %v1234 = vsel %vm1193, %v1190, 0
        %v1237 = vsel %vm1193, %v1191, 0
        %v1240 = vsel %vm1193, %v1192, 0
        %1242 = vmatpush.bf16.msra.mxu0 0
        %1243 = vmatpush.bf16.msra.mxu0 0
        %1244 = vmatpush.bf16.msra.mxu0 0
        %1245 = vmatpush.bf16.msra.mxu0 0
        %1246 = vmatpush.bf16.msra.mxu0 0
        %1247 = vmatpush.bf16.msra.mxu0 0
        %1248 = vmatpush.bf16.msra.mxu0 %v1071
        %1249 = vmatpush.bf16.msra.mxu0 %v1069
        %1250 = vmatmul.bf16.gmra.mxu0 %v1195
        %v1251 = vpop.f32.mrf.mxu0
        %v1252 = vadd.f32 0.0, %v1251
        %v1253 = vpop.f32.mrf.mxu0
        %v1254 = vadd.f32 0.0, %v1253
        %1255 = vmatmul.bf16.gmra.mxu0 %v1198
        %v1256 = vpop.f32.mrf.mxu0
        %v1257 = vadd.f32 0.0, %v1256
        %v1258 = vpop.f32.mrf.mxu0
        %v1259 = vadd.f32 0.0, %v1258
        %1260 = vmatmul.bf16.gmra.mxu0 %v1201
        %v1261 = vpop.f32.mrf.mxu0
        %v1262 = vadd.f32 0.0, %v1261
        %v1263 = vpop.f32.mrf.mxu0
        %v1264 = vadd.f32 0.0, %v1263
        %1265 = vmatmul.bf16.gmra.mxu0 %v1204
        %v1266 = vpop.f32.mrf.mxu0
        %v1267 = vadd.f32 0.0, %v1266
        %v1268 = vpop.f32.mrf.mxu0
        %v1269 = vadd.f32 0.0, %v1268
        %1270 = vmatmul.bf16.gmra.mxu0 %v1207
        %v1271 = vpop.f32.mrf.mxu0
        %v1272 = vadd.f32 0.0, %v1271
        %v1273 = vpop.f32.mrf.mxu0
        %v1274 = vadd.f32 0.0, %v1273
        %1275 = vmatmul.bf16.gmra.mxu0 %v1210
        %v1276 = vpop.f32.mrf.mxu0
        %v1277 = vadd.f32 0.0, %v1276
        %v1278 = vpop.f32.mrf.mxu0
        %v1279 = vadd.f32 0.0, %v1278
        %1280 = vmatmul.bf16.gmra.mxu0 %v1213
        %v1281 = vpop.f32.mrf.mxu0
        %v1282 = vadd.f32 0.0, %v1281
        %v1283 = vpop.f32.mrf.mxu0
        %v1284 = vadd.f32 0.0, %v1283
        %1285 = vmatmul.bf16.gmra.mxu0 %v1216
        %v1286 = vpop.f32.mrf.mxu0
        %v1287 = vadd.f32 0.0, %v1286
        %v1288 = vpop.f32.mrf.mxu0
        %v1289 = vadd.f32 0.0, %v1288
        %1290 = vmatmul.bf16.gmra.mxu0 %v1219
        %v1291 = vpop.f32.mrf.mxu0
        %v1292 = vadd.f32 0.0, %v1291
        %v1293 = vpop.f32.mrf.mxu0
        %v1294 = vadd.f32 0.0, %v1293
        %1295 = vmatmul.bf16.gmra.mxu0 %v1222
        %v1296 = vpop.f32.mrf.mxu0
        %v1297 = vadd.f32 0.0, %v1296
        %v1298 = vpop.f32.mrf.mxu0
        %v1299 = vadd.f32 0.0, %v1298
        %1300 = vmatmul.bf16.gmra.mxu0 %v1225
        %v1301 = vpop.f32.mrf.mxu0
        %v1302 = vadd.f32 0.0, %v1301
        %v1303 = vpop.f32.mrf.mxu0
        %v1304 = vadd.f32 0.0, %v1303
        %1305 = vmatmul.bf16.gmra.mxu0 %v1228
        %v1306 = vpop.f32.mrf.mxu0
        %v1307 = vadd.f32 0.0, %v1306
        %v1308 = vpop.f32.mrf.mxu0
        %v1309 = vadd.f32 0.0, %v1308
        %1310 = vmatmul.bf16.gmra.mxu0 %v1231
        %v1311 = vpop.f32.mrf.mxu0
        %v1312 = vadd.f32 0.0, %v1311
        %v1313 = vpop.f32.mrf.mxu0
        %v1314 = vadd.f32 0.0, %v1313
        %1315 = vmatmul.bf16.gmra.mxu0 %v1234
        %v1316 = vpop.f32.mrf.mxu0
        %v1317 = vadd.f32 0.0, %v1316
        %v1318 = vpop.f32.mrf.mxu0
        %v1319 = vadd.f32 0.0, %v1318
        %1320 = vmatmul.bf16.gmra.mxu0 %v1237
        %v1321 = vpop.f32.mrf.mxu0
        %v1322 = vadd.f32 0.0, %v1321
        %v1323 = vpop.f32.mrf.mxu0
        %v1324 = vadd.f32 0.0, %v1323
        %1325 = vmatmul.bf16.gmra.mxu0 %v1240
        %v1326 = vpop.f32.mrf.mxu0
        %v1327 = vadd.f32 0.0, %v1326
        %v1328 = vpop.f32.mrf.mxu0
        %v1329 = vadd.f32 0.0, %v1328
        %1330 = vdwg.mxu0
        %1331 = vmatpush.bf16.msra.mxu0 0
        %1332 = vmatpush.bf16.msra.mxu0 0
        %1333 = vmatpush.bf16.msra.mxu0 0
        %1334 = vmatpush.bf16.msra.mxu0 0
        %1335 = vmatpush.bf16.msra.mxu0 0
        %1336 = vmatpush.bf16.msra.mxu0 0
        %1337 = vmatpush.bf16.msra.mxu0 %v1072
        %1338 = vmatpush.bf16.msra.mxu0 %v1070
        %1339 = vmatmul.bf16.gmra.mxu0 %v1195
        %v1340 = vpop.f32.mrf.mxu0
        %v1341 = vadd.f32 0.0, %v1340
        %v1342 = vpop.f32.mrf.mxu0
        %v1343 = vadd.f32 0.0, %v1342
        %1344 = vmatmul.bf16.gmra.mxu0 %v1198
        %v1345 = vpop.f32.mrf.mxu0
        %v1346 = vadd.f32 0.0, %v1345
        %v1347 = vpop.f32.mrf.mxu0
        %v1348 = vadd.f32 0.0, %v1347
        %1349 = vmatmul.bf16.gmra.mxu0 %v1201
        %v1350 = vpop.f32.mrf.mxu0
        %v1351 = vadd.f32 0.0, %v1350
        %v1352 = vpop.f32.mrf.mxu0
        %v1353 = vadd.f32 0.0, %v1352
        %1354 = vmatmul.bf16.gmra.mxu0 %v1204
        %v1355 = vpop.f32.mrf.mxu0
        %v1356 = vadd.f32 0.0, %v1355
        %v1357 = vpop.f32.mrf.mxu0
        %v1358 = vadd.f32 0.0, %v1357
        %1359 = vmatmul.bf16.gmra.mxu0 %v1207
        %v1360 = vpop.f32.mrf.mxu0
        %v1361 = vadd.f32 0.0, %v1360
        %v1362 = vpop.f32.mrf.mxu0
        %v1363 = vadd.f32 0.0, %v1362
        %1364 = vmatmul.bf16.gmra.mxu0 %v1210
        %v1365 = vpop.f32.mrf.mxu0
        %v1366 = vadd.f32 0.0, %v1365
        %v1367 = vpop.f32.mrf.mxu0
        %v1368 = vadd.f32 0.0, %v1367
        %1369 = vmatmul.bf16.gmra.mxu0 %v1213
        %v1370 = vpop.f32.mrf.mxu0
        %v1371 = vadd.f32 0.0, %v1370
        %v1372 = vpop.f32.mrf.mxu0
        %v1373 = vadd.f32 0.0, %v1372
        %1374 = vmatmul.bf16.gmra.mxu0 %v1216
        %v1375 = vpop.f32.mrf.mxu0
        %v1376 = vadd.f32 0.0, %v1375
        %v1377 = vpop.f32.mrf.mxu0
        %v1378 = vadd.f32 0.0, %v1377
        %1379 = vmatmul.bf16.gmra.mxu0 %v1219
        %v1380 = vpop.f32.mrf.mxu0
        %v1381 = vadd.f32 0.0, %v1380
        %v1382 = vpop.f32.mrf.mxu0
        %v1383 = vadd.f32 0.0, %v1382
        %1384 = vmatmul.bf16.gmra.mxu0 %v1222
        %v1385 = vpop.f32.mrf.mxu0
        %v1386 = vadd.f32 0.0, %v1385
        %v1387 = vpop.f32.mrf.mxu0
        %v1388 = vadd.f32 0.0, %v1387
        %1389 = vmatmul.bf16.gmra.mxu0 %v1225
        %v1390 = vpop.f32.mrf.mxu0
        %v1391 = vadd.f32 0.0, %v1390
        %v1392 = vpop.f32.mrf.mxu0
        %v1393 = vadd.f32 0.0, %v1392
        %1394 = vmatmul.bf16.gmra.mxu0 %v1228
        %v1395 = vpop.f32.mrf.mxu0
        %v1396 = vadd.f32 0.0, %v1395
        %v1397 = vpop.f32.mrf.mxu0
        %v1398 = vadd.f32 0.0, %v1397
        %1399 = vmatmul.bf16.gmra.mxu0 %v1231
        %v1400 = vpop.f32.mrf.mxu0
        %v1401 = vadd.f32 0.0, %v1400
        %v1402 = vpop.f32.mrf.mxu0
        %v1403 = vadd.f32 0.0, %v1402
        %1404 = vmatmul.bf16.gmra.mxu0 %v1234
        %v1405 = vpop.f32.mrf.mxu0
        %v1406 = vadd.f32 0.0, %v1405
        %v1407 = vpop.f32.mrf.mxu0
        %v1408 = vadd.f32 0.0, %v1407
        %1409 = vmatmul.bf16.gmra.mxu0 %v1237
        %v1410 = vpop.f32.mrf.mxu0
        %v1411 = vadd.f32 0.0, %v1410
        %v1412 = vpop.f32.mrf.mxu0
        %v1413 = vadd.f32 0.0, %v1412
        %1414 = vmatmul.bf16.gmra.mxu0 %v1240
        %v1415 = vpop.f32.mrf.mxu0
        %v1416 = vadd.f32 0.0, %v1415
        %v1417 = vpop.f32.mrf.mxu0
        %v1418 = vadd.f32 0.0, %v1417
        %1419 = vdwg.mxu0
        %v1420 = vmul.f32 %v1252, %v924
        %v1421 = vmul.f32 %v1341, %v956
        %v1422 = vmul.f32 %v1254, %v925
        %v1423 = vmul.f32 %v1343, %v957
        %v1424 = vmul.f32 %v1257, %v926
        %v1425 = vmul.f32 %v1346, %v958
        %v1426 = vmul.f32 %v1259, %v927
        %v1427 = vmul.f32 %v1348, %v959
        %v1428 = vpack.c.bf16 %v1421, %v1420
        %v1429 = vpack.c.bf16 %v1423, %v1422
        %v1430 = vpack.c.bf16 %v1425, %v1424
        %v1431 = vpack.c.bf16 %v1427, %v1426
        %v1432 = vmul.f32 %v1262, %v924
        %v1433 = vmul.f32 %v1351, %v956
        %v1434 = vmul.f32 %v1264, %v925
        %v1435 = vmul.f32 %v1353, %v957
        %v1436 = vmul.f32 %v1267, %v926
        %v1437 = vmul.f32 %v1356, %v958
        %v1438 = vmul.f32 %v1269, %v927
        %v1439 = vmul.f32 %v1358, %v959
        %v1440 = vpack.c.bf16 %v1433, %v1432
        %v1441 = vpack.c.bf16 %v1435, %v1434
        %v1442 = vpack.c.bf16 %v1437, %v1436
        %v1443 = vpack.c.bf16 %v1439, %v1438
        %v1444 = vmul.f32 %v1272, %v924
        %v1445 = vmul.f32 %v1361, %v956
        %v1446 = vmul.f32 %v1274, %v925
        %v1447 = vmul.f32 %v1363, %v957
        %v1448 = vmul.f32 %v1277, %v926
        %v1449 = vmul.f32 %v1366, %v958
        %v1450 = vmul.f32 %v1279, %v927
        %v1451 = vmul.f32 %v1368, %v959
        %v1452 = vpack.c.bf16 %v1445, %v1444
        %v1453 = vpack.c.bf16 %v1447, %v1446
        %v1454 = vpack.c.bf16 %v1449, %v1448
        %v1455 = vpack.c.bf16 %v1451, %v1450
        %v1456 = vmul.f32 %v1282, %v924
        %v1457 = vmul.f32 %v1371, %v956
        %v1458 = vmul.f32 %v1284, %v925
        %v1459 = vmul.f32 %v1373, %v957
        %v1460 = vmul.f32 %v1287, %v926
        %v1461 = vmul.f32 %v1376, %v958
        %v1462 = vmul.f32 %v1289, %v927
        %v1463 = vmul.f32 %v1378, %v959
        %v1464 = vpack.c.bf16 %v1457, %v1456
        %v1465 = vpack.c.bf16 %v1459, %v1458
        %v1466 = vpack.c.bf16 %v1461, %v1460
        %v1467 = vpack.c.bf16 %v1463, %v1462
        %v1468 = vmul.f32 %v1292, %v924
        %v1469 = vmul.f32 %v1381, %v956
        %v1470 = vmul.f32 %v1294, %v925
        %v1471 = vmul.f32 %v1383, %v957
        %v1472 = vmul.f32 %v1297, %v926
        %v1473 = vmul.f32 %v1386, %v958
        %v1474 = vmul.f32 %v1299, %v927
        %v1475 = vmul.f32 %v1388, %v959
        %v1476 = vpack.c.bf16 %v1469, %v1468
        %v1477 = vpack.c.bf16 %v1471, %v1470
        %v1478 = vpack.c.bf16 %v1473, %v1472
        %v1479 = vpack.c.bf16 %v1475, %v1474
        %v1480 = vmul.f32 %v1302, %v924
        %v1481 = vmul.f32 %v1391, %v956
        %v1482 = vmul.f32 %v1304, %v925
        %v1483 = vmul.f32 %v1393, %v957
        %v1484 = vmul.f32 %v1307, %v926
        %v1485 = vmul.f32 %v1396, %v958
        %v1486 = vmul.f32 %v1309, %v927
        %v1487 = vmul.f32 %v1398, %v959
        %v1488 = vpack.c.bf16 %v1481, %v1480
        %v1489 = vpack.c.bf16 %v1483, %v1482
        %v1490 = vpack.c.bf16 %v1485, %v1484
        %v1491 = vpack.c.bf16 %v1487, %v1486
        %v1492 = vmul.f32 %v1312, %v924
        %v1493 = vmul.f32 %v1401, %v956
        %v1494 = vmul.f32 %v1314, %v925
        %v1495 = vmul.f32 %v1403, %v957
        %v1496 = vmul.f32 %v1317, %v926
        %v1497 = vmul.f32 %v1406, %v958
        %v1498 = vmul.f32 %v1319, %v927
        %v1499 = vmul.f32 %v1408, %v959
        %v1500 = vpack.c.bf16 %v1493, %v1492
        %v1501 = vpack.c.bf16 %v1495, %v1494
        %v1502 = vpack.c.bf16 %v1497, %v1496
        %v1503 = vpack.c.bf16 %v1499, %v1498
        %v1504 = vmul.f32 %v1322, %v924
        %v1505 = vmul.f32 %v1411, %v956
        %v1506 = vmul.f32 %v1324, %v925
        %v1507 = vmul.f32 %v1413, %v957
        %v1508 = vmul.f32 %v1327, %v926
        %v1509 = vmul.f32 %v1416, %v958
        %v1510 = vmul.f32 %v1329, %v927
        %v1511 = vmul.f32 %v1418, %v959
        %v1512 = vpack.c.bf16 %v1505, %v1504
        %v1513 = vpack.c.bf16 %v1507, %v1506
        %v1514 = vpack.c.bf16 %v1509, %v1508
        %v1515 = vpack.c.bf16 %v1511, %v1510
        %v1520 = vunpack.c.l.b16 %v1428
        %v1521 = vunpack.c.h.b16 %v1428
        %v1522 = vunpack.c.l.b16 %v1429
        %v1523 = vunpack.c.h.b16 %v1429
        %v1524 = vunpack.c.l.b16 %v1430
        %v1525 = vunpack.c.h.b16 %v1430
        %v1526 = vunpack.c.l.b16 %v1431
        %v1527 = vunpack.c.h.b16 %v1431
        %v1528 = vpack.c.b16 %v1522, %v1520
        %v1529 = vpack.c.b16 %v1523, %v1521
        %v1530 = vpack.c.b16 %v1526, %v1524
        %v1531 = vpack.c.b16 %v1527, %v1525
        %v1540 = vunpack.c.l.b16 %v1440
        %v1541 = vunpack.c.h.b16 %v1440
        %v1542 = vunpack.c.l.b16 %v1441
        %v1543 = vunpack.c.h.b16 %v1441
        %v1544 = vunpack.c.l.b16 %v1442
        %v1545 = vunpack.c.h.b16 %v1442
        %v1546 = vunpack.c.l.b16 %v1443
        %v1547 = vunpack.c.h.b16 %v1443
        %v1548 = vpack.c.b16 %v1542, %v1540
        %v1549 = vpack.c.b16 %v1543, %v1541
        %v1550 = vpack.c.b16 %v1546, %v1544
        %v1551 = vpack.c.b16 %v1547, %v1545
        %v1560 = vunpack.c.l.b16 %v1452
        %v1561 = vunpack.c.h.b16 %v1452
        %v1562 = vunpack.c.l.b16 %v1453
        %v1563 = vunpack.c.h.b16 %v1453
        %v1564 = vunpack.c.l.b16 %v1454
        %v1565 = vunpack.c.h.b16 %v1454
        %v1566 = vunpack.c.l.b16 %v1455
        %v1567 = vunpack.c.h.b16 %v1455
        %v1568 = vpack.c.b16 %v1562, %v1560
        %v1569 = vpack.c.b16 %v1563, %v1561
        %v1570 = vpack.c.b16 %v1566, %v1564
        %v1571 = vpack.c.b16 %v1567, %v1565
        %v1580 = vunpack.c.l.b16 %v1464
        %v1581 = vunpack.c.h.b16 %v1464
        %v1582 = vunpack.c.l.b16 %v1465
        %v1583 = vunpack.c.h.b16 %v1465
        %v1584 = vunpack.c.l.b16 %v1466
        %v1585 = vunpack.c.h.b16 %v1466
        %v1586 = vunpack.c.l.b16 %v1467
        %v1587 = vunpack.c.h.b16 %v1467
        %v1588 = vpack.c.b16 %v1582, %v1580
        %v1589 = vpack.c.b16 %v1583, %v1581
        %v1590 = vpack.c.b16 %v1586, %v1584
        %v1591 = vpack.c.b16 %v1587, %v1585
        %v1600 = vunpack.c.l.b16 %v1476
        %v1601 = vunpack.c.h.b16 %v1476
        %v1602 = vunpack.c.l.b16 %v1477
        %v1603 = vunpack.c.h.b16 %v1477
        %v1604 = vunpack.c.l.b16 %v1478
        %v1605 = vunpack.c.h.b16 %v1478
        %v1606 = vunpack.c.l.b16 %v1479
        %v1607 = vunpack.c.h.b16 %v1479
        %v1608 = vpack.c.b16 %v1602, %v1600
        %v1609 = vpack.c.b16 %v1603, %v1601
        %v1610 = vpack.c.b16 %v1606, %v1604
        %v1611 = vpack.c.b16 %v1607, %v1605
        %v1620 = vunpack.c.l.b16 %v1488
        %v1621 = vunpack.c.h.b16 %v1488
        %v1622 = vunpack.c.l.b16 %v1489
        %v1623 = vunpack.c.h.b16 %v1489
        %v1624 = vunpack.c.l.b16 %v1490
        %v1625 = vunpack.c.h.b16 %v1490
        %v1626 = vunpack.c.l.b16 %v1491
        %v1627 = vunpack.c.h.b16 %v1491
        %v1628 = vpack.c.b16 %v1622, %v1620
        %v1629 = vpack.c.b16 %v1623, %v1621
        %v1630 = vpack.c.b16 %v1626, %v1624
        %v1631 = vpack.c.b16 %v1627, %v1625
        %v1640 = vunpack.c.l.b16 %v1500
        %v1641 = vunpack.c.h.b16 %v1500
        %v1642 = vunpack.c.l.b16 %v1501
        %v1643 = vunpack.c.h.b16 %v1501
        %v1644 = vunpack.c.l.b16 %v1502
        %v1645 = vunpack.c.h.b16 %v1502
        %v1646 = vunpack.c.l.b16 %v1503
        %v1647 = vunpack.c.h.b16 %v1503
        %v1648 = vpack.c.b16 %v1642, %v1640
        %v1649 = vpack.c.b16 %v1643, %v1641
        %v1650 = vpack.c.b16 %v1646, %v1644
        %v1651 = vpack.c.b16 %v1647, %v1645
        %v1660 = vunpack.c.l.b16 %v1512
        %v1661 = vunpack.c.h.b16 %v1512
        %v1662 = vunpack.c.l.b16 %v1513
        %v1663 = vunpack.c.h.b16 %v1513
        %v1664 = vunpack.c.l.b16 %v1514
        %v1665 = vunpack.c.h.b16 %v1514
        %v1666 = vunpack.c.l.b16 %v1515
        %v1667 = vunpack.c.h.b16 %v1515
        %v1668 = vpack.c.b16 %v1662, %v1660
        %v1669 = vpack.c.b16 %v1663, %v1661
        %v1670 = vpack.c.b16 %v1666, %v1664
        %v1671 = vpack.c.b16 %v1667, %v1665
        %v1676 = vld [vmem:[%s2] sm:$0xff]
        %v1677 = vld [vmem:[%s3] sm:$0xf]
        %v1679 = vsel %vm1193, %v1677, 0
        %1681 = vmatpush.bf16.msra.mxu0 0
        %1682 = vmatpush.bf16.msra.mxu0 0
        %1683 = vmatpush.bf16.msra.mxu0 0
        %1684 = vmatpush.bf16.msra.mxu0 0
        %1685 = vmatpush.bf16.msra.mxu0 0
        %1686 = vmatpush.bf16.msra.mxu0 0
        %1687 = vmatpush.bf16.msra.mxu0 %v1071
        %1688 = vmatpush.bf16.msra.mxu0 %v1069
        %1689 = vmatmul.bf16.gmra.mxu0 %v1679
        %v1690 = vpop.f32.mrf.mxu0
        %v1691 = vadd.f32 0.0, %v1690
        %v1692 = vpop.f32.mrf.mxu0
        %1693 = vdwg.mxu0
        %1694 = vmatpush.bf16.msra.mxu0 0
        %1695 = vmatpush.bf16.msra.mxu0 0
        %1696 = vmatpush.bf16.msra.mxu0 0
        %1697 = vmatpush.bf16.msra.mxu0 0
        %1698 = vmatpush.bf16.msra.mxu0 0
        %1699 = vmatpush.bf16.msra.mxu0 0
        %1700 = vmatpush.bf16.msra.mxu0 %v1072
        %1701 = vmatpush.bf16.msra.mxu0 %v1070
        %1702 = vmatmul.bf16.gmra.mxu0 %v1679
        %v1703 = vpop.f32.mrf.mxu0
        %v1704 = vadd.f32 0.0, %v1703
        %v1705 = vpop.f32.mrf.mxu0
        %1706 = vdwg.mxu0
        %v1708 = vunpack.c.l.b16 %v1676
        %v1709 = vunpack.c.h.b16 %v1676
        %v1710 = vpack.c.b16 %v1708, %v1708
        %v1711 = vpack.c.b16 %v1709, %v1709
        %1714 = vmatpush.bf16.msra.mxu0 %v1590
        %1715 = vmatpush.bf16.msra.mxu0 %v1588
        %1716 = vmatpush.bf16.msra.mxu0 %v1570
        %1717 = vmatpush.bf16.msra.mxu0 %v1568
        %1718 = vmatpush.bf16.msra.mxu0 %v1550
        %1719 = vmatpush.bf16.msra.mxu0 %v1548
        %1720 = vmatpush.bf16.msra.mxu0 %v1530
        %1721 = vmatpush.bf16.msra.mxu0 %v1528
        %1722 = vmatmul.bf16.gmra.mxu0 %v1710
        %v1723 = vpop.f32.mrf.mxu0
        %v1724 = vadd.f32 %v1691, %v1723
        %v1725 = vpop.f32.mrf.mxu0
        %1726 = vdwg.mxu0
        %1727 = vmatpush.bf16.msra.mxu0 %v1670
        %1728 = vmatpush.bf16.msra.mxu0 %v1668
        %1729 = vmatpush.bf16.msra.mxu0 %v1650
        %1730 = vmatpush.bf16.msra.mxu0 %v1648
        %1731 = vmatpush.bf16.msra.mxu0 %v1630
        %1732 = vmatpush.bf16.msra.mxu0 %v1628
        %1733 = vmatpush.bf16.msra.mxu0 %v1610
        %1734 = vmatpush.bf16.msra.mxu0 %v1608
        %1735 = vmatmul.bf16.gmra.mxu0 %v1711
        %v1736 = vpop.f32.mrf.mxu0
        %v1737 = vadd.f32 %v1724, %v1736
        %v1738 = vpop.f32.mrf.mxu0
        %1739 = vdwg.mxu0
        %1740 = vmatpush.bf16.msra.mxu0 %v1591
        %1741 = vmatpush.bf16.msra.mxu0 %v1589
        %1742 = vmatpush.bf16.msra.mxu0 %v1571
        %1743 = vmatpush.bf16.msra.mxu0 %v1569
        %1744 = vmatpush.bf16.msra.mxu0 %v1551
        %1745 = vmatpush.bf16.msra.mxu0 %v1549
        %1746 = vmatpush.bf16.msra.mxu0 %v1531
        %1747 = vmatpush.bf16.msra.mxu0 %v1529
        %1748 = vmatmul.bf16.gmra.mxu0 %v1710
        %v1749 = vpop.f32.mrf.mxu0
        %v1750 = vadd.f32 %v1704, %v1749
        %v1751 = vpop.f32.mrf.mxu0
        %1752 = vdwg.mxu0
        %1753 = vmatpush.bf16.msra.mxu0 %v1671
        %1754 = vmatpush.bf16.msra.mxu0 %v1669
        %1755 = vmatpush.bf16.msra.mxu0 %v1651
        %1756 = vmatpush.bf16.msra.mxu0 %v1649
        %1757 = vmatpush.bf16.msra.mxu0 %v1631
        %1758 = vmatpush.bf16.msra.mxu0 %v1629
        %1759 = vmatpush.bf16.msra.mxu0 %v1611
        %1760 = vmatpush.bf16.msra.mxu0 %v1609
        %1761 = vmatmul.bf16.gmra.mxu0 %v1711
        %v1762 = vpop.f32.mrf.mxu0
        %v1763 = vadd.f32 %v1750, %v1762
        %v1764 = vpop.f32.mrf.mxu0
        %1765 = vdwg.mxu0
        %v1766 = vld [vmem:[%s4] sm:$0xf]
        %v1768 = vsel %vm1193, %v1766, 0
        %1770 = vmatpush.bf16.msra.mxu0 0
        %1771 = vmatpush.bf16.msra.mxu0 0
        %1772 = vmatpush.bf16.msra.mxu0 0
        %1773 = vmatpush.bf16.msra.mxu0 0
        %1774 = vmatpush.bf16.msra.mxu0 0
        %1775 = vmatpush.bf16.msra.mxu0 0
        %1776 = vmatpush.bf16.msra.mxu0 %v1075
        %1777 = vmatpush.bf16.msra.mxu0 %v1073
        %1778 = vmatmul.bf16.gmra.mxu0 %v1768
        %v1779 = vpop.f32.mrf.mxu0
        %v1780 = vadd.f32 0.0, %v1779
        %v1781 = vpop.f32.mrf.mxu0
        %1782 = vdwg.mxu0
        %1783 = vmatpush.bf16.msra.mxu0 0
        %1784 = vmatpush.bf16.msra.mxu0 0
        %1785 = vmatpush.bf16.msra.mxu0 0
        %1786 = vmatpush.bf16.msra.mxu0 0
        %1787 = vmatpush.bf16.msra.mxu0 0
        %1788 = vmatpush.bf16.msra.mxu0 0
        %1789 = vmatpush.bf16.msra.mxu0 %v1076
        %1790 = vmatpush.bf16.msra.mxu0 %v1074
        %1791 = vmatmul.bf16.gmra.mxu0 %v1768
        %v1792 = vpop.f32.mrf.mxu0
        %v1793 = vadd.f32 0.0, %v1792
        %v1794 = vpop.f32.mrf.mxu0
        %1795 = vdwg.mxu0
        %v1796 = vadd.f32 %v1737, %v1780
        %v1797 = vadd.f32 %v1763, %v1793
        %v1798 = vld [vmem:[%s5] sm:$0xff]
        %1800 = vset.pattern.permute.xlu0 0
        %1801 = vperm.xlu0 %1800, %v1798
        %v1802 = vpop.permute.xlu0 %1801
        %v1804 = vadd.f32 %v1796, %v1802
        %v1805 = vadd.f32 %v1797, %v1802
        %v1806 = vtanh.pop %v1804
        %v1807 = vtanh.pop %v1805
        %v1808 = vld [vmem:[%s6] sm:$0xf]
        %v1809 = vld [vmem:[%s6 + $0x4] sm:$0xf]
        %v1810 = vld [vmem:[%s6 + $0x8] sm:$0xf]
        %v1811 = vld [vmem:[%s6 + $0xc] sm:$0xf]
        %v1812 = vld [vmem:[%s6 + $0x10] sm:$0xf]
        %v1813 = vld [vmem:[%s6 + $0x14] sm:$0xf]
        %v1814 = vld [vmem:[%s6 + $0x18] sm:$0xf]
        %v1815 = vld [vmem:[%s6 + $0x1c] sm:$0xf]
        %v1816 = vld [vmem:[%s6 + $0x20] sm:$0xf]
        %v1817 = vld [vmem:[%s6 + $0x24] sm:$0xf]
        %v1818 = vld [vmem:[%s6 + $0x28] sm:$0xf]
        %v1819 = vld [vmem:[%s6 + $0x2c] sm:$0xf]
        %v1820 = vld [vmem:[%s6 + $0x30] sm:$0xf]
        %v1821 = vld [vmem:[%s6 + $0x34] sm:$0xf]
        %v1822 = vld [vmem:[%s6 + $0x38] sm:$0xf]
        %v1823 = vld [vmem:[%s6 + $0x3c] sm:$0xf]
        %v1824 = vld [vmem:[%s6 + $0x40] sm:$0xf]
        %v1825 = vld [vmem:[%s6 + $0x44] sm:$0xf]
        %v1826 = vld [vmem:[%s6 + $0x48] sm:$0xf]
        %v1827 = vld [vmem:[%s6 + $0x4c] sm:$0xf]
        %v1828 = vld [vmem:[%s6 + $0x50] sm:$0xf]
        %v1829 = vld [vmem:[%s6 + $0x54] sm:$0xf]
        %v1830 = vld [vmem:[%s6 + $0x58] sm:$0xf]
        %v1831 = vld [vmem:[%s6 + $0x5c] sm:$0xf]
        %v1832 = vld [vmem:[%s6 + $0x60] sm:$0xf]
        %v1833 = vld [vmem:[%s6 + $0x64] sm:$0xf]
        %v1834 = vld [vmem:[%s6 + $0x68] sm:$0xf]
        %v1835 = vld [vmem:[%s6 + $0x6c] sm:$0xf]
        %v1836 = vld [vmem:[%s6 + $0x70] sm:$0xf]
        %v1837 = vld [vmem:[%s6 + $0x74] sm:$0xf]
        %v1838 = vld [vmem:[%s6 + $0x78] sm:$0xf]
        %v1839 = vld [vmem:[%s6 + $0x7c] sm:$0xf]
        %v1872 = vunpack.c.l.b16 %v1808
        %v1873 = vunpack.c.l.b16 %v1809
        %v1874 = vunpack.c.l.b16 %v1810
        %v1875 = vunpack.c.l.b16 %v1811
        %v1876 = vunpack.c.l.b16 %v1812
        %v1877 = vunpack.c.l.b16 %v1813
        %v1878 = vunpack.c.l.b16 %v1814
        %v1879 = vunpack.c.l.b16 %v1815
        %v1880 = vunpack.c.l.b16 %v1816
        %v1881 = vunpack.c.l.b16 %v1817
        %v1882 = vunpack.c.l.b16 %v1818
        %v1883 = vunpack.c.l.b16 %v1819
        %v1884 = vunpack.c.l.b16 %v1820
        %v1885 = vunpack.c.l.b16 %v1821
        %v1886 = vunpack.c.l.b16 %v1822
        %v1887 = vunpack.c.l.b16 %v1823
        %v1888 = vunpack.c.l.b16 %v1824
        %v1889 = vunpack.c.l.b16 %v1825
        %v1890 = vunpack.c.l.b16 %v1826
        %v1891 = vunpack.c.l.b16 %v1827
        %v1892 = vunpack.c.l.b16 %v1828
        %v1893 = vunpack.c.l.b16 %v1829
        %v1894 = vunpack.c.l.b16 %v1830
        %v1895 = vunpack.c.l.b16 %v1831
        %v1896 = vunpack.c.l.b16 %v1832
        %v1897 = vunpack.c.l.b16 %v1833
        %v1898 = vunpack.c.l.b16 %v1834
        %v1899 = vunpack.c.l.b16 %v1835
        %v1900 = vunpack.c.l.b16 %v1836
        %v1901 = vunpack.c.l.b16 %v1837
        %v1902 = vunpack.c.l.b16 %v1838
        %v1903 = vunpack.c.l.b16 %v1839
        %v1904 = vpack.c.b16 %v1873, %v1872
        %v1905 = vpack.c.b16 %v1875, %v1874
        %v1906 = vpack.c.b16 %v1877, %v1876
        %v1907 = vpack.c.b16 %v1879, %v1878
        %v1908 = vpack.c.b16 %v1881, %v1880
        %v1909 = vpack.c.b16 %v1883, %v1882
        %v1910 = vpack.c.b16 %v1885, %v1884
        %v1911 = vpack.c.b16 %v1887, %v1886
        %v1912 = vpack.c.b16 %v1889, %v1888
        %v1913 = vpack.c.b16 %v1891, %v1890
        %v1914 = vpack.c.b16 %v1893, %v1892
        %v1915 = vpack.c.b16 %v1895, %v1894
        %v1916 = vpack.c.b16 %v1897, %v1896
        %v1917 = vpack.c.b16 %v1899, %v1898
        %v1918 = vpack.c.b16 %v1901, %v1900
        %v1919 = vpack.c.b16 %v1903, %v1902
        %v1921 = vsel %vm1193, %v1904, 0
        %v1924 = vsel %vm1193, %v1905, 0
        %v1927 = vsel %vm1193, %v1906, 0
        %v1930 = vsel %vm1193, %v1907, 0
        %v1933 = vsel %vm1193, %v1908, 0
        %v1936 = vsel %vm1193, %v1909, 0
        %v1939 = vsel %vm1193, %v1910, 0
        %v1942 = vsel %vm1193, %v1911, 0
        %v1945 = vsel %vm1193, %v1912, 0
        %v1948 = vsel %vm1193, %v1913, 0
        %v1951 = vsel %vm1193, %v1914, 0
        %v1954 = vsel %vm1193, %v1915, 0
        %v1957 = vsel %vm1193, %v1916, 0
        %v1960 = vsel %vm1193, %v1917, 0
        %v1963 = vsel %vm1193, %v1918, 0
        %v1966 = vsel %vm1193, %v1919, 0
        %1968 = vmatpush.bf16.msra.mxu0 0
        %1969 = vmatpush.bf16.msra.mxu0 0
        %1970 = vmatpush.bf16.msra.mxu0 0
        %1971 = vmatpush.bf16.msra.mxu0 0
        %1972 = vmatpush.bf16.msra.mxu0 0
        %1973 = vmatpush.bf16.msra.mxu0 0
        %1974 = vmatpush.bf16.msra.mxu0 %v1075
        %1975 = vmatpush.bf16.msra.mxu0 %v1073
        %1976 = vmatmul.bf16.gmra.mxu0 %v1921
        %v1977 = vpop.f32.mrf.mxu0
        %v1978 = vadd.f32 0.0, %v1977
        %v1979 = vpop.f32.mrf.mxu0
        %v1980 = vadd.f32 0.0, %v1979
        %1981 = vmatmul.bf16.gmra.mxu0 %v1924
        %v1982 = vpop.f32.mrf.mxu0
        %v1983 = vadd.f32 0.0, %v1982
        %v1984 = vpop.f32.mrf.mxu0
        %v1985 = vadd.f32 0.0, %v1984
        %1986 = vmatmul.bf16.gmra.mxu0 %v1927
        %v1987 = vpop.f32.mrf.mxu0
        %v1988 = vadd.f32 0.0, %v1987
        %v1989 = vpop.f32.mrf.mxu0
        %v1990 = vadd.f32 0.0, %v1989
        %1991 = vmatmul.bf16.gmra.mxu0 %v1930
        %v1992 = vpop.f32.mrf.mxu0
        %v1993 = vadd.f32 0.0, %v1992
        %v1994 = vpop.f32.mrf.mxu0
        %v1995 = vadd.f32 0.0, %v1994
        %1996 = vmatmul.bf16.gmra.mxu0 %v1933
        %v1997 = vpop.f32.mrf.mxu0
        %v1998 = vadd.f32 0.0, %v1997
        %v1999 = vpop.f32.mrf.mxu0
        %v2000 = vadd.f32 0.0, %v1999
        %2001 = vmatmul.bf16.gmra.mxu0 %v1936
        %v2002 = vpop.f32.mrf.mxu0
        %v2003 = vadd.f32 0.0, %v2002
        %v2004 = vpop.f32.mrf.mxu0
        %v2005 = vadd.f32 0.0, %v2004
        %2006 = vmatmul.bf16.gmra.mxu0 %v1939
        %v2007 = vpop.f32.mrf.mxu0
        %v2008 = vadd.f32 0.0, %v2007
        %v2009 = vpop.f32.mrf.mxu0
        %v2010 = vadd.f32 0.0, %v2009
        %2011 = vmatmul.bf16.gmra.mxu0 %v1942
        %v2012 = vpop.f32.mrf.mxu0
        %v2013 = vadd.f32 0.0, %v2012
        %v2014 = vpop.f32.mrf.mxu0
        %v2015 = vadd.f32 0.0, %v2014
        %2016 = vmatmul.bf16.gmra.mxu0 %v1945
        %v2017 = vpop.f32.mrf.mxu0
        %v2018 = vadd.f32 0.0, %v2017
        %v2019 = vpop.f32.mrf.mxu0
        %v2020 = vadd.f32 0.0, %v2019
        %2021 = vmatmul.bf16.gmra.mxu0 %v1948
        %v2022 = vpop.f32.mrf.mxu0
        %v2023 = vadd.f32 0.0, %v2022
        %v2024 = vpop.f32.mrf.mxu0
        %v2025 = vadd.f32 0.0, %v2024
        %2026 = vmatmul.bf16.gmra.mxu0 %v1951
        %v2027 = vpop.f32.mrf.mxu0
        %v2028 = vadd.f32 0.0, %v2027
        %v2029 = vpop.f32.mrf.mxu0
        %v2030 = vadd.f32 0.0, %v2029
        %2031 = vmatmul.bf16.gmra.mxu0 %v1954
        %v2032 = vpop.f32.mrf.mxu0
        %v2033 = vadd.f32 0.0, %v2032
        %v2034 = vpop.f32.mrf.mxu0
        %v2035 = vadd.f32 0.0, %v2034
        %2036 = vmatmul.bf16.gmra.mxu0 %v1957
        %v2037 = vpop.f32.mrf.mxu0
        %v2038 = vadd.f32 0.0, %v2037
        %v2039 = vpop.f32.mrf.mxu0
        %v2040 = vadd.f32 0.0, %v2039
        %2041 = vmatmul.bf16.gmra.mxu0 %v1960
        %v2042 = vpop.f32.mrf.mxu0
        %v2043 = vadd.f32 0.0, %v2042
        %v2044 = vpop.f32.mrf.mxu0
        %v2045 = vadd.f32 0.0, %v2044
        %2046 = vmatmul.bf16.gmra.mxu0 %v1963
        %v2047 = vpop.f32.mrf.mxu0
        %v2048 = vadd.f32 0.0, %v2047
        %v2049 = vpop.f32.mrf.mxu0
        %v2050 = vadd.f32 0.0, %v2049
        %2051 = vmatmul.bf16.gmra.mxu0 %v1966
        %v2052 = vpop.f32.mrf.mxu0
        %v2053 = vadd.f32 0.0, %v2052
        %v2054 = vpop.f32.mrf.mxu0
        %v2055 = vadd.f32 0.0, %v2054
        %2056 = vdwg.mxu0
        %2057 = vmatpush.bf16.msra.mxu0 0
        %2058 = vmatpush.bf16.msra.mxu0 0
        %2059 = vmatpush.bf16.msra.mxu0 0
        %2060 = vmatpush.bf16.msra.mxu0 0
        %2061 = vmatpush.bf16.msra.mxu0 0
        %2062 = vmatpush.bf16.msra.mxu0 0
        %2063 = vmatpush.bf16.msra.mxu0 %v1076
        %2064 = vmatpush.bf16.msra.mxu0 %v1074
        %2065 = vmatmul.bf16.gmra.mxu0 %v1921
        %v2066 = vpop.f32.mrf.mxu0
        %v2067 = vadd.f32 0.0, %v2066
        %v2068 = vpop.f32.mrf.mxu0
        %v2069 = vadd.f32 0.0, %v2068
        %2070 = vmatmul.bf16.gmra.mxu0 %v1924
        %v2071 = vpop.f32.mrf.mxu0
        %v2072 = vadd.f32 0.0, %v2071
        %v2073 = vpop.f32.mrf.mxu0
        %v2074 = vadd.f32 0.0, %v2073
        %2075 = vmatmul.bf16.gmra.mxu0 %v1927
        %v2076 = vpop.f32.mrf.mxu0
        %v2077 = vadd.f32 0.0, %v2076
        %v2078 = vpop.f32.mrf.mxu0
        %v2079 = vadd.f32 0.0, %v2078
        %2080 = vmatmul.bf16.gmra.mxu0 %v1930
        %v2081 = vpop.f32.mrf.mxu0
        %v2082 = vadd.f32 0.0, %v2081
        %v2083 = vpop.f32.mrf.mxu0
        %v2084 = vadd.f32 0.0, %v2083
        %2085 = vmatmul.bf16.gmra.mxu0 %v1933
        %v2086 = vpop.f32.mrf.mxu0
        %v2087 = vadd.f32 0.0, %v2086
        %v2088 = vpop.f32.mrf.mxu0
        %v2089 = vadd.f32 0.0, %v2088
        %2090 = vmatmul.bf16.gmra.mxu0 %v1936
        %v2091 = vpop.f32.mrf.mxu0
        %v2092 = vadd.f32 0.0, %v2091
        %v2093 = vpop.f32.mrf.mxu0
        %v2094 = vadd.f32 0.0, %v2093
        %2095 = vmatmul.bf16.gmra.mxu0 %v1939
        %v2096 = vpop.f32.mrf.mxu0
        %v2097 = vadd.f32 0.0, %v2096
        %v2098 = vpop.f32.mrf.mxu0
        %v2099 = vadd.f32 0.0, %v2098
        %2100 = vmatmul.bf16.gmra.mxu0 %v1942
        %v2101 = vpop.f32.mrf.mxu0
        %v2102 = vadd.f32 0.0, %v2101
        %v2103 = vpop.f32.mrf.mxu0
        %v2104 = vadd.f32 0.0, %v2103
        %2105 = vmatmul.bf16.gmra.mxu0 %v1945
        %v2106 = vpop.f32.mrf.mxu0
        %v2107 = vadd.f32 0.0, %v2106
        %v2108 = vpop.f32.mrf.mxu0
        %v2109 = vadd.f32 0.0, %v2108
        %2110 = vmatmul.bf16.gmra.mxu0 %v1948
        %v2111 = vpop.f32.mrf.mxu0
        %v2112 = vadd.f32 0.0, %v2111
        %v2113 = vpop.f32.mrf.mxu0
        %v2114 = vadd.f32 0.0, %v2113
        %2115 = vmatmul.bf16.gmra.mxu0 %v1951
        %v2116 = vpop.f32.mrf.mxu0
        %v2117 = vadd.f32 0.0, %v2116
        %v2118 = vpop.f32.mrf.mxu0
        %v2119 = vadd.f32 0.0, %v2118
        %2120 = vmatmul.bf16.gmra.mxu0 %v1954
        %v2121 = vpop.f32.mrf.mxu0
        %v2122 = vadd.f32 0.0, %v2121
        %v2123 = vpop.f32.mrf.mxu0
        %v2124 = vadd.f32 0.0, %v2123
        %2125 = vmatmul.bf16.gmra.mxu0 %v1957
        %v2126 = vpop.f32.mrf.mxu0
        %v2127 = vadd.f32 0.0, %v2126
        %v2128 = vpop.f32.mrf.mxu0
        %v2129 = vadd.f32 0.0, %v2128
        %2130 = vmatmul.bf16.gmra.mxu0 %v1960
        %v2131 = vpop.f32.mrf.mxu0
        %v2132 = vadd.f32 0.0, %v2131
        %v2133 = vpop.f32.mrf.mxu0
        %v2134 = vadd.f32 0.0, %v2133
        %2135 = vmatmul.bf16.gmra.mxu0 %v1963
        %v2136 = vpop.f32.mrf.mxu0
        %v2137 = vadd.f32 0.0, %v2136
        %v2138 = vpop.f32.mrf.mxu0
        %v2139 = vadd.f32 0.0, %v2138
        %2140 = vmatmul.bf16.gmra.mxu0 %v1966
        %v2141 = vpop.f32.mrf.mxu0
        %v2142 = vadd.f32 0.0, %v2141
        %v2143 = vpop.f32.mrf.mxu0
        %v2144 = vadd.f32 0.0, %v2143
        %2145 = vdwg.mxu0
        %v2146 = vmul.f32 %v1978, %v1021
        %v2147 = vmul.f32 %v2067, %v1053
        %v2148 = vmul.f32 %v1980, %v1022
        %v2149 = vmul.f32 %v2069, %v1054
        %v2150 = vmul.f32 %v1983, %v1023
        %v2151 = vmul.f32 %v2072, %v1055
        %v2152 = vmul.f32 %v1985, %v1024
        %v2153 = vmul.f32 %v2074, %v1056
        %v2154 = vpack.c.bf16 %v2147, %v2146
        %v2155 = vpack.c.bf16 %v2149, %v2148
        %v2156 = vpack.c.bf16 %v2151, %v2150
        %v2157 = vpack.c.bf16 %v2153, %v2152
        %v2158 = vmul.f32 %v1988, %v1021
        %v2159 = vmul.f32 %v2077, %v1053
        %v2160 = vmul.f32 %v1990, %v1022
        %v2161 = vmul.f32 %v2079, %v1054
        %v2162 = vmul.f32 %v1993, %v1023
        %v2163 = vmul.f32 %v2082, %v1055
        %v2164 = vmul.f32 %v1995, %v1024
        %v2165 = vmul.f32 %v2084, %v1056
        %v2166 = vpack.c.bf16 %v2159, %v2158
        %v2167 = vpack.c.bf16 %v2161, %v2160
        %v2168 = vpack.c.bf16 %v2163, %v2162
        %v2169 = vpack.c.bf16 %v2165, %v2164
        %v2170 = vmul.f32 %v1998, %v1021
        %v2171 = vmul.f32 %v2087, %v1053
        %v2172 = vmul.f32 %v2000, %v1022
        %v2173 = vmul.f32 %v2089, %v1054
        %v2174 = vmul.f32 %v2003, %v1023
        %v2175 = vmul.f32 %v2092, %v1055
        %v2176 = vmul.f32 %v2005, %v1024
        %v2177 = vmul.f32 %v2094, %v1056
        %v2178 = vpack.c.bf16 %v2171, %v2170
        %v2179 = vpack.c.bf16 %v2173, %v2172
        %v2180 = vpack.c.bf16 %v2175, %v2174
        %v2181 = vpack.c.bf16 %v2177, %v2176
        %v2182 = vmul.f32 %v2008, %v1021
        %v2183 = vmul.f32 %v2097, %v1053
        %v2184 = vmul.f32 %v2010, %v1022
        %v2185 = vmul.f32 %v2099, %v1054
        %v2186 = vmul.f32 %v2013, %v1023
        %v2187 = vmul.f32 %v2102, %v1055
        %v2188 = vmul.f32 %v2015, %v1024
        %v2189 = vmul.f32 %v2104, %v1056
        %v2190 = vpack.c.bf16 %v2183, %v2182
        %v2191 = vpack.c.bf16 %v2185, %v2184
        %v2192 = vpack.c.bf16 %v2187, %v2186
        %v2193 = vpack.c.bf16 %v2189, %v2188
        %v2194 = vmul.f32 %v2018, %v1021
        %v2195 = vmul.f32 %v2107, %v1053
        %v2196 = vmul.f32 %v2020, %v1022
        %v2197 = vmul.f32 %v2109, %v1054
        %v2198 = vmul.f32 %v2023, %v1023
        %v2199 = vmul.f32 %v2112, %v1055
        %v2200 = vmul.f32 %v2025, %v1024
        %v2201 = vmul.f32 %v2114, %v1056
        %v2202 = vpack.c.bf16 %v2195, %v2194
        %v2203 = vpack.c.bf16 %v2197, %v2196
        %v2204 = vpack.c.bf16 %v2199, %v2198
        %v2205 = vpack.c.bf16 %v2201, %v2200
        %v2206 = vmul.f32 %v2028, %v1021
        %v2207 = vmul.f32 %v2117, %v1053
        %v2208 = vmul.f32 %v2030, %v1022
        %v2209 = vmul.f32 %v2119, %v1054
        %v2210 = vmul.f32 %v2033, %v1023
        %v2211 = vmul.f32 %v2122, %v1055
        %v2212 = vmul.f32 %v2035, %v1024
        %v2213 = vmul.f32 %v2124, %v1056
        %v2214 = vpack.c.bf16 %v2207, %v2206
        %v2215 = vpack.c.bf16 %v2209, %v2208
        %v2216 = vpack.c.bf16 %v2211, %v2210
        %v2217 = vpack.c.bf16 %v2213, %v2212
        %v2218 = vmul.f32 %v2038, %v1021
        %v2219 = vmul.f32 %v2127, %v1053
        %v2220 = vmul.f32 %v2040, %v1022
        %v2221 = vmul.f32 %v2129, %v1054
        %v2222 = vmul.f32 %v2043, %v1023
        %v2223 = vmul.f32 %v2132, %v1055
        %v2224 = vmul.f32 %v2045, %v1024
        %v2225 = vmul.f32 %v2134, %v1056
        %v2226 = vpack.c.bf16 %v2219, %v2218
        %v2227 = vpack.c.bf16 %v2221, %v2220
        %v2228 = vpack.c.bf16 %v2223, %v2222
        %v2229 = vpack.c.bf16 %v2225, %v2224
        %v2230 = vmul.f32 %v2048, %v1021
        %v2231 = vmul.f32 %v2137, %v1053
        %v2232 = vmul.f32 %v2050, %v1022
        %v2233 = vmul.f32 %v2139, %v1054
        %v2234 = vmul.f32 %v2053, %v1023
        %v2235 = vmul.f32 %v2142, %v1055
        %v2236 = vmul.f32 %v2055, %v1024
        %v2237 = vmul.f32 %v2144, %v1056
        %v2238 = vpack.c.bf16 %v2231, %v2230
        %v2239 = vpack.c.bf16 %v2233, %v2232
        %v2240 = vpack.c.bf16 %v2235, %v2234
        %v2241 = vpack.c.bf16 %v2237, %v2236
        %v2246 = vunpack.c.l.b16 %v2154
        %v2247 = vunpack.c.h.b16 %v2154
        %v2248 = vunpack.c.l.b16 %v2155
        %v2249 = vunpack.c.h.b16 %v2155
        %v2250 = vunpack.c.l.b16 %v2156
        %v2251 = vunpack.c.h.b16 %v2156
        %v2252 = vunpack.c.l.b16 %v2157
        %v2253 = vunpack.c.h.b16 %v2157
        %v2254 = vpack.c.b16 %v2248, %v2246
        %v2255 = vpack.c.b16 %v2249, %v2247
        %v2256 = vpack.c.b16 %v2252, %v2250
        %v2257 = vpack.c.b16 %v2253, %v2251
        %v2266 = vunpack.c.l.b16 %v2166
        %v2267 = vunpack.c.h.b16 %v2166
        %v2268 = vunpack.c.l.b16 %v2167
        %v2269 = vunpack.c.h.b16 %v2167
        %v2270 = vunpack.c.l.b16 %v2168
        %v2271 = vunpack.c.h.b16 %v2168
        %v2272 = vunpack.c.l.b16 %v2169
        %v2273 = vunpack.c.h.b16 %v2169
        %v2274 = vpack.c.b16 %v2268, %v2266
        %v2275 = vpack.c.b16 %v2269, %v2267
        %v2276 = vpack.c.b16 %v2272, %v2270
        %v2277 = vpack.c.b16 %v2273, %v2271
        %v2286 = vunpack.c.l.b16 %v2178
        %v2287 = vunpack.c.h.b16 %v2178
        %v2288 = vunpack.c.l.b16 %v2179
        %v2289 = vunpack.c.h.b16 %v2179
        %v2290 = vunpack.c.l.b16 %v2180
        %v2291 = vunpack.c.h.b16 %v2180
        %v2292 = vunpack.c.l.b16 %v2181
        %v2293 = vunpack.c.h.b16 %v2181
        %v2294 = vpack.c.b16 %v2288, %v2286
        %v2295 = vpack.c.b16 %v2289, %v2287
        %v2296 = vpack.c.b16 %v2292, %v2290
        %v2297 = vpack.c.b16 %v2293, %v2291
        %v2306 = vunpack.c.l.b16 %v2190
        %v2307 = vunpack.c.h.b16 %v2190
        %v2308 = vunpack.c.l.b16 %v2191
        %v2309 = vunpack.c.h.b16 %v2191
        %v2310 = vunpack.c.l.b16 %v2192
        %v2311 = vunpack.c.h.b16 %v2192
        %v2312 = vunpack.c.l.b16 %v2193
        %v2313 = vunpack.c.h.b16 %v2193
        %v2314 = vpack.c.b16 %v2308, %v2306
        %v2315 = vpack.c.b16 %v2309, %v2307
        %v2316 = vpack.c.b16 %v2312, %v2310
        %v2317 = vpack.c.b16 %v2313, %v2311
        %v2326 = vunpack.c.l.b16 %v2202
        %v2327 = vunpack.c.h.b16 %v2202
        %v2328 = vunpack.c.l.b16 %v2203
        %v2329 = vunpack.c.h.b16 %v2203
        %v2330 = vunpack.c.l.b16 %v2204
        %v2331 = vunpack.c.h.b16 %v2204
        %v2332 = vunpack.c.l.b16 %v2205
        %v2333 = vunpack.c.h.b16 %v2205
        %v2334 = vpack.c.b16 %v2328, %v2326
        %v2335 = vpack.c.b16 %v2329, %v2327
        %v2336 = vpack.c.b16 %v2332, %v2330
        %v2337 = vpack.c.b16 %v2333, %v2331
        %v2346 = vunpack.c.l.b16 %v2214
        %v2347 = vunpack.c.h.b16 %v2214
        %v2348 = vunpack.c.l.b16 %v2215
        %v2349 = vunpack.c.h.b16 %v2215
        %v2350 = vunpack.c.l.b16 %v2216
        %v2351 = vunpack.c.h.b16 %v2216
        %v2352 = vunpack.c.l.b16 %v2217
        %v2353 = vunpack.c.h.b16 %v2217
        %v2354 = vpack.c.b16 %v2348, %v2346
        %v2355 = vpack.c.b16 %v2349, %v2347
        %v2356 = vpack.c.b16 %v2352, %v2350
        %v2357 = vpack.c.b16 %v2353, %v2351
        %v2366 = vunpack.c.l.b16 %v2226
        %v2367 = vunpack.c.h.b16 %v2226
        %v2368 = vunpack.c.l.b16 %v2227
        %v2369 = vunpack.c.h.b16 %v2227
        %v2370 = vunpack.c.l.b16 %v2228
        %v2371 = vunpack.c.h.b16 %v2228
        %v2372 = vunpack.c.l.b16 %v2229
        %v2373 = vunpack.c.h.b16 %v2229
        %v2374 = vpack.c.b16 %v2368, %v2366
        %v2375 = vpack.c.b16 %v2369, %v2367
        %v2376 = vpack.c.b16 %v2372, %v2370
        %v2377 = vpack.c.b16 %v2373, %v2371
        %v2386 = vunpack.c.l.b16 %v2238
        %v2387 = vunpack.c.h.b16 %v2238
        %v2388 = vunpack.c.l.b16 %v2239
        %v2389 = vunpack.c.h.b16 %v2239
        %v2390 = vunpack.c.l.b16 %v2240
        %v2391 = vunpack.c.h.b16 %v2240
        %v2392 = vunpack.c.l.b16 %v2241
        %v2393 = vunpack.c.h.b16 %v2241
        %v2394 = vpack.c.b16 %v2388, %v2386
        %v2395 = vpack.c.b16 %v2389, %v2387
        %v2396 = vpack.c.b16 %v2392, %v2390
        %v2397 = vpack.c.b16 %v2393, %v2391
        %v2402 = vld [vmem:[%s7] sm:$0xff]
        %v2403 = vld [vmem:[%s8] sm:$0xf]
        %v2405 = vsel %vm1193, %v2403, 0
        %2407 = vmatpush.bf16.msra.mxu0 0
        %2408 = vmatpush.bf16.msra.mxu0 0
        %2409 = vmatpush.bf16.msra.mxu0 0
        %2410 = vmatpush.bf16.msra.mxu0 0
        %2411 = vmatpush.bf16.msra.mxu0 0
        %2412 = vmatpush.bf16.msra.mxu0 0
        %2413 = vmatpush.bf16.msra.mxu0 %v1075
        %2414 = vmatpush.bf16.msra.mxu0 %v1073
        %2415 = vmatmul.bf16.gmra.mxu0 %v2405
        %v2416 = vpop.f32.mrf.mxu0
        %v2417 = vadd.f32 0.0, %v2416
        %v2418 = vpop.f32.mrf.mxu0
        %2419 = vdwg.mxu0
        %2420 = vmatpush.bf16.msra.mxu0 0
        %2421 = vmatpush.bf16.msra.mxu0 0
        %2422 = vmatpush.bf16.msra.mxu0 0
        %2423 = vmatpush.bf16.msra.mxu0 0
        %2424 = vmatpush.bf16.msra.mxu0 0
        %2425 = vmatpush.bf16.msra.mxu0 0
        %2426 = vmatpush.bf16.msra.mxu0 %v1076
        %2427 = vmatpush.bf16.msra.mxu0 %v1074
        %2428 = vmatmul.bf16.gmra.mxu0 %v2405
        %v2429 = vpop.f32.mrf.mxu0
        %v2430 = vadd.f32 0.0, %v2429
        %v2431 = vpop.f32.mrf.mxu0
        %2432 = vdwg.mxu0
        %v2434 = vunpack.c.l.b16 %v2402
        %v2435 = vunpack.c.h.b16 %v2402
        %v2436 = vpack.c.b16 %v2434, %v2434
        %v2437 = vpack.c.b16 %v2435, %v2435
        %2440 = vmatpush.bf16.msra.mxu0 %v2316
        %2441 = vmatpush.bf16.msra.mxu0 %v2314
        %2442 = vmatpush.bf16.msra.mxu0 %v2296
        %2443 = vmatpush.bf16.msra.mxu0 %v2294
        %2444 = vmatpush.bf16.msra.mxu0 %v2276
        %2445 = vmatpush.bf16.msra.mxu0 %v2274
        %2446 = vmatpush.bf16.msra.mxu0 %v2256
        %2447 = vmatpush.bf16.msra.mxu0 %v2254
        %2448 = vmatmul.bf16.gmra.mxu0 %v2436
        %v2449 = vpop.f32.mrf.mxu0
        %v2450 = vadd.f32 %v2417, %v2449
        %v2451 = vpop.f32.mrf.mxu0
        %2452 = vdwg.mxu0
        %2453 = vmatpush.bf16.msra.mxu0 %v2396
        %2454 = vmatpush.bf16.msra.mxu0 %v2394
        %2455 = vmatpush.bf16.msra.mxu0 %v2376
        %2456 = vmatpush.bf16.msra.mxu0 %v2374
        %2457 = vmatpush.bf16.msra.mxu0 %v2356
        %2458 = vmatpush.bf16.msra.mxu0 %v2354
        %2459 = vmatpush.bf16.msra.mxu0 %v2336
        %2460 = vmatpush.bf16.msra.mxu0 %v2334
        %2461 = vmatmul.bf16.gmra.mxu0 %v2437
        %v2462 = vpop.f32.mrf.mxu0
        %v2463 = vadd.f32 %v2450, %v2462
        %v2464 = vpop.f32.mrf.mxu0
        %2465 = vdwg.mxu0
        %2466 = vmatpush.bf16.msra.mxu0 %v2317
        %2467 = vmatpush.bf16.msra.mxu0 %v2315
        %2468 = vmatpush.bf16.msra.mxu0 %v2297
        %2469 = vmatpush.bf16.msra.mxu0 %v2295
        %2470 = vmatpush.bf16.msra.mxu0 %v2277
        %2471 = vmatpush.bf16.msra.mxu0 %v2275
        %2472 = vmatpush.bf16.msra.mxu0 %v2257
        %2473 = vmatpush.bf16.msra.mxu0 %v2255
        %2474 = vmatmul.bf16.gmra.mxu0 %v2436
        %v2475 = vpop.f32.mrf.mxu0
        %v2476 = vadd.f32 %v2430, %v2475
        %v2477 = vpop.f32.mrf.mxu0
        %2478 = vdwg.mxu0
        %2479 = vmatpush.bf16.msra.mxu0 %v2397
        %2480 = vmatpush.bf16.msra.mxu0 %v2395
        %2481 = vmatpush.bf16.msra.mxu0 %v2377
        %2482 = vmatpush.bf16.msra.mxu0 %v2375
        %2483 = vmatpush.bf16.msra.mxu0 %v2357
        %2484 = vmatpush.bf16.msra.mxu0 %v2355
        %2485 = vmatpush.bf16.msra.mxu0 %v2337
        %2486 = vmatpush.bf16.msra.mxu0 %v2335
        %2487 = vmatmul.bf16.gmra.mxu0 %v2437
        %v2488 = vpop.f32.mrf.mxu0
        %v2489 = vadd.f32 %v2476, %v2488
        %v2490 = vpop.f32.mrf.mxu0
        %2491 = vdwg.mxu0
        %v2492 = vld [vmem:[%s9] sm:$0xf]
        %v2494 = vsel %vm1193, %v2492, 0
        %2496 = vmatpush.bf16.msra.mxu0 0
        %2497 = vmatpush.bf16.msra.mxu0 0
        %2498 = vmatpush.bf16.msra.mxu0 0
        %2499 = vmatpush.bf16.msra.mxu0 0
        %2500 = vmatpush.bf16.msra.mxu0 0
        %2501 = vmatpush.bf16.msra.mxu0 0
        %2502 = vmatpush.bf16.msra.mxu0 %v1079
        %2503 = vmatpush.bf16.msra.mxu0 %v1077
        %2504 = vmatmul.bf16.gmra.mxu0 %v2494
        %v2505 = vpop.f32.mrf.mxu0
        %v2506 = vadd.f32 0.0, %v2505
        %v2507 = vpop.f32.mrf.mxu0
        %2508 = vdwg.mxu0
        %2509 = vmatpush.bf16.msra.mxu0 0
        %2510 = vmatpush.bf16.msra.mxu0 0
        %2511 = vmatpush.bf16.msra.mxu0 0
        %2512 = vmatpush.bf16.msra.mxu0 0
        %2513 = vmatpush.bf16.msra.mxu0 0
        %2514 = vmatpush.bf16.msra.mxu0 0
        %2515 = vmatpush.bf16.msra.mxu0 %v1080
        %2516 = vmatpush.bf16.msra.mxu0 %v1078
        %2517 = vmatmul.bf16.gmra.mxu0 %v2494
        %v2518 = vpop.f32.mrf.mxu0
        %v2519 = vadd.f32 0.0, %v2518
        %v2520 = vpop.f32.mrf.mxu0
        %2521 = vdwg.mxu0
        %v2522 = vadd.f32 %v2463, %v2506
        %v2523 = vadd.f32 %v2489, %v2519
        %v2524 = vld [vmem:[%s10] sm:$0xff]
        %2526 = vset.pattern.permute.xlu0 0
        %2527 = vperm.xlu0 %2526, %v2524
        %v2528 = vpop.permute.xlu0 %2527
        %v2530 = vadd.f32 %v2522, %v2528
        %v2531 = vadd.f32 %v2523, %v2528
        %v2532 = vtanh.pop %v2530
        %v2533 = vtanh.pop %v2531
        %v2534 = vpack.c.bf16 %v1806, %v1806
        %v2535 = vpack.c.bf16 %v1807, %v1807
        %v2536 = vpack.c.bf16 %v2532, %v2532
        %v2537 = vpack.c.bf16 %v2533, %v2533
        %v2538 = vld [vmem:[%s11] sm:$0xf]
        %v2539 = vld [vmem:[%s11 + $0x4] sm:$0xf]
        %v2540 = vld [vmem:[%s11 + $0x8] sm:$0xf]
        %v2541 = vld [vmem:[%s11 + $0xc] sm:$0xf]
        %v2542 = vld [vmem:[%s11 + $0x10] sm:$0xf]
        %v2543 = vld [vmem:[%s11 + $0x14] sm:$0xf]
        %v2544 = vld [vmem:[%s11 + $0x18] sm:$0xf]
        %v2545 = vld [vmem:[%s11 + $0x1c] sm:$0xf]
        %v2554 = vunpack.c.l.b16 %v2538
        %v2555 = vunpack.c.l.b16 %v2539
        %v2556 = vunpack.c.l.b16 %v2540
        %v2557 = vunpack.c.l.b16 %v2541
        %v2558 = vunpack.c.l.b16 %v2542
        %v2559 = vunpack.c.l.b16 %v2543
        %v2560 = vunpack.c.l.b16 %v2544
        %v2561 = vunpack.c.l.b16 %v2545
        %v2562 = vpack.c.b16 %v2555, %v2554
        %v2563 = vpack.c.b16 %v2557, %v2556
        %v2564 = vpack.c.b16 %v2559, %v2558
        %v2565 = vpack.c.b16 %v2561, %v2560
        %vm2566 = vcmask 64512
        %v2568 = vsel %vm2566, %v2562, 0
        %v2571 = vsel %vm2566, %v2563, 0
        %v2574 = vsel %vm2566, %v2564, 0
        %v2577 = vsel %vm2566, %v2565, 0
        %vm2579 = vcmask 1043456
        %v2581 = vsel %vm2579, %v2534, 0
        %v2584 = vsel %vm2579, %v2535, 0
        %2586 = vmatpush.bf16.msra.mxu0 0
        %2587 = vmatpush.bf16.msra.mxu0 0
        %2588 = vmatpush.bf16.msra.mxu0 0
        %2589 = vmatpush.bf16.msra.mxu0 0
        %2590 = vmatpush.bf16.msra.mxu0 0
        %2591 = vmatpush.bf16.msra.mxu0 0
        %2592 = vmatpush.bf16.msra.mxu0 0
        %2593 = vmatpush.bf16.msra.mxu0 %v2581
        %2594 = vmatmul.bf16.gmra.mxu0 %v2568
        %v2595 = vpop.f32.mrf.mxu0
        %v2596 = vadd.f32 0.0, %v2595
        %v2597 = vpop.f32.mrf.mxu0
        %v2598 = vadd.f32 0.0, %v2597
        %2599 = vmatmul.bf16.gmra.mxu0 %v2571
        %v2600 = vpop.f32.mrf.mxu0
        %v2601 = vadd.f32 0.0, %v2600
        %v2602 = vpop.f32.mrf.mxu0
        %v2603 = vadd.f32 0.0, %v2602
        %2604 = vmatmul.bf16.gmra.mxu0 %v2574
        %v2605 = vpop.f32.mrf.mxu0
        %v2606 = vadd.f32 0.0, %v2605
        %v2607 = vpop.f32.mrf.mxu0
        %v2608 = vadd.f32 0.0, %v2607
        %2609 = vmatmul.bf16.gmra.mxu0 %v2577
        %v2610 = vpop.f32.mrf.mxu0
        %v2611 = vadd.f32 0.0, %v2610
        %v2612 = vpop.f32.mrf.mxu0
        %v2613 = vadd.f32 0.0, %v2612
        %2614 = vdwg.mxu0
        %2615 = vmatpush.bf16.msra.mxu0 0
        %2616 = vmatpush.bf16.msra.mxu0 0
        %2617 = vmatpush.bf16.msra.mxu0 0
        %2618 = vmatpush.bf16.msra.mxu0 0
        %2619 = vmatpush.bf16.msra.mxu0 0
        %2620 = vmatpush.bf16.msra.mxu0 0
        %2621 = vmatpush.bf16.msra.mxu0 0
        %2622 = vmatpush.bf16.msra.mxu0 %v2584
        %2623 = vmatmul.bf16.gmra.mxu0 %v2568
        %v2624 = vpop.f32.mrf.mxu0
        %v2625 = vadd.f32 0.0, %v2624
        %v2626 = vpop.f32.mrf.mxu0
        %v2627 = vadd.f32 0.0, %v2626
        %2628 = vmatmul.bf16.gmra.mxu0 %v2571
        %v2629 = vpop.f32.mrf.mxu0
        %v2630 = vadd.f32 0.0, %v2629
        %v2631 = vpop.f32.mrf.mxu0
        %v2632 = vadd.f32 0.0, %v2631
        %2633 = vmatmul.bf16.gmra.mxu0 %v2574
        %v2634 = vpop.f32.mrf.mxu0
        %v2635 = vadd.f32 0.0, %v2634
        %v2636 = vpop.f32.mrf.mxu0
        %v2637 = vadd.f32 0.0, %v2636
        %2638 = vmatmul.bf16.gmra.mxu0 %v2577
        %v2639 = vpop.f32.mrf.mxu0
        %v2640 = vadd.f32 0.0, %v2639
        %v2641 = vpop.f32.mrf.mxu0
        %v2642 = vadd.f32 0.0, %v2641
        %2643 = vdwg.mxu0
        %v2644 = vmul.f32 %v2596, %v2532
        %v2645 = vmul.f32 %v2625, %v2533
        %v2646 = vpack.c.bf16 %v2645, %v2644
        %v2647 = vmul.f32 %v2598, %v2532
        %v2648 = vmul.f32 %v2627, %v2533
        %v2649 = vpack.c.bf16 %v2648, %v2647
        %v2650 = vmul.f32 %v2601, %v2532
        %v2651 = vmul.f32 %v2630, %v2533
        %v2652 = vpack.c.bf16 %v2651, %v2650
        %v2653 = vmul.f32 %v2603, %v2532
        %v2654 = vmul.f32 %v2632, %v2533
        %v2655 = vpack.c.bf16 %v2654, %v2653
        %v2656 = vmul.f32 %v2606, %v2532
        %v2657 = vmul.f32 %v2635, %v2533
        %v2658 = vpack.c.bf16 %v2657, %v2656
        %v2659 = vmul.f32 %v2608, %v2532
        %v2660 = vmul.f32 %v2637, %v2533
        %v2661 = vpack.c.bf16 %v2660, %v2659
        %v2662 = vmul.f32 %v2611, %v2532
        %v2663 = vmul.f32 %v2640, %v2533
        %v2664 = vpack.c.bf16 %v2663, %v2662
        %v2665 = vmul.f32 %v2613, %v2532
        %v2666 = vmul.f32 %v2642, %v2533
        %v2667 = vpack.c.bf16 %v2666, %v2665
        %v2669 = vunpack.c.l.b16 %v2646
        %v2670 = vunpack.c.h.b16 %v2646
        %v2671 = vpack.c.b16 %v2669, %v2669
        %v2672 = vpack.c.b16 %v2670, %v2670
        %v2674 = vunpack.c.l.b16 %v2649
        %v2675 = vunpack.c.h.b16 %v2649
        %v2676 = vpack.c.b16 %v2674, %v2674
        %v2677 = vpack.c.b16 %v2675, %v2675
        %v2679 = vunpack.c.l.b16 %v2652
        %v2680 = vunpack.c.h.b16 %v2652
        %v2681 = vpack.c.b16 %v2679, %v2679
        %v2682 = vpack.c.b16 %v2680, %v2680
        %v2684 = vunpack.c.l.b16 %v2655
        %v2685 = vunpack.c.h.b16 %v2655
        %v2686 = vpack.c.b16 %v2684, %v2684
        %v2687 = vpack.c.b16 %v2685, %v2685
        %v2689 = vunpack.c.l.b16 %v2658
        %v2690 = vunpack.c.h.b16 %v2658
        %v2691 = vpack.c.b16 %v2689, %v2689
        %v2692 = vpack.c.b16 %v2690, %v2690
        %v2694 = vunpack.c.l.b16 %v2661
        %v2695 = vunpack.c.h.b16 %v2661
        %v2696 = vpack.c.b16 %v2694, %v2694
        %v2697 = vpack.c.b16 %v2695, %v2695
        %v2699 = vunpack.c.l.b16 %v2664
        %v2700 = vunpack.c.h.b16 %v2664
        %v2701 = vpack.c.b16 %v2699, %v2699
        %v2702 = vpack.c.b16 %v2700, %v2700
        %v2704 = vunpack.c.l.b16 %v2667
        %v2705 = vunpack.c.h.b16 %v2667
        %v2706 = vpack.c.b16 %v2704, %v2704
        %v2707 = vpack.c.b16 %v2705, %v2705
        %v2710 = vsel %vm2579, %v2671, %v2676
        %v2714 = vsel %vm2579, %v2672, %v2677
        %v2718 = vsel %vm2579, %v2681, %v2686
        %v2722 = vsel %vm2579, %v2682, %v2687
        %v2726 = vsel %vm2579, %v2691, %v2696
        %v2730 = vsel %vm2579, %v2692, %v2697
        %v2734 = vsel %vm2579, %v2701, %v2706
        %v2738 = vsel %vm2579, %v2702, %v2707
        %v2740 = vld [vmem:[%s12] sm:$0xf]
        %v2741 = vld [vmem:[%s13] sm:$0xf]
        %v2743 = vsel %vm2566, %v2741, 0
        %2745 = vmatpush.bf16.msra.mxu0 0
        %2746 = vmatpush.bf16.msra.mxu0 0
        %2747 = vmatpush.bf16.msra.mxu0 0
        %2748 = vmatpush.bf16.msra.mxu0 0
        %2749 = vmatpush.bf16.msra.mxu0 0
        %2750 = vmatpush.bf16.msra.mxu0 0
        %2751 = vmatpush.bf16.msra.mxu0 0
        %2752 = vmatpush.bf16.msra.mxu0 %v2581
        %2753 = vmatmul.bf16.gmra.mxu0 %v2743
        %v2754 = vpop.f32.mrf.mxu0
        %v2755 = vadd.f32 0.0, %v2754
        %v2756 = vpop.f32.mrf.mxu0
        %2757 = vdwg.mxu0
        %2758 = vmatpush.bf16.msra.mxu0 0
        %2759 = vmatpush.bf16.msra.mxu0 0
        %2760 = vmatpush.bf16.msra.mxu0 0
        %2761 = vmatpush.bf16.msra.mxu0 0
        %2762 = vmatpush.bf16.msra.mxu0 0
        %2763 = vmatpush.bf16.msra.mxu0 0
        %2764 = vmatpush.bf16.msra.mxu0 0
        %2765 = vmatpush.bf16.msra.mxu0 %v2584
        %2766 = vmatmul.bf16.gmra.mxu0 %v2743
        %v2767 = vpop.f32.mrf.mxu0
        %v2768 = vadd.f32 0.0, %v2767
        %v2769 = vpop.f32.mrf.mxu0
        %2770 = vdwg.mxu0
        %vm2771 = vcmask 523264
        %v2773 = vsel %vm2771, %v2740, 0
        %2775 = vmatpush.bf16.msra.mxu0 0
        %2776 = vmatpush.bf16.msra.mxu0 0
        %2777 = vmatpush.bf16.msra.mxu0 0
        %2778 = vmatpush.bf16.msra.mxu0 0
        %2779 = vmatpush.bf16.msra.mxu0 %v2734
        %2780 = vmatpush.bf16.msra.mxu0 %v2726
        %2781 = vmatpush.bf16.msra.mxu0 %v2718
        %2782 = vmatpush.bf16.msra.mxu0 %v2710
        %2783 = vmatmul.bf16.gmra.mxu0 %v2773
        %v2784 = vpop.f32.mrf.mxu0
        %v2785 = vadd.f32 %v2755, %v2784
        %v2786 = vpop.f32.mrf.mxu0
        %2787 = vdwg.mxu0
        %2788 = vmatpush.bf16.msra.mxu0 0
        %2789 = vmatpush.bf16.msra.mxu0 0
        %2790 = vmatpush.bf16.msra.mxu0 0
        %2791 = vmatpush.bf16.msra.mxu0 0
        %2792 = vmatpush.bf16.msra.mxu0 %v2738
        %2793 = vmatpush.bf16.msra.mxu0 %v2730
        %2794 = vmatpush.bf16.msra.mxu0 %v2722
        %2795 = vmatpush.bf16.msra.mxu0 %v2714
        %2796 = vmatmul.bf16.gmra.mxu0 %v2773
        %v2797 = vpop.f32.mrf.mxu0
        %v2798 = vadd.f32 %v2768, %v2797
        %v2799 = vpop.f32.mrf.mxu0
        %2800 = vdwg.mxu0
        %v2801 = vld [vmem:[%s14] sm:$0xf]
        %v2803 = vsel %vm2566, %v2801, 0
        %v2806 = vsel %vm2579, %v2536, 0
        %v2809 = vsel %vm2579, %v2537, 0
        %2811 = vmatpush.bf16.msra.mxu0 0
        %2812 = vmatpush.bf16.msra.mxu0 0
        %2813 = vmatpush.bf16.msra.mxu0 0
        %2814 = vmatpush.bf16.msra.mxu0 0
        %2815 = vmatpush.bf16.msra.mxu0 0
        %2816 = vmatpush.bf16.msra.mxu0 0
        %2817 = vmatpush.bf16.msra.mxu0 0
        %2818 = vmatpush.bf16.msra.mxu0 %v2806
        %2819 = vmatmul.bf16.gmra.mxu0 %v2803
        %v2820 = vpop.f32.mrf.mxu0
        %v2821 = vadd.f32 0.0, %v2820
        %v2822 = vpop.f32.mrf.mxu0
        %2823 = vdwg.mxu0
        %2824 = vmatpush.bf16.msra.mxu0 0
        %2825 = vmatpush.bf16.msra.mxu0 0
        %2826 = vmatpush.bf16.msra.mxu0 0
        %2827 = vmatpush.bf16.msra.mxu0 0
        %2828 = vmatpush.bf16.msra.mxu0 0
        %2829 = vmatpush.bf16.msra.mxu0 0
        %2830 = vmatpush.bf16.msra.mxu0 0
        %2831 = vmatpush.bf16.msra.mxu0 %v2809
        %2832 = vmatmul.bf16.gmra.mxu0 %v2803
        %v2833 = vpop.f32.mrf.mxu0
        %v2834 = vadd.f32 0.0, %v2833
        %v2835 = vpop.f32.mrf.mxu0
        %2836 = vdwg.mxu0
        %v2837 = vadd.f32 %v2785, %v2821
        %v2838 = vadd.f32 %v2798, %v2834
        %v2839 = vld [vmem:[%s15] sm:$0xff]
        %2841 = vset.pattern.permute.xlu0 0
        %2842 = vperm.xlu0 %2841, %v2839
        %v2843 = vpop.permute.xlu0 %2842
        %v2845 = vadd.f32 %v2837, %v2843
        %v2846 = vadd.f32 %v2838, %v2843
        %v2847 = vtanh.pop %v2845
        %v2848 = vtanh.pop %v2846
        %2849 = vst [vmem:[%s767] sm:$0xff] %v2847
        %2850 = vst [vmem:[%s767 + $0x8] sm:$0xff] %v2848
        %s2851 = sand.u32 %s379, 1
        %s2852 = scalar_lea.sflag [#allocation4], %s2851
        %s2853 = sand.u32 %s379, 1
        %s2854 = smul.addr %s2853, 16
        %s2855 = scalar_lea.vmem [#allocation3], %s2854
        // Predicated region
        $region137: #{tpu_custom_call.1} parent=131 // pred_check
          %p2856 = pneg %p389
        $region138: #{tpu_custom_call.1} parent=131 // pred_check_branch
          %2858 = sbr.rel (%p2856) target = $region140
        $region139: #{tpu_custom_call.1} parent=131 // pred_region
          %s2859 = smul.u32 2, %s30
          %s2860 = ssub.s32 3, %s2859
          %p2861 = scmp.lt.s32.totalorder %s2860, 2
          %s2862 = scalar_select %p2861, %s2860, 2
          %s2863 = smul.u32 8, %s2862
          %s2864 = ssub.s32 16, %s2863
          %s2865 = sshll.u32 %s2864, 4
          %2866 = vsyncadd %s2852, %s2865
          %p2867 = scmp.ne.s32.totalorder 0, %s2863
          %s2868 = smul.addr %s2859, 8
          %s2869 = scalar_lea.hbm %s16, %s2868
          %s2870 = smul.u32 %s2862, 8
          %s2871 = sshll.u32 %s2870, 4
          %s2872 = sshll.u32 %s2855, 4
          %s2873 = int_to_ptr.vmem [resolvable:$true] %s2872
          %s2874 = sshll.u32 %s2869, 4
          %s2875 = int_to_ptr.hbm [resolvable:$true] %s2874
          %2877 = dma.vmem_to_hbm [thread:$0]  (%p2867), %s2873, %s2871, %s2875, %s2852
        $region140: #{tpu_custom_call.1} parent=131 // pred_fallthru
          _
      $region132: #{tpu_custom_call.1} parent=5 // pred_fallthru
        _
      %p2878 = scmp.le.s32.totalorder 2, %s25
      // Predicated region
      $region141: #{tpu_custom_call.1} parent=5 // pred_check
        %p2879 = pneg %p2878
      $region142: #{tpu_custom_call.1} parent=5 // pred_check_branch
        %2881 = sbr.rel (%p2879) target = $region144
      $region143: #{tpu_custom_call.1} parent=5 // pred_region
        %s2882 = ssub.s32 %s25, 2
        // Predicated region
        $region145: #{tpu_custom_call.1} parent=143 // pred_check
          %p2883 = pneg %p395
        $region146: #{tpu_custom_call.1} parent=143 // pred_check_branch
          %2885 = sbr.rel (%p2883) target = $region148
        $region147: #{tpu_custom_call.1} parent=143 // pred_region
          %s2886 = sand.u32 %s380, 1
          %s2887 = scalar_lea.sflag [#allocation4], %s2886
          %s2888 = sand.u32 %s380, 1
          %s2889 = smul.addr %s2888, 16
          %s2890 = scalar_lea.vmem [#allocation3], %s2889
          %2892 = dma.done %s2887, 256
        $region148: #{tpu_custom_call.1} parent=143 // pred_fallthru
          _
      $region144: #{tpu_custom_call.1} parent=5 // pred_fallthru
        _
    $region6: #{tpu_custom_call.1} parent=1 // loop_footer
      %s29 = sadd.s32 1, %s25
    $region7: #{tpu_custom_call.1} parent=1 // loop_footer_branch
      %24 = sbr.rel target = $region3
    $region8: #{tpu_custom_call.1} parent=1 // loop_exit
      _
    %2893 = vsyncpa [#allocation4], 1
    %s2894 = scalar_lea.sflag [#allocation4], 1
    %2895 = vsyncpa %s2894, 1

</llo_original>
